<compile_context>
chip_gen: v5e
topology: v5e:2x2
jax: 0.10.0
libtpu: 0.0.40
codegen_flags: <defaults>
</compile_context>

<pallas_src>
import math
import functools

import jax
import jax.numpy as jnp
from jax.experimental import pallas as pl
from jax.experimental.pallas import tpu as pltpu

_LANE = 128
_VMEM_LIMIT_BYTES = 32 * 1024 * 1024          # safe on v5e / v6e / v7x
_PIPELINE_BUDGET_BYTES = 16 * 1024 * 1024     # for double-buffered input tiles


def _mpcl_kernel(*refs, inv_temperature, cos_m, sin_m, th, mm,
                 easy_margin, has_weights):
    # refs: feat (TN, C) stream-dtype, labels (TN, 1) i32, [weights (TN, 1) f32],
    #       centers (C, K) stream-dtype, out (1, 1) f32 partial sum.
    if has_weights:
        feat_ref, lab_ref, w_ref, centers_ref, out_ref = refs
    else:
        feat_ref, lab_ref, centers_ref, out_ref = refs
        w_ref = None

    feats = feat_ref[...]
    centers = centers_ref[...]

    # cosine similarity against the class prototypes (MXU, f32 accumulation)
    cosine = jnp.dot(feats, centers, preferred_element_type=jnp.float32)

    logits = cosine * inv_temperature
    logits = logits - jnp.max(logits, axis=1, keepdims=True)

    sine = jnp.sqrt(jnp.clip(1.0 - cosine * cosine, 0.0001, 1.0))
    phi = cosine * cos_m - sine * sin_m
    if easy_margin:
        phi = jnp.where(cosine > 0.0, phi, cosine)
    else:
        phi = jnp.where(cosine > th, phi, cosine - mm)

    phi_logits = phi * inv_temperature
    phi_logits = phi_logits - jnp.max(phi_logits, axis=1, keepdims=True)

    # one-hot positive-class mask built from integer labels (padded rows = -1
    # -> all-zero mask -> zero contribution)
    classes = jax.lax.broadcasted_iota(jnp.int32, cosine.shape, 1)
    mask = (lab_ref[...] == classes).astype(jnp.float32)          # (TN, K)

    combined = logits * (1.0 - mask) + phi_logits * mask
    exp_sum = jnp.sum(jnp.exp(combined), axis=1, keepdims=True)
    log_prob = combined - jnp.log(exp_sum + 0.0001)

    pos = mask * log_prob                                          # (TN, K)
    if has_weights:
        pos = pos * w_ref[...]                                     # (TN, 1) bcast

    # fused reduction: one scalar partial sum per grid step
    row = jnp.sum(pos, axis=1, keepdims=True)                      # (TN, 1)
    out_ref[...] = jnp.sum(row, axis=0, keepdims=True)             # (1, 1)


def _pick_tile_n(num_rows, num_channels, feat_itemsize, has_weights):
    """Largest lane-aligned row tile whose double-buffered inputs fit budget."""
    c_pad = max(_LANE, ((num_channels + _LANE - 1) // _LANE) * _LANE)
    per_row = 2 * c_pad * feat_itemsize          # feature tile, 2 pipeline bufs
    per_row += 2 * _LANE * 4                     # labels (TN,1) lane-pad to 128
    if has_weights:
        per_row += 2 * _LANE * 4                 # weights (TN,1) lane-pad
    tile = _PIPELINE_BUDGET_BYTES // per_row
    tile = max(_LANE, min(4096, tile))
    tile = (tile // _LANE) * _LANE
    n_pad = ((max(num_rows, 1) + _LANE - 1) // _LANE) * _LANE
    return min(tile, n_pad)


def mpcl_loss(features, labels, class_center_feas, pixel_sel_loc=None,
              num_class=5, temperature=0.07, m=0.5, base_temperature=0.07,
              easy_margin=False, feature_dtype=jnp.bfloat16, tile_n=None):
    """JAX/Pallas equivalent of MPCL.forward (labels path, n_views == 1)."""
    if features.ndim < 3:
        raise ValueError("`features` needs to be [bsz, n_views, ...]")
    if features.ndim > 3:
        features = features.reshape(features.shape[0], features.shape[1], -1)

    num_samples = features.shape[0]
    n_views = features.shape[1]
    if n_views != 1:
        # TODO(synk): reference mask.repeat(...) math only type-checks for n_views==1
        raise ValueError("only n_views == 1 is supported (as in the reference usage)")

    C = features.shape[2]
    K = class_center_feas.shape[1]
    assert K == num_class

    has_weights = pixel_sel_loc is not None

    anchor = features.reshape(num_samples, C).astype(feature_dtype)
    centers = class_center_feas.astype(feature_dtype)
    labels_flat = labels.reshape(-1, 1).astype(jnp.int32)
    if labels_flat.shape[0] != num_samples:
        raise ValueError("Num of labels does not match num of features")

    if tile_n is None:
        tile_n = _pick_tile_n(num_samples, C, jnp.dtype(feature_dtype).itemsize,
                              has_weights)
    else:
        tile_n = max(_LANE, (int(tile_n) // _LANE) * _LANE)

    # pad N up to a multiple of the row tile; padded rows get label=-1/weight=0
    # so they contribute exactly zero to the fused reduction.
    n_pad = pl.cdiv(num_samples, tile_n) * tile_n
    pad = n_pad - num_samples
    if pad:
        anchor = jnp.pad(anchor, ((0, pad), (0, 0)))
        labels_flat = jnp.pad(labels_flat, ((0, pad), (0, 0)), constant_values=-1)

    if has_weights:
        weights = pixel_sel_loc.reshape(-1, 1).astype(jnp.float32)
        if pad:
            weights = jnp.pad(weights, ((0, pad), (0, 0)))

    n_tiles = n_pad // tile_n

    kernel = functools.partial(
        _mpcl_kernel,
        inv_temperature=1.0 / float(temperature),
        cos_m=math.cos(m), sin_m=math.sin(m),
        th=math.cos(math.pi - m), mm=math.sin(math.pi - m) * m,
        easy_margin=easy_margin,
        has_weights=has_weights,
    )

    in_specs = [pl.BlockSpec((tile_n, C), lambda i: (i, 0)),
                pl.BlockSpec((tile_n, 1), lambda i: (i, 0))]
    args = [anchor, labels_flat]
    if has_weights:
        in_specs.append(pl.BlockSpec((tile_n, 1), lambda i: (i, 0)))
        args.append(weights)
    # centers are tiny; constant block index keeps them VMEM-resident.
    in_specs.append(pl.BlockSpec((C, K), lambda i: (0, 0)))
    args.append(centers)

    partials = pl.pallas_call(
        kernel,
        out_shape=jax.ShapeDtypeStruct((n_tiles, 1), jnp.float32),
        grid_spec=pltpu.PrefetchScalarGridSpec(
            num_scalar_prefetch=0,
            grid=(n_tiles,),
            in_specs=in_specs,
            out_specs=pl.BlockSpec((1, 1), lambda i: (i, 0)),
        ),
        compiler_params=pltpu.CompilerParams(
            dimension_semantics=("parallel",),
            vmem_limit_bytes=_VMEM_LIMIT_BYTES),
    )(*args)

    total = jnp.sum(partials)                        # sum over n_tiles partials
    scale = temperature / base_temperature
    if has_weights:
        psl_sum = jnp.sum(pixel_sel_loc.reshape(-1).astype(jnp.float32))
        loss = -scale * total / (psl_sum + 0.0001)
    else:
        loss = -scale * total / num_samples          # anchor_count == 1 -> mean
    return loss


def _mpcl_reference(features, labels, class_center_feas, pixel_sel_loc=None,
                    num_class=5, temperature=0.07, m=0.5, base_temperature=0.07,
                    easy_margin=False):
    """Pure-JAX f32 reference (mirrors the PyTorch module)."""
    feats = features.reshape(features.shape[0], -1).astype(jnp.float32)
    lab = labels.reshape(-1, 1).astype(jnp.int32)
    cosine = feats @ class_center_feas.astype(jnp.float32)
    logits = cosine / temperature
    logits = logits - jnp.max(logits, axis=1, keepdims=True)
    sine = jnp.sqrt(jnp.clip(1.0 - cosine ** 2, 0.0001, 1.0))
    phi = cosine * math.cos(m) - sine * math.sin(m)
    if easy_margin:
        phi = jnp.where(cosine > 0.0, phi, cosine)
    else:
        phi = jnp.where(cosine > math.cos(math.pi - m), phi,
                        cosine - math.sin(math.pi - m) * m)
    phi_logits = phi / temperature
    phi_logits = phi_logits - jnp.max(phi_logits, axis=1, keepdims=True)
    mask = (lab == jnp.arange(num_class)[None, :]).astype(jnp.float32)
    combined = logits * (1.0 - mask) + phi_logits * mask
    log_prob = combined - jnp.log(
        jnp.sum(jnp.exp(combined), axis=1, keepdims=True) + 0.0001)
    mlp = jnp.sum(mask * log_prob, axis=1)
    scale = temperature / base_temperature
    if pixel_sel_loc is not None:
        psl = pixel_sel_loc.reshape(-1).astype(jnp.float32)
        return jnp.sum(-scale * psl * mlp) / (jnp.sum(psl) + 0.0001)
    return jnp.mean(-scale * mlp)


if __name__ == "__main__":
    key = jax.random.PRNGKey(0)
    k1, k2, k3, k4 = jax.random.split(key, 4)

    B, H, W, C, NUM_CLASS = 2, 16, 16, 32, 5
    N = B * H * W

    feats = jax.random.normal(k1, (N, 1, C), dtype=jnp.float32)
    feats = feats / (jnp.linalg.norm(feats, axis=-1, keepdims=True) + 1e-12)

    labels = jax.random.randint(k2, (B, H, W), 0, NUM_CLASS, dtype=jnp.int32)

    centers = jax.random.normal(k3, (C, NUM_CLASS), dtype=jnp.float32)
    centers = centers / (jnp.linalg.norm(centers, axis=0, keepdims=True) + 1e-12)

    psl = (jax.random.uniform(k4, (N,)) > 0.5).astype(jnp.float32)

    # exact f32-streaming path checked against the pure-JAX reference
    loss_f32 = mpcl_loss(feats, labels, centers, feature_dtype=jnp.float32)
    loss_f32_psl = mpcl_loss(feats, labels, centers, pixel_sel_loc=psl,
                             feature_dtype=jnp.float32)
    ref = _mpcl_reference(feats, labels, centers)
    ref_psl = _mpcl_reference(feats, labels, centers, pixel_sel_loc=psl)
    jax.block_until_ready((loss_f32, loss_f32_psl, ref, ref_psl))
    assert abs(float(loss_f32) - float(ref)) < 1e-3
    assert abs(float(loss_f32_psl) - float(ref_psl)) < 1e-3

    # default fast path: bf16 streaming, fused reduction
    loss = mpcl_loss(feats, labels, centers)
    loss_psl = mpcl_loss(feats, labels, centers, pixel_sel_loc=psl)
    jax.block_until_ready((loss, loss_psl))

    print("KERNEL_OK")
</pallas_src>

<mosaic_0001>
module attributes {stable_mosaic.version = 11 : i64} {
  func.func @_mpcl_kernel(%arg0: i32, %arg1: memref<512x32xf32, #tpu.memory_space<vmem>>, %arg2: memref<512x1xi32, #tpu.memory_space<vmem>>, %arg3: memref<32x5xf32, #tpu.memory_space<vmem>>, %arg4: memref<1x1xf32, #tpu.memory_space<vmem>>) attributes {dimension_semantics = [#tpu.dimension_semantics<parallel>], iteration_bounds = array<i64: 1>, scalar_prefetch = 0 : i64, scratch_operands = 0 : i64, tpu.core_type = #tpu.core_type<tc>, window_params = [{transform_indices = @transform_0, window_bounds = array<i64: 512, 32>}, {transform_indices = @transform_1, window_bounds = array<i64: 512, 1>}, {pipeline_mode = #tpu.pipeline_mode<synchronous>, transform_indices = @transform_2, window_bounds = array<i64: 32, 5>}, {transform_indices = @transform_3, window_bounds = array<i64: 1, 1>}]} {
    %c0 = arith.constant 0 : index
    %c0_0 = arith.constant 0 : index
    %0 = vector.load %arg1[%c0, %c0_0] : memref<512x32xf32, #tpu.memory_space<vmem>>, vector<512x32xf32>
    %c0_1 = arith.constant 0 : index
    %c0_2 = arith.constant 0 : index
    %1 = vector.load %arg3[%c0_1, %c0_2] : memref<32x5xf32, #tpu.memory_space<vmem>>, vector<32x5xf32>
    %cst = arith.constant dense<0.000000e+00> : vector<512x5xf32>
    %2 = tpu.matmul %0, %1, %cst {dimension_numbers = #tpu.dot_dimension_numbers<[1], [0], [0], [1], [0, 0, 1, 1], [], []>} : vector<512x32xf32>, vector<32x5xf32>, vector<512x5xf32> -> vector<512x5xf32>
    %cst_3 = arith.constant 14.2857141 : f32
    %3 = vector.broadcast %cst_3 : f32 to vector<512x5xf32>
    %4 = arith.mulf %2, %3 : vector<512x5xf32>
    %cst_4 = arith.constant dense<0xFF800000> : vector<512xf32>
    %5 = vector.multi_reduction <maximumf>, %4, %cst_4 [1] : vector<512x5xf32> to vector<512xf32>
    %6 = vector.shape_cast %5 : vector<512xf32> to vector<512x1xf32>
    %7 = vector.broadcast %6 : vector<512x1xf32> to vector<512x5xf32>
    %8 = arith.subf %4, %7 : vector<512x5xf32>
    %9 = arith.mulf %2, %2 : vector<512x5xf32>
    %cst_5 = arith.constant 1.000000e+00 : f32
    %10 = vector.broadcast %cst_5 : f32 to vector<512x5xf32>
    %11 = arith.subf %10, %9 : vector<512x5xf32>
    %cst_6 = arith.constant 9.99999974E-5 : f32
    %cst_7 = arith.constant 1.000000e+00 : f32
    %12 = vector.broadcast %cst_6 : f32 to vector<512x5xf32>
    %13 = arith.maximumf %12, %11 : vector<512x5xf32>
    %14 = vector.broadcast %cst_7 : f32 to vector<512x5xf32>
    %15 = arith.minimumf %14, %13 : vector<512x5xf32>
    %16 = math.sqrt %15 : vector<512x5xf32>
    %cst_8 = arith.constant 0.87758255 : f32
    %17 = vector.broadcast %cst_8 : f32 to vector<512x5xf32>
    %18 = arith.mulf %2, %17 : vector<512x5xf32>
    %cst_9 = arith.constant 0.47942555 : f32
    %19 = vector.broadcast %cst_9 : f32 to vector<512x5xf32>
    %20 = arith.mulf %16, %19 : vector<512x5xf32>
    %21 = arith.subf %18, %20 : vector<512x5xf32>
    %cst_10 = arith.constant -0.87758255 : f32
    %22 = vector.broadcast %cst_10 : f32 to vector<512x5xf32>
    %23 = arith.cmpf ogt, %2, %22 : vector<512x5xf32>
    %cst_11 = arith.constant 0.239712775 : f32
    %24 = vector.broadcast %cst_11 : f32 to vector<512x5xf32>
    %25 = arith.subf %2, %24 : vector<512x5xf32>
    %26 = arith.select %23, %21, %25 : vector<512x5xi1>, vector<512x5xf32>
    %cst_12 = arith.constant 14.2857141 : f32
    %27 = vector.broadcast %cst_12 : f32 to vector<512x5xf32>
    %28 = arith.mulf %26, %27 : vector<512x5xf32>
    %cst_13 = arith.constant dense<0xFF800000> : vector<512xf32>
    %29 = vector.multi_reduction <maximumf>, %28, %cst_13 [1] : vector<512x5xf32> to vector<512xf32>
    %30 = vector.shape_cast %29 : vector<512xf32> to vector<512x1xf32>
    %31 = vector.broadcast %30 : vector<512x1xf32> to vector<512x5xf32>
    %32 = arith.subf %28, %31 : vector<512x5xf32>
    %33 = tpu.iota {dimensions = array<i32: 1>} : vector<512x5xi32>
    %c0_14 = arith.constant 0 : index
    %c0_15 = arith.constant 0 : index
    %34 = vector.load %arg2[%c0_14, %c0_15] : memref<512x1xi32, #tpu.memory_space<vmem>>, vector<512x1xi32>
    %35 = vector.broadcast %34 : vector<512x1xi32> to vector<512x5xi32>
    %36 = arith.cmpi eq, %35, %33 : vector<512x5xi32>
    %37 = arith.extui %36 : vector<512x5xi1> to vector<512x5xi32>
    %38 = arith.sitofp %37 : vector<512x5xi32> to vector<512x5xf32>
    %cst_16 = arith.constant 1.000000e+00 : f32
    %39 = vector.broadcast %cst_16 : f32 to vector<512x5xf32>
    %40 = arith.subf %39, %38 : vector<512x5xf32>
    %41 = arith.mulf %8, %40 : vector<512x5xf32>
    %42 = arith.mulf %32, %38 : vector<512x5xf32>
    %43 = arith.addf %41, %42 : vector<512x5xf32>
    %44 = math.exp %43 : vector<512x5xf32>
    %cst_17 = arith.constant dense<0.000000e+00> : vector<512xf32>
    %45 = vector.multi_reduction <add>, %44, %cst_17 [1] : vector<512x5xf32> to vector<512xf32>
    %46 = vector.shape_cast %45 : vector<512xf32> to vector<512x1xf32>
    %cst_18 = arith.constant 9.99999974E-5 : f32
    %47 = vector.broadcast %cst_18 : f32 to vector<512x1xf32>
    %48 = arith.addf %46, %47 : vector<512x1xf32>
    %49 = math.log %48 : vector<512x1xf32>
    %50 = vector.broadcast %49 : vector<512x1xf32> to vector<512x5xf32>
    %51 = arith.subf %43, %50 : vector<512x5xf32>
    %52 = arith.mulf %38, %51 : vector<512x5xf32>
    %cst_19 = arith.constant dense<0.000000e+00> : vector<512xf32>
    %53 = vector.multi_reduction <add>, %52, %cst_19 [1] : vector<512x5xf32> to vector<512xf32>
    %54 = vector.shape_cast %53 : vector<512xf32> to vector<512x1xf32>
    %cst_20 = arith.constant dense<0.000000e+00> : vector<1xf32>
    %55 = vector.multi_reduction <add>, %54, %cst_20 [0] : vector<512x1xf32> to vector<1xf32>
    %56 = vector.shape_cast %55 : vector<1xf32> to vector<1x1xf32>
    %c0_21 = arith.constant 0 : index
    %c0_22 = arith.constant 0 : index
    %57 = vector.load %arg4[%c0_21, %c0_22] : memref<1x1xf32, #tpu.memory_space<vmem>>, vector<1x1xf32>
    tpu.vector_store %arg4[%c0_21, %c0_22], %56 {strides = array<i32>} : memref<1x1xf32, #tpu.memory_space<vmem>>, vector<1x1xf32>,
    return
  }
  func.func @transform_0(%arg0: i32) -> (i32, i32) {
    %c0_i32 = arith.constant 0 : i32
    %c0_i32_0 = arith.constant 0 : i32
    return %arg0, %c0_i32 : i32, i32
  }
  func.func @transform_1(%arg0: i32) -> (i32, i32) {
    %c0_i32 = arith.constant 0 : i32
    %c0_i32_0 = arith.constant 0 : i32
    return %arg0, %c0_i32 : i32, i32
  }
  func.func @transform_2(%arg0: i32) -> (i32, i32) {
    %c0_i32 = arith.constant 0 : i32
    %c0_i32_0 = arith.constant 0 : i32
    %c0_i32_1 = arith.constant 0 : i32
    return %c0_i32, %c0_i32_0 : i32, i32
  }
  func.func @transform_3(%arg0: i32) -> (i32, i32) {
    %c0_i32 = arith.constant 0 : i32
    %c0_i32_0 = arith.constant 0 : i32
    return %arg0, %c0_i32 : i32, i32
  }
}

</mosaic_0001>

<llo_original>
// kernel: tpu_custom_call.1
$region0: #{tpu_custom_call.1}
  #allocation0 [shape = 'u32[]', space=smem, size = 0x4, offset = 0x4, fixed_abs, tag = 'smem constant byte address 0x4 - core index']
  #allocation1 [shape = 'u32[72,128]{1,0:T(1,128)}', space=vmem, size = 0x9000, scoped, tag = 'internal scratch']
  %s0 = inlined_call_operand.vmem [shape: f32[512,32], index: 0, kind: input, shape index: {}]
  %s1 = inlined_call_operand.vmem [shape: s32[512,1], index: 1, kind: input, shape index: {}]
  %s2 = inlined_call_operand.vmem [shape: f32[32,5], index: 2, kind: input, shape index: {}]
  %s3 = inlined_call_operand.hbm [shape: f32[1,1], index: 3, kind: output, shape index: {}]
  %s4 = sld [smem:[#allocation0]]
  $region22: #{tpu_custom_call.1} parent=0
    _
  %s6 = ssub.s32 1, %s4
  %s7 = scalar_select 0, %s6, %s4
  $region1: #{tpu_custom_call.1} parent=0
    #allocation2 [shape = 'u8[512]{0}', space=vmem, size = 0x400, scoped, tag = 'output window, operand 0, single buffered']
    #allocation3 [shape = 's32[1]{0}', space=sflag, size = 0x4, scoped, tag = 'scoped memory for tpu_custom_call.1']
    %8 = vsyncpa [#allocation3], 0
    // Predicated region
    $region2: #{tpu_custom_call.1} parent=1 // pred_check
      _
    $region3: #{tpu_custom_call.1} parent=1 // pred_check_branch
      %10 = sbr.rel (0) target = $region5
    $region4: #{tpu_custom_call.1} parent=1 // pred_region
      _
    $region5: #{tpu_custom_call.1} parent=1 // pred_fallthru
      _
    // Predicated region
    $region6: #{tpu_custom_call.1} parent=1 // pred_check
      _
    $region7: #{tpu_custom_call.1} parent=1 // pred_check_branch
      %12 = sbr.rel (0) target = $region9
    $region8: #{tpu_custom_call.1} parent=1 // pred_region
      _
    $region9: #{tpu_custom_call.1} parent=1 // pred_fallthru
      _
    // Predicated region
    $region10: #{tpu_custom_call.1} parent=1 // pred_check
      _
    $region11: #{tpu_custom_call.1} parent=1 // pred_check_branch
      %14 = sbr.rel (0) target = $region13
    $region12: #{tpu_custom_call.1} parent=1 // pred_region
      _
    $region13: #{tpu_custom_call.1} parent=1 // pred_fallthru
      _
    %v15 = vld [vmem:[%s0] sm:$0xff]
    %v16 = vld [vmem:[%s0 + $0x8] sm:$0xff]
    %v17 = vld [vmem:[%s0 + $0x10] sm:$0xff]
    %v18 = vld [vmem:[%s0 + $0x18] sm:$0xff]
    %v19 = vld [vmem:[%s0 + $0x20] sm:$0xff]
    %v20 = vld [vmem:[%s0 + $0x28] sm:$0xff]
    %v21 = vld [vmem:[%s0 + $0x30] sm:$0xff]
    %v22 = vld [vmem:[%s0 + $0x38] sm:$0xff]
    %v23 = vld [vmem:[%s0 + $0x40] sm:$0xff]
    %v24 = vld [vmem:[%s0 + $0x48] sm:$0xff]
    %v25 = vld [vmem:[%s0 + $0x50] sm:$0xff]
    %v26 = vld [vmem:[%s0 + $0x58] sm:$0xff]
    %v27 = vld [vmem:[%s0 + $0x60] sm:$0xff]
    %v28 = vld [vmem:[%s0 + $0x68] sm:$0xff]
    %v29 = vld [vmem:[%s0 + $0x70] sm:$0xff]
    %v30 = vld [vmem:[%s0 + $0x78] sm:$0xff]
    %v31 = vld [vmem:[%s0 + $0x80] sm:$0xff]
    %v32 = vld [vmem:[%s0 + $0x88] sm:$0xff]
    %v33 = vld [vmem:[%s0 + $0x90] sm:$0xff]
    %v34 = vld [vmem:[%s0 + $0x98] sm:$0xff]
    %v35 = vld [vmem:[%s0 + $0xa0] sm:$0xff]
    %v36 = vld [vmem:[%s0 + $0xa8] sm:$0xff]
    %v37 = vld [vmem:[%s0 + $0xb0] sm:$0xff]
    %v38 = vld [vmem:[%s0 + $0xb8] sm:$0xff]
    %v39 = vld [vmem:[%s0 + $0xc0] sm:$0xff]
    %v40 = vld [vmem:[%s0 + $0xc8] sm:$0xff]
    %v41 = vld [vmem:[%s0 + $0xd0] sm:$0xff]
    %v42 = vld [vmem:[%s0 + $0xd8] sm:$0xff]
    %v43 = vld [vmem:[%s0 + $0xe0] sm:$0xff]
    %v44 = vld [vmem:[%s0 + $0xe8] sm:$0xff]
    %v45 = vld [vmem:[%s0 + $0xf0] sm:$0xff]
    %v46 = vld [vmem:[%s0 + $0xf8] sm:$0xff]
    %v47 = vld [vmem:[%s0 + $0x100] sm:$0xff]
    %v48 = vld [vmem:[%s0 + $0x108] sm:$0xff]
    %v49 = vld [vmem:[%s0 + $0x110] sm:$0xff]
    %v50 = vld [vmem:[%s0 + $0x118] sm:$0xff]
    %v51 = vld [vmem:[%s0 + $0x120] sm:$0xff]
    %v52 = vld [vmem:[%s0 + $0x128] sm:$0xff]
    %v53 = vld [vmem:[%s0 + $0x130] sm:$0xff]
    %v54 = vld [vmem:[%s0 + $0x138] sm:$0xff]
    %v55 = vld [vmem:[%s0 + $0x140] sm:$0xff]
    %v56 = vld [vmem:[%s0 + $0x148] sm:$0xff]
    %v57 = vld [vmem:[%s0 + $0x150] sm:$0xff]
    %v58 = vld [vmem:[%s0 + $0x158] sm:$0xff]
    %v59 = vld [vmem:[%s0 + $0x160] sm:$0xff]
    %v60 = vld [vmem:[%s0 + $0x168] sm:$0xff]
    %v61 = vld [vmem:[%s0 + $0x170] sm:$0xff]
    %v62 = vld [vmem:[%s0 + $0x178] sm:$0xff]
    %v63 = vld [vmem:[%s0 + $0x180] sm:$0xff]
    %v64 = vld [vmem:[%s0 + $0x188] sm:$0xff]
    %v65 = vld [vmem:[%s0 + $0x190] sm:$0xff]
    %v66 = vld [vmem:[%s0 + $0x198] sm:$0xff]
    %v67 = vld [vmem:[%s0 + $0x1a0] sm:$0xff]
    %v68 = vld [vmem:[%s0 + $0x1a8] sm:$0xff]
    %v69 = vld [vmem:[%s0 + $0x1b0] sm:$0xff]
    %v70 = vld [vmem:[%s0 + $0x1b8] sm:$0xff]
    %v71 = vld [vmem:[%s0 + $0x1c0] sm:$0xff]
    %v72 = vld [vmem:[%s0 + $0x1c8] sm:$0xff]
    %v73 = vld [vmem:[%s0 + $0x1d0] sm:$0xff]
    %v74 = vld [vmem:[%s0 + $0x1d8] sm:$0xff]
    %v75 = vld [vmem:[%s0 + $0x1e0] sm:$0xff]
    %v76 = vld [vmem:[%s0 + $0x1e8] sm:$0xff]
    %v77 = vld [vmem:[%s0 + $0x1f0] sm:$0xff]
    %v78 = vld [vmem:[%s0 + $0x1f8] sm:$0xff]
    %v79 = vld [vmem:[%s2] sm:$0xff]
    %v80 = vld [vmem:[%s2 + $0x8] sm:$0xff]
    %v81 = vld [vmem:[%s2 + $0x10] sm:$0xff]
    %v82 = vld [vmem:[%s2 + $0x18] sm:$0xff]
    %vm83 = vcmask 261120
    %v85 = vsel %vm83, %v15, 0
    %v88 = vsel %vm83, %v16, 0
    %v91 = vsel %vm83, %v17, 0
    %v94 = vsel %vm83, %v18, 0
    %v97 = vsel %vm83, %v19, 0
    %v100 = vsel %vm83, %v20, 0
    %v103 = vsel %vm83, %v21, 0
    %v106 = vsel %vm83, %v22, 0
    %v109 = vsel %vm83, %v23, 0
    %v112 = vsel %vm83, %v24, 0
    %v115 = vsel %vm83, %v25, 0
    %v118 = vsel %vm83, %v26, 0
    %v121 = vsel %vm83, %v27, 0
    %v124 = vsel %vm83, %v28, 0
    %v127 = vsel %vm83, %v29, 0
    %v130 = vsel %vm83, %v30, 0
    %v133 = vsel %vm83, %v31, 0
    %v136 = vsel %vm83, %v32, 0
    %v139 = vsel %vm83, %v33, 0
    %v142 = vsel %vm83, %v34, 0
    %v145 = vsel %vm83, %v35, 0
    %v148 = vsel %vm83, %v36, 0
    %v151 = vsel %vm83, %v37, 0
    %v154 = vsel %vm83, %v38, 0
    %v157 = vsel %vm83, %v39, 0
    %v160 = vsel %vm83, %v40, 0
    %v163 = vsel %vm83, %v41, 0
    %v166 = vsel %vm83, %v42, 0
    %v169 = vsel %vm83, %v43, 0
    %v172 = vsel %vm83, %v44, 0
    %v175 = vsel %vm83, %v45, 0
    %v178 = vsel %vm83, %v46, 0
    %v181 = vsel %vm83, %v47, 0
    %v184 = vsel %vm83, %v48, 0
    %v187 = vsel %vm83, %v49, 0
    %v190 = vsel %vm83, %v50, 0
    %v193 = vsel %vm83, %v51, 0
    %v196 = vsel %vm83, %v52, 0
    %v199 = vsel %vm83, %v53, 0
    %v202 = vsel %vm83, %v54, 0
    %v205 = vsel %vm83, %v55, 0
    %v208 = vsel %vm83, %v56, 0
    %v211 = vsel %vm83, %v57, 0
    %v214 = vsel %vm83, %v58, 0
    %v217 = vsel %vm83, %v59, 0
    %v220 = vsel %vm83, %v60, 0
    %v223 = vsel %vm83, %v61, 0
    %v226 = vsel %vm83, %v62, 0
    %v229 = vsel %vm83, %v63, 0
    %v232 = vsel %vm83, %v64, 0
    %v235 = vsel %vm83, %v65, 0
    %v238 = vsel %vm83, %v66, 0
    %v241 = vsel %vm83, %v67, 0
    %v244 = vsel %vm83, %v68, 0
    %v247 = vsel %vm83, %v69, 0
    %v250 = vsel %vm83, %v70, 0
    %v253 = vsel %vm83, %v71, 0
    %v256 = vsel %vm83, %v72, 0
    %v259 = vsel %vm83, %v73, 0
    %v262 = vsel %vm83, %v74, 0
    %v265 = vsel %vm83, %v75, 0
    %v268 = vsel %vm83, %v76, 0
    %v271 = vsel %vm83, %v77, 0
    %v274 = vsel %vm83, %v78, 0
    %276 = vmatpush.msra.mxu0 0.0
    %277 = vmatpush.msra.mxu0 0.0
    %278 = vmatpush.msra.mxu0 0.0
    %279 = vmatpush.msra.mxu0 0.0
    %280 = vmatpush.msra.mxu0 0.0
    %281 = vmatpush.msra.mxu0 0.0
    %282 = vmatpush.msra.mxu0 0.0
    %283 = vmatpush.msra.mxu0 0.0
    %284 = vmatpush.msra.mxu0 0.0
    %285 = vmatpush.msra.mxu0 0.0
    %286 = vmatpush.msra.mxu0 0.0
    %287 = vmatpush.msra.mxu0 0.0
    %288 = vmatpush.msra.mxu0 %v82
    %289 = vmatpush.msra.mxu0 %v81
    %290 = vmatpush.msra.mxu0 %v80
    %291 = vmatpush.msra.mxu0 %v79
    %292 = vmatmul.f32.gmra.mxu0 %v85
    %v293 = vpop.f32.mrf.mxu0
    %v294 = vadd.f32 0.0, %v293
    %295 = vmatmul.f32.gmra.mxu0 %v88
    %v296 = vpop.f32.mrf.mxu0
    %v297 = vadd.f32 0.0, %v296
    %298 = vmatmul.f32.gmra.mxu0 %v91
    %v299 = vpop.f32.mrf.mxu0
    %v300 = vadd.f32 0.0, %v299
    %301 = vmatmul.f32.gmra.mxu0 %v94
    %v302 = vpop.f32.mrf.mxu0
    %v303 = vadd.f32 0.0, %v302
    %304 = vmatmul.f32.gmra.mxu0 %v97
    %v305 = vpop.f32.mrf.mxu0
    %v306 = vadd.f32 0.0, %v305
    %307 = vmatmul.f32.gmra.mxu0 %v100
    %v308 = vpop.f32.mrf.mxu0
    %v309 = vadd.f32 0.0, %v308
    %310 = vmatmul.f32.gmra.mxu0 %v103
    %v311 = vpop.f32.mrf.mxu0
    %v312 = vadd.f32 0.0, %v311
    %313 = vmatmul.f32.gmra.mxu0 %v106
    %v314 = vpop.f32.mrf.mxu0
    %v315 = vadd.f32 0.0, %v314
    %316 = vmatmul.f32.gmra.mxu0 %v109
    %v317 = vpop.f32.mrf.mxu0
    %v318 = vadd.f32 0.0, %v317
    %319 = vmatmul.f32.gmra.mxu0 %v112
    %v320 = vpop.f32.mrf.mxu0
    %v321 = vadd.f32 0.0, %v320
    %322 = vmatmul.f32.gmra.mxu0 %v115
    %v323 = vpop.f32.mrf.mxu0
    %v324 = vadd.f32 0.0, %v323
    %325 = vmatmul.f32.gmra.mxu0 %v118
    %v326 = vpop.f32.mrf.mxu0
    %v327 = vadd.f32 0.0, %v326
    %328 = vmatmul.f32.gmra.mxu0 %v121
    %v329 = vpop.f32.mrf.mxu0
    %v330 = vadd.f32 0.0, %v329
    %331 = vmatmul.f32.gmra.mxu0 %v124
    %v332 = vpop.f32.mrf.mxu0
    %v333 = vadd.f32 0.0, %v332
    %334 = vmatmul.f32.gmra.mxu0 %v127
    %v335 = vpop.f32.mrf.mxu0
    %v336 = vadd.f32 0.0, %v335
    %337 = vmatmul.f32.gmra.mxu0 %v130
    %v338 = vpop.f32.mrf.mxu0
    %v339 = vadd.f32 0.0, %v338
    %340 = vmatmul.f32.gmra.mxu0 %v133
    %v341 = vpop.f32.mrf.mxu0
    %v342 = vadd.f32 0.0, %v341
    %343 = vmatmul.f32.gmra.mxu0 %v136
    %v344 = vpop.f32.mrf.mxu0
    %v345 = vadd.f32 0.0, %v344
    %346 = vmatmul.f32.gmra.mxu0 %v139
    %v347 = vpop.f32.mrf.mxu0
    %v348 = vadd.f32 0.0, %v347
    %349 = vmatmul.f32.gmra.mxu0 %v142
    %v350 = vpop.f32.mrf.mxu0
    %v351 = vadd.f32 0.0, %v350
    %352 = vmatmul.f32.gmra.mxu0 %v145
    %v353 = vpop.f32.mrf.mxu0
    %v354 = vadd.f32 0.0, %v353
    %355 = vmatmul.f32.gmra.mxu0 %v148
    %v356 = vpop.f32.mrf.mxu0
    %v357 = vadd.f32 0.0, %v356
    %358 = vmatmul.f32.gmra.mxu0 %v151
    %v359 = vpop.f32.mrf.mxu0
    %v360 = vadd.f32 0.0, %v359
    %361 = vmatmul.f32.gmra.mxu0 %v154
    %v362 = vpop.f32.mrf.mxu0
    %v363 = vadd.f32 0.0, %v362
    %364 = vmatmul.f32.gmra.mxu0 %v157
    %v365 = vpop.f32.mrf.mxu0
    %v366 = vadd.f32 0.0, %v365
    %367 = vmatmul.f32.gmra.mxu0 %v160
    %v368 = vpop.f32.mrf.mxu0
    %v369 = vadd.f32 0.0, %v368
    %370 = vmatmul.f32.gmra.mxu0 %v163
    %v371 = vpop.f32.mrf.mxu0
    %v372 = vadd.f32 0.0, %v371
    %373 = vmatmul.f32.gmra.mxu0 %v166
    %v374 = vpop.f32.mrf.mxu0
    %v375 = vadd.f32 0.0, %v374
    %376 = vmatmul.f32.gmra.mxu0 %v169
    %v377 = vpop.f32.mrf.mxu0
    %v378 = vadd.f32 0.0, %v377
    %379 = vmatmul.f32.gmra.mxu0 %v172
    %v380 = vpop.f32.mrf.mxu0
    %v381 = vadd.f32 0.0, %v380
    %382 = vmatmul.f32.gmra.mxu0 %v175
    %v383 = vpop.f32.mrf.mxu0
    %v384 = vadd.f32 0.0, %v383
    %385 = vmatmul.f32.gmra.mxu0 %v178
    %v386 = vpop.f32.mrf.mxu0
    %v387 = vadd.f32 0.0, %v386
    %388 = vmatmul.f32.gmra.mxu0 %v181
    %v389 = vpop.f32.mrf.mxu0
    %v390 = vadd.f32 0.0, %v389
    %391 = vmatmul.f32.gmra.mxu0 %v184
    %v392 = vpop.f32.mrf.mxu0
    %v393 = vadd.f32 0.0, %v392
    %394 = vmatmul.f32.gmra.mxu0 %v187
    %v395 = vpop.f32.mrf.mxu0
    %v396 = vadd.f32 0.0, %v395
    %397 = vmatmul.f32.gmra.mxu0 %v190
    %v398 = vpop.f32.mrf.mxu0
    %v399 = vadd.f32 0.0, %v398
    %400 = vmatmul.f32.gmra.mxu0 %v193
    %v401 = vpop.f32.mrf.mxu0
    %v402 = vadd.f32 0.0, %v401
    %403 = vmatmul.f32.gmra.mxu0 %v196
    %v404 = vpop.f32.mrf.mxu0
    %v405 = vadd.f32 0.0, %v404
    %406 = vmatmul.f32.gmra.mxu0 %v199
    %v407 = vpop.f32.mrf.mxu0
    %v408 = vadd.f32 0.0, %v407
    %409 = vmatmul.f32.gmra.mxu0 %v202
    %v410 = vpop.f32.mrf.mxu0
    %v411 = vadd.f32 0.0, %v410
    %412 = vmatmul.f32.gmra.mxu0 %v205
    %v413 = vpop.f32.mrf.mxu0
    %v414 = vadd.f32 0.0, %v413
    %415 = vmatmul.f32.gmra.mxu0 %v208
    %v416 = vpop.f32.mrf.mxu0
    %v417 = vadd.f32 0.0, %v416
    %418 = vmatmul.f32.gmra.mxu0 %v211
    %v419 = vpop.f32.mrf.mxu0
    %v420 = vadd.f32 0.0, %v419
    %421 = vmatmul.f32.gmra.mxu0 %v214
    %v422 = vpop.f32.mrf.mxu0
    %v423 = vadd.f32 0.0, %v422
    %424 = vmatmul.f32.gmra.mxu0 %v217
    %v425 = vpop.f32.mrf.mxu0
    %v426 = vadd.f32 0.0, %v425
    %427 = vmatmul.f32.gmra.mxu0 %v220
    %v428 = vpop.f32.mrf.mxu0
    %v429 = vadd.f32 0.0, %v428
    %430 = vmatmul.f32.gmra.mxu0 %v223
    %v431 = vpop.f32.mrf.mxu0
    %v432 = vadd.f32 0.0, %v431
    %433 = vmatmul.f32.gmra.mxu0 %v226
    %v434 = vpop.f32.mrf.mxu0
    %v435 = vadd.f32 0.0, %v434
    %436 = vmatmul.f32.gmra.mxu0 %v229
    %v437 = vpop.f32.mrf.mxu0
    %v438 = vadd.f32 0.0, %v437
    %439 = vmatmul.f32.gmra.mxu0 %v232
    %v440 = vpop.f32.mrf.mxu0
    %v441 = vadd.f32 0.0, %v440
    %442 = vmatmul.f32.gmra.mxu0 %v235
    %v443 = vpop.f32.mrf.mxu0
    %v444 = vadd.f32 0.0, %v443
    %445 = vmatmul.f32.gmra.mxu0 %v238
    %v446 = vpop.f32.mrf.mxu0
    %v447 = vadd.f32 0.0, %v446
    %448 = vmatmul.f32.gmra.mxu0 %v241
    %v449 = vpop.f32.mrf.mxu0
    %v450 = vadd.f32 0.0, %v449
    %451 = vmatmul.f32.gmra.mxu0 %v244
    %v452 = vpop.f32.mrf.mxu0
    %v453 = vadd.f32 0.0, %v452
    %454 = vmatmul.f32.gmra.mxu0 %v247
    %v455 = vpop.f32.mrf.mxu0
    %v456 = vadd.f32 0.0, %v455
    %457 = vmatmul.f32.gmra.mxu0 %v250
    %v458 = vpop.f32.mrf.mxu0
    %v459 = vadd.f32 0.0, %v458
    %460 = vmatmul.f32.gmra.mxu0 %v253
    %v461 = vpop.f32.mrf.mxu0
    %v462 = vadd.f32 0.0, %v461
    %463 = vmatmul.f32.gmra.mxu0 %v256
    %v464 = vpop.f32.mrf.mxu0
    %v465 = vadd.f32 0.0, %v464
    %466 = vmatmul.f32.gmra.mxu0 %v259
    %v467 = vpop.f32.mrf.mxu0
    %v468 = vadd.f32 0.0, %v467
    %469 = vmatmul.f32.gmra.mxu0 %v262
    %v470 = vpop.f32.mrf.mxu0
    %v471 = vadd.f32 0.0, %v470
    %472 = vmatmul.f32.gmra.mxu0 %v265
    %v473 = vpop.f32.mrf.mxu0
    %v474 = vadd.f32 0.0, %v473
    %475 = vmatmul.f32.gmra.mxu0 %v268
    %v476 = vpop.f32.mrf.mxu0
    %v477 = vadd.f32 0.0, %v476
    %478 = vmatmul.f32.gmra.mxu0 %v271
    %v479 = vpop.f32.mrf.mxu0
    %v480 = vadd.f32 0.0, %v479
    %481 = vmatmul.f32.gmra.mxu0 %v274
    %v482 = vpop.f32.mrf.mxu0
    %v483 = vadd.f32 0.0, %v482
    %484 = vdwg.mxu0
    %v485 = vmul.f32 %v294, 14.285714
    %v486 = vmul.f32 %v297, 14.285714
    %v487 = vmul.f32 %v300, 14.285714
    %v488 = vmul.f32 %v303, 14.285714
    %v489 = vmul.f32 %v306, 14.285714
    %v490 = vmul.f32 %v309, 14.285714
    %v491 = vmul.f32 %v312, 14.285714
    %v492 = vmul.f32 %v315, 14.285714
    %v493 = vmul.f32 %v318, 14.285714
    %v494 = vmul.f32 %v321, 14.285714
    %v495 = vmul.f32 %v324, 14.285714
    %v496 = vmul.f32 %v327, 14.285714
    %v497 = vmul.f32 %v330, 14.285714
    %v498 = vmul.f32 %v333, 14.285714
    %v499 = vmul.f32 %v336, 14.285714
    %v500 = vmul.f32 %v339, 14.285714
    %v501 = vmul.f32 %v342, 14.285714
    %v502 = vmul.f32 %v345, 14.285714
    %v503 = vmul.f32 %v348, 14.285714
    %v504 = vmul.f32 %v351, 14.285714
    %v505 = vmul.f32 %v354, 14.285714
    %v506 = vmul.f32 %v357, 14.285714
    %v507 = vmul.f32 %v360, 14.285714
    %v508 = vmul.f32 %v363, 14.285714
    %v509 = vmul.f32 %v366, 14.285714
    %v510 = vmul.f32 %v369, 14.285714
    %v511 = vmul.f32 %v372, 14.285714
    %v512 = vmul.f32 %v375, 14.285714
    %v513 = vmul.f32 %v378, 14.285714
    %v514 = vmul.f32 %v381, 14.285714
    %v515 = vmul.f32 %v384, 14.285714
    %v516 = vmul.f32 %v387, 14.285714
    %v517 = vmul.f32 %v390, 14.285714
    %v518 = vmul.f32 %v393, 14.285714
    %v519 = vmul.f32 %v396, 14.285714
    %v520 = vmul.f32 %v399, 14.285714
    %v521 = vmul.f32 %v402, 14.285714
    %v522 = vmul.f32 %v405, 14.285714
    %v523 = vmul.f32 %v408, 14.285714
    %v524 = vmul.f32 %v411, 14.285714
    %v525 = vmul.f32 %v414, 14.285714
    %v526 = vmul.f32 %v417, 14.285714
    %v527 = vmul.f32 %v420, 14.285714
    %v528 = vmul.f32 %v423, 14.285714
    %v529 = vmul.f32 %v426, 14.285714
    %v530 = vmul.f32 %v429, 14.285714
    %v531 = vmul.f32 %v432, 14.285714
    %v532 = vmul.f32 %v435, 14.285714
    %v533 = vmul.f32 %v438, 14.285714
    %v534 = vmul.f32 %v441, 14.285714
    %v535 = vmul.f32 %v444, 14.285714
    %v536 = vmul.f32 %v447, 14.285714
    %v537 = vmul.f32 %v450, 14.285714
    %v538 = vmul.f32 %v453, 14.285714
    %v539 = vmul.f32 %v456, 14.285714
    %v540 = vmul.f32 %v459, 14.285714
    %v541 = vmul.f32 %v462, 14.285714
    %v542 = vmul.f32 %v465, 14.285714
    %v543 = vmul.f32 %v468, 14.285714
    %v544 = vmul.f32 %v471, 14.285714
    %v545 = vmul.f32 %v474, 14.285714
    %v546 = vmul.f32 %v477, 14.285714
    %v547 = vmul.f32 %v480, 14.285714
    %v548 = vmul.f32 %v483, 14.285714
    %vm549 = vcmask 39936
    %v550 = vsel %vm549, %v485, -inf
    %551 = vmax.xlane.f32.xlu0 %v550
    %v552 = vpop.xlane.xlu0 %551
    %v553 = vsel %vm549, %v486, -inf
    %554 = vmax.xlane.f32.xlu0 %v553
    %v555 = vpop.xlane.xlu0 %554
    %v556 = vsel %vm549, %v487, -inf
    %557 = vmax.xlane.f32.xlu0 %v556
    %v558 = vpop.xlane.xlu0 %557
    %v559 = vsel %vm549, %v488, -inf
    %560 = vmax.xlane.f32.xlu0 %v559
    %v561 = vpop.xlane.xlu0 %560
    %v562 = vsel %vm549, %v489, -inf
    %563 = vmax.xlane.f32.xlu0 %v562
    %v564 = vpop.xlane.xlu0 %563
    %v565 = vsel %vm549, %v490, -inf
    %566 = vmax.xlane.f32.xlu0 %v565
    %v567 = vpop.xlane.xlu0 %566
    %v568 = vsel %vm549, %v491, -inf
    %569 = vmax.xlane.f32.xlu0 %v568
    %v570 = vpop.xlane.xlu0 %569
    %v571 = vsel %vm549, %v492, -inf
    %572 = vmax.xlane.f32.xlu0 %v571
    %v573 = vpop.xlane.xlu0 %572
    %v574 = vsel %vm549, %v493, -inf
    %575 = vmax.xlane.f32.xlu0 %v574
    %v576 = vpop.xlane.xlu0 %575
    %v577 = vsel %vm549, %v494, -inf
    %578 = vmax.xlane.f32.xlu0 %v577
    %v579 = vpop.xlane.xlu0 %578
    %v580 = vsel %vm549, %v495, -inf
    %581 = vmax.xlane.f32.xlu0 %v580
    %v582 = vpop.xlane.xlu0 %581
    %v583 = vsel %vm549, %v496, -inf
    %584 = vmax.xlane.f32.xlu0 %v583
    %v585 = vpop.xlane.xlu0 %584
    %v586 = vsel %vm549, %v497, -inf
    %587 = vmax.xlane.f32.xlu0 %v586
    %v588 = vpop.xlane.xlu0 %587
    %v589 = vsel %vm549, %v498, -inf
    %590 = vmax.xlane.f32.xlu0 %v589
    %v591 = vpop.xlane.xlu0 %590
    %v592 = vsel %vm549, %v499, -inf
    %593 = vmax.xlane.f32.xlu0 %v592
    %v594 = vpop.xlane.xlu0 %593
    %v595 = vsel %vm549, %v500, -inf
    %596 = vmax.xlane.f32.xlu0 %v595
    %v597 = vpop.xlane.xlu0 %596
    %v598 = vsel %vm549, %v501, -inf
    %599 = vmax.xlane.f32.xlu0 %v598
    %v600 = vpop.xlane.xlu0 %599
    %v601 = vsel %vm549, %v502, -inf
    %602 = vmax.xlane.f32.xlu0 %v601
    %v603 = vpop.xlane.xlu0 %602
    %v604 = vsel %vm549, %v503, -inf
    %605 = vmax.xlane.f32.xlu0 %v604
    %v606 = vpop.xlane.xlu0 %605
    %v607 = vsel %vm549, %v504, -inf
    %608 = vmax.xlane.f32.xlu0 %v607
    %v609 = vpop.xlane.xlu0 %608
    %v610 = vsel %vm549, %v505, -inf
    %611 = vmax.xlane.f32.xlu0 %v610
    %v612 = vpop.xlane.xlu0 %611
    %v613 = vsel %vm549, %v506, -inf
    %614 = vmax.xlane.f32.xlu0 %v613
    %v615 = vpop.xlane.xlu0 %614
    %v616 = vsel %vm549, %v507, -inf
    %617 = vmax.xlane.f32.xlu0 %v616
    %v618 = vpop.xlane.xlu0 %617
    %v619 = vsel %vm549, %v508, -inf
    %620 = vmax.xlane.f32.xlu0 %v619
    %v621 = vpop.xlane.xlu0 %620
    %v622 = vsel %vm549, %v509, -inf
    %623 = vmax.xlane.f32.xlu0 %v622
    %v624 = vpop.xlane.xlu0 %623
    %v625 = vsel %vm549, %v510, -inf
    %626 = vmax.xlane.f32.xlu0 %v625
    %v627 = vpop.xlane.xlu0 %626
    %v628 = vsel %vm549, %v511, -inf
    %629 = vmax.xlane.f32.xlu0 %v628
    %v630 = vpop.xlane.xlu0 %629
    %v631 = vsel %vm549, %v512, -inf
    %632 = vmax.xlane.f32.xlu0 %v631
    %v633 = vpop.xlane.xlu0 %632
    %v634 = vsel %vm549, %v513, -inf
    %635 = vmax.xlane.f32.xlu0 %v634
    %v636 = vpop.xlane.xlu0 %635
    %v637 = vsel %vm549, %v514, -inf
    %638 = vmax.xlane.f32.xlu0 %v637
    %v639 = vpop.xlane.xlu0 %638
    %v640 = vsel %vm549, %v515, -inf
    %641 = vmax.xlane.f32.xlu0 %v640
    %v642 = vpop.xlane.xlu0 %641
    %v643 = vsel %vm549, %v516, -inf
    %644 = vmax.xlane.f32.xlu0 %v643
    %v645 = vpop.xlane.xlu0 %644
    %v646 = vsel %vm549, %v517, -inf
    %647 = vmax.xlane.f32.xlu0 %v646
    %v648 = vpop.xlane.xlu0 %647
    %v649 = vsel %vm549, %v518, -inf
    %650 = vmax.xlane.f32.xlu0 %v649
    %v651 = vpop.xlane.xlu0 %650
    %v652 = vsel %vm549, %v519, -inf
    %653 = vmax.xlane.f32.xlu0 %v652
    %v654 = vpop.xlane.xlu0 %653
    %v655 = vsel %vm549, %v520, -inf
    %656 = vmax.xlane.f32.xlu0 %v655
    %v657 = vpop.xlane.xlu0 %656
    %v658 = vsel %vm549, %v521, -inf
    %659 = vmax.xlane.f32.xlu0 %v658
    %v660 = vpop.xlane.xlu0 %659
    %v661 = vsel %vm549, %v522, -inf
    %662 = vmax.xlane.f32.xlu0 %v661
    %v663 = vpop.xlane.xlu0 %662
    %v664 = vsel %vm549, %v523, -inf
    %665 = vmax.xlane.f32.xlu0 %v664
    %v666 = vpop.xlane.xlu0 %665
    %v667 = vsel %vm549, %v524, -inf
    %668 = vmax.xlane.f32.xlu0 %v667
    %v669 = vpop.xlane.xlu0 %668
    %v670 = vsel %vm549, %v525, -inf
    %671 = vmax.xlane.f32.xlu0 %v670
    %v672 = vpop.xlane.xlu0 %671
    %v673 = vsel %vm549, %v526, -inf
    %674 = vmax.xlane.f32.xlu0 %v673
    %v675 = vpop.xlane.xlu0 %674
    %v676 = vsel %vm549, %v527, -inf
    %677 = vmax.xlane.f32.xlu0 %v676
    %v678 = vpop.xlane.xlu0 %677
    %v679 = vsel %vm549, %v528, -inf
    %680 = vmax.xlane.f32.xlu0 %v679
    %v681 = vpop.xlane.xlu0 %680
    %v682 = vsel %vm549, %v529, -inf
    %683 = vmax.xlane.f32.xlu0 %v682
    %v684 = vpop.xlane.xlu0 %683
    %v685 = vsel %vm549, %v530, -inf
    %686 = vmax.xlane.f32.xlu0 %v685
    %v687 = vpop.xlane.xlu0 %686
    %v688 = vsel %vm549, %v531, -inf
    %689 = vmax.xlane.f32.xlu0 %v688
    %v690 = vpop.xlane.xlu0 %689
    %v691 = vsel %vm549, %v532, -inf
    %692 = vmax.xlane.f32.xlu0 %v691
    %v693 = vpop.xlane.xlu0 %692
    %v694 = vsel %vm549, %v533, -inf
    %695 = vmax.xlane.f32.xlu0 %v694
    %v696 = vpop.xlane.xlu0 %695
    %v697 = vsel %vm549, %v534, -inf
    %698 = vmax.xlane.f32.xlu0 %v697
    %v699 = vpop.xlane.xlu0 %698
    %v700 = vsel %vm549, %v535, -inf
    %701 = vmax.xlane.f32.xlu0 %v700
    %v702 = vpop.xlane.xlu0 %701
    %v703 = vsel %vm549, %v536, -inf
    %704 = vmax.xlane.f32.xlu0 %v703
    %v705 = vpop.xlane.xlu0 %704
    %v706 = vsel %vm549, %v537, -inf
    %707 = vmax.xlane.f32.xlu0 %v706
    %v708 = vpop.xlane.xlu0 %707
    %v709 = vsel %vm549, %v538, -inf
    %710 = vmax.xlane.f32.xlu0 %v709
    %v711 = vpop.xlane.xlu0 %710
    %v712 = vsel %vm549, %v539, -inf
    %713 = vmax.xlane.f32.xlu0 %v712
    %v714 = vpop.xlane.xlu0 %713
    %v715 = vsel %vm549, %v540, -inf
    %716 = vmax.xlane.f32.xlu0 %v715
    %v717 = vpop.xlane.xlu0 %716
    %v718 = vsel %vm549, %v541, -inf
    %719 = vmax.xlane.f32.xlu0 %v718
    %v720 = vpop.xlane.xlu0 %719
    %v721 = vsel %vm549, %v542, -inf
    %722 = vmax.xlane.f32.xlu0 %v721
    %v723 = vpop.xlane.xlu0 %722
    %v724 = vsel %vm549, %v543, -inf
    %725 = vmax.xlane.f32.xlu0 %v724
    %v726 = vpop.xlane.xlu0 %725
    %v727 = vsel %vm549, %v544, -inf
    %728 = vmax.xlane.f32.xlu0 %v727
    %v729 = vpop.xlane.xlu0 %728
    %v730 = vsel %vm549, %v545, -inf
    %731 = vmax.xlane.f32.xlu0 %v730
    %v732 = vpop.xlane.xlu0 %731
    %v733 = vsel %vm549, %v546, -inf
    %734 = vmax.xlane.f32.xlu0 %v733
    %v735 = vpop.xlane.xlu0 %734
    %v736 = vsel %vm549, %v547, -inf
    %737 = vmax.xlane.f32.xlu0 %v736
    %v738 = vpop.xlane.xlu0 %737
    %v739 = vsel %vm549, %v548, -inf
    %740 = vmax.xlane.f32.xlu0 %v739
    %v741 = vpop.xlane.xlu0 %740
    %v742 = vsub.f32 %v485, %v552
    %v743 = vsub.f32 %v486, %v555
    %v744 = vsub.f32 %v487, %v558
    %v745 = vsub.f32 %v488, %v561
    %v746 = vsub.f32 %v489, %v564
    %v747 = vsub.f32 %v490, %v567
    %v748 = vsub.f32 %v491, %v570
    %v749 = vsub.f32 %v492, %v573
    %v750 = vsub.f32 %v493, %v576
    %v751 = vsub.f32 %v494, %v579
    %v752 = vsub.f32 %v495, %v582
    %v753 = vsub.f32 %v496, %v585
    %v754 = vsub.f32 %v497, %v588
    %v755 = vsub.f32 %v498, %v591
    %v756 = vsub.f32 %v499, %v594
    %v757 = vsub.f32 %v500, %v597
    %v758 = vsub.f32 %v501, %v600
    %v759 = vsub.f32 %v502, %v603
    %v760 = vsub.f32 %v503, %v606
    %v761 = vsub.f32 %v504, %v609
    %v762 = vsub.f32 %v505, %v612
    %v763 = vsub.f32 %v506, %v615
    %v764 = vsub.f32 %v507, %v618
    %v765 = vsub.f32 %v508, %v621
    %v766 = vsub.f32 %v509, %v624
    %v767 = vsub.f32 %v510, %v627
    %v768 = vsub.f32 %v511, %v630
    %v769 = vsub.f32 %v512, %v633
    %v770 = vsub.f32 %v513, %v636
    %v771 = vsub.f32 %v514, %v639
    %v772 = vsub.f32 %v515, %v642
    %v773 = vsub.f32 %v516, %v645
    %v774 = vsub.f32 %v517, %v648
    %v775 = vsub.f32 %v518, %v651
    %v776 = vsub.f32 %v519, %v654
    %v777 = vsub.f32 %v520, %v657
    %v778 = vsub.f32 %v521, %v660
    %v779 = vsub.f32 %v522, %v663
    %v780 = vsub.f32 %v523, %v666
    %v781 = vsub.f32 %v524, %v669
    %v782 = vsub.f32 %v525, %v672
    %v783 = vsub.f32 %v526, %v675
    %v784 = vsub.f32 %v527, %v678
    %v785 = vsub.f32 %v528, %v681
    %v786 = vsub.f32 %v529, %v684
    %v787 = vsub.f32 %v530, %v687
    %v788 = vsub.f32 %v531, %v690
    %v789 = vsub.f32 %v532, %v693
    %v790 = vsub.f32 %v533, %v696
    %v791 = vsub.f32 %v534, %v699
    %v792 = vsub.f32 %v535, %v702
    %v793 = vsub.f32 %v536, %v705
    %v794 = vsub.f32 %v537, %v708
    %v795 = vsub.f32 %v538, %v711
    %v796 = vsub.f32 %v539, %v714
    %v797 = vsub.f32 %v540, %v717
    %v798 = vsub.f32 %v541, %v720
    %v799 = vsub.f32 %v542, %v723
    %v800 = vsub.f32 %v543, %v726
    %v801 = vsub.f32 %v544, %v729
    %v802 = vsub.f32 %v545, %v732
    %v803 = vsub.f32 %v546, %v735
    %v804 = vsub.f32 %v547, %v738
    %v805 = vsub.f32 %v548, %v741
    %v806 = vmul.f32 %v294, %v294
    %v807 = vmul.f32 %v297, %v297
    %v808 = vmul.f32 %v300, %v300
    %v809 = vmul.f32 %v303, %v303
    %v810 = vmul.f32 %v306, %v306
    %v811 = vmul.f32 %v309, %v309
    %v812 = vmul.f32 %v312, %v312
    %v813 = vmul.f32 %v315, %v315
    %v814 = vmul.f32 %v318, %v318
    %v815 = vmul.f32 %v321, %v321
    %v816 = vmul.f32 %v324, %v324
    %v817 = vmul.f32 %v327, %v327
    %v818 = vmul.f32 %v330, %v330
    %v819 = vmul.f32 %v333, %v333
    %v820 = vmul.f32 %v336, %v336
    %v821 = vmul.f32 %v339, %v339
    %v822 = vmul.f32 %v342, %v342
    %v823 = vmul.f32 %v345, %v345
    %v824 = vmul.f32 %v348, %v348
    %v825 = vmul.f32 %v351, %v351
    %v826 = vmul.f32 %v354, %v354
    %v827 = vmul.f32 %v357, %v357
    %v828 = vmul.f32 %v360, %v360
    %v829 = vmul.f32 %v363, %v363
    %v830 = vmul.f32 %v366, %v366
    %v831 = vmul.f32 %v369, %v369
    %v832 = vmul.f32 %v372, %v372
    %v833 = vmul.f32 %v375, %v375
    %v834 = vmul.f32 %v378, %v378
    %v835 = vmul.f32 %v381, %v381
    %v836 = vmul.f32 %v384, %v384
    %v837 = vmul.f32 %v387, %v387
    %v838 = vmul.f32 %v390, %v390
    %v839 = vmul.f32 %v393, %v393
    %v840 = vmul.f32 %v396, %v396
    %v841 = vmul.f32 %v399, %v399
    %v842 = vmul.f32 %v402, %v402
    %v843 = vmul.f32 %v405, %v405
    %v844 = vmul.f32 %v408, %v408
    %v845 = vmul.f32 %v411, %v411
    %v846 = vmul.f32 %v414, %v414
    %v847 = vmul.f32 %v417, %v417
    %v848 = vmul.f32 %v420, %v420
    %v849 = vmul.f32 %v423, %v423
    %v850 = vmul.f32 %v426, %v426
    %v851 = vmul.f32 %v429, %v429
    %v852 = vmul.f32 %v432, %v432
    %v853 = vmul.f32 %v435, %v435
    %v854 = vmul.f32 %v438, %v438
    %v855 = vmul.f32 %v441, %v441
    %v856 = vmul.f32 %v444, %v444
    %v857 = vmul.f32 %v447, %v447
    %v858 = vmul.f32 %v450, %v450
    %v859 = vmul.f32 %v453, %v453
    %v860 = vmul.f32 %v456, %v456
    %v861 = vmul.f32 %v459, %v459
    %v862 = vmul.f32 %v462, %v462
    %v863 = vmul.f32 %v465, %v465
    %v864 = vmul.f32 %v468, %v468
    %v865 = vmul.f32 %v471, %v471
    %v866 = vmul.f32 %v474, %v474
    %v867 = vmul.f32 %v477, %v477
    %v868 = vmul.f32 %v480, %v480
    %v869 = vmul.f32 %v483, %v483
    %v870 = vsub.f32 1.0, %v806
    %v871 = vsub.f32 1.0, %v807
    %v872 = vsub.f32 1.0, %v808
    %v873 = vsub.f32 1.0, %v809
    %v874 = vsub.f32 1.0, %v810
    %v875 = vsub.f32 1.0, %v811
    %v876 = vsub.f32 1.0, %v812
    %v877 = vsub.f32 1.0, %v813
    %v878 = vsub.f32 1.0, %v814
    %v879 = vsub.f32 1.0, %v815
    %v880 = vsub.f32 1.0, %v816
    %v881 = vsub.f32 1.0, %v817
    %v882 = vsub.f32 1.0, %v818
    %v883 = vsub.f32 1.0, %v819
    %v884 = vsub.f32 1.0, %v820
    %v885 = vsub.f32 1.0, %v821
    %v886 = vsub.f32 1.0, %v822
    %v887 = vsub.f32 1.0, %v823
    %v888 = vsub.f32 1.0, %v824
    %v889 = vsub.f32 1.0, %v825
    %v890 = vsub.f32 1.0, %v826
    %v891 = vsub.f32 1.0, %v827
    %v892 = vsub.f32 1.0, %v828
    %v893 = vsub.f32 1.0, %v829
    %v894 = vsub.f32 1.0, %v830
    %v895 = vsub.f32 1.0, %v831
    %v896 = vsub.f32 1.0, %v832
    %v897 = vsub.f32 1.0, %v833
    %v898 = vsub.f32 1.0, %v834
    %v899 = vsub.f32 1.0, %v835
    %v900 = vsub.f32 1.0, %v836
    %v901 = vsub.f32 1.0, %v837
    %v902 = vsub.f32 1.0, %v838
    %v903 = vsub.f32 1.0, %v839
    %v904 = vsub.f32 1.0, %v840
    %v905 = vsub.f32 1.0, %v841
    %v906 = vsub.f32 1.0, %v842
    %v907 = vsub.f32 1.0, %v843
    %v908 = vsub.f32 1.0, %v844
    %v909 = vsub.f32 1.0, %v845
    %v910 = vsub.f32 1.0, %v846
    %v911 = vsub.f32 1.0, %v847
    %v912 = vsub.f32 1.0, %v848
    %v913 = vsub.f32 1.0, %v849
    %v914 = vsub.f32 1.0, %v850
    %v915 = vsub.f32 1.0, %v851
    %v916 = vsub.f32 1.0, %v852
    %v917 = vsub.f32 1.0, %v853
    %v918 = vsub.f32 1.0, %v854
    %v919 = vsub.f32 1.0, %v855
    %v920 = vsub.f32 1.0, %v856
    %v921 = vsub.f32 1.0, %v857
    %v922 = vsub.f32 1.0, %v858
    %v923 = vsub.f32 1.0, %v859
    %v924 = vsub.f32 1.0, %v860
    %v925 = vsub.f32 1.0, %v861
    %v926 = vsub.f32 1.0, %v862
    %v927 = vsub.f32 1.0, %v863
    %v928 = vsub.f32 1.0, %v864
    %v929 = vsub.f32 1.0, %v865
    %v930 = vsub.f32 1.0, %v866
    %v931 = vsub.f32 1.0, %v867
    %v932 = vsub.f32 1.0, %v868
    %v933 = vsub.f32 1.0, %v869
    %v934 = vmax.f32 %v870, 0.0001
    %v935 = vmax.f32 %v871, 0.0001
    %v936 = vmax.f32 %v872, 0.0001
    %v937 = vmax.f32 %v873, 0.0001
    %v938 = vmax.f32 %v874, 0.0001
    %v939 = vmax.f32 %v875, 0.0001
    %v940 = vmax.f32 %v876, 0.0001
    %v941 = vmax.f32 %v877, 0.0001
    %v942 = vmax.f32 %v878, 0.0001
    %v943 = vmax.f32 %v879, 0.0001
    %v944 = vmax.f32 %v880, 0.0001
    %v945 = vmax.f32 %v881, 0.0001
    %v946 = vmax.f32 %v882, 0.0001
    %v947 = vmax.f32 %v883, 0.0001
    %v948 = vmax.f32 %v884, 0.0001
    %v949 = vmax.f32 %v885, 0.0001
    %v950 = vmax.f32 %v886, 0.0001
    %v951 = vmax.f32 %v887, 0.0001
    %v952 = vmax.f32 %v888, 0.0001
    %v953 = vmax.f32 %v889, 0.0001
    %v954 = vmax.f32 %v890, 0.0001
    %v955 = vmax.f32 %v891, 0.0001
    %v956 = vmax.f32 %v892, 0.0001
    %v957 = vmax.f32 %v893, 0.0001
    %v958 = vmax.f32 %v894, 0.0001
    %v959 = vmax.f32 %v895, 0.0001
    %v960 = vmax.f32 %v896, 0.0001
    %v961 = vmax.f32 %v897, 0.0001
    %v962 = vmax.f32 %v898, 0.0001
    %v963 = vmax.f32 %v899, 0.0001
    %v964 = vmax.f32 %v900, 0.0001
    %v965 = vmax.f32 %v901, 0.0001
    %v966 = vmax.f32 %v902, 0.0001
    %v967 = vmax.f32 %v903, 0.0001
    %v968 = vmax.f32 %v904, 0.0001
    %v969 = vmax.f32 %v905, 0.0001
    %v970 = vmax.f32 %v906, 0.0001
    %v971 = vmax.f32 %v907, 0.0001
    %v972 = vmax.f32 %v908, 0.0001
    %v973 = vmax.f32 %v909, 0.0001
    %v974 = vmax.f32 %v910, 0.0001
    %v975 = vmax.f32 %v911, 0.0001
    %v976 = vmax.f32 %v912, 0.0001
    %v977 = vmax.f32 %v913, 0.0001
    %v978 = vmax.f32 %v914, 0.0001
    %v979 = vmax.f32 %v915, 0.0001
    %v980 = vmax.f32 %v916, 0.0001
    %v981 = vmax.f32 %v917, 0.0001
    %v982 = vmax.f32 %v918, 0.0001
    %v983 = vmax.f32 %v919, 0.0001
    %v984 = vmax.f32 %v920, 0.0001
    %v985 = vmax.f32 %v921, 0.0001
    %v986 = vmax.f32 %v922, 0.0001
    %v987 = vmax.f32 %v923, 0.0001
    %v988 = vmax.f32 %v924, 0.0001
    %v989 = vmax.f32 %v925, 0.0001
    %v990 = vmax.f32 %v926, 0.0001
    %v991 = vmax.f32 %v927, 0.0001
    %v992 = vmax.f32 %v928, 0.0001
    %v993 = vmax.f32 %v929, 0.0001
    %v994 = vmax.f32 %v930, 0.0001
    %v995 = vmax.f32 %v931, 0.0001
    %v996 = vmax.f32 %v932, 0.0001
    %v997 = vmax.f32 %v933, 0.0001
    %v998 = vmin.f32 %v934, 1.0
    %v999 = vmin.f32 %v935, 1.0
    %v1000 = vmin.f32 %v936, 1.0
    %v1001 = vmin.f32 %v937, 1.0
    %v1002 = vmin.f32 %v938, 1.0
    %v1003 = vmin.f32 %v939, 1.0
    %v1004 = vmin.f32 %v940, 1.0
    %v1005 = vmin.f32 %v941, 1.0
    %v1006 = vmin.f32 %v942, 1.0
    %v1007 = vmin.f32 %v943, 1.0
    %v1008 = vmin.f32 %v944, 1.0
    %v1009 = vmin.f32 %v945, 1.0
    %v1010 = vmin.f32 %v946, 1.0
    %v1011 = vmin.f32 %v947, 1.0
    %v1012 = vmin.f32 %v948, 1.0
    %v1013 = vmin.f32 %v949, 1.0
    %v1014 = vmin.f32 %v950, 1.0
    %v1015 = vmin.f32 %v951, 1.0
    %v1016 = vmin.f32 %v952, 1.0
    %v1017 = vmin.f32 %v953, 1.0
    %v1018 = vmin.f32 %v954, 1.0
    %v1019 = vmin.f32 %v955, 1.0
    %v1020 = vmin.f32 %v956, 1.0
    %v1021 = vmin.f32 %v957, 1.0
    %v1022 = vmin.f32 %v958, 1.0
    %v1023 = vmin.f32 %v959, 1.0
    %v1024 = vmin.f32 %v960, 1.0
    %v1025 = vmin.f32 %v961, 1.0
    %v1026 = vmin.f32 %v962, 1.0
    %v1027 = vmin.f32 %v963, 1.0
    %v1028 = vmin.f32 %v964, 1.0
    %v1029 = vmin.f32 %v965, 1.0
    %v1030 = vmin.f32 %v966, 1.0
    %v1031 = vmin.f32 %v967, 1.0
    %v1032 = vmin.f32 %v968, 1.0
    %v1033 = vmin.f32 %v969, 1.0
    %v1034 = vmin.f32 %v970, 1.0
    %v1035 = vmin.f32 %v971, 1.0
    %v1036 = vmin.f32 %v972, 1.0
    %v1037 = vmin.f32 %v973, 1.0
    %v1038 = vmin.f32 %v974, 1.0
    %v1039 = vmin.f32 %v975, 1.0
    %v1040 = vmin.f32 %v976, 1.0
    %v1041 = vmin.f32 %v977, 1.0
    %v1042 = vmin.f32 %v978, 1.0
    %v1043 = vmin.f32 %v979, 1.0
    %v1044 = vmin.f32 %v980, 1.0
    %v1045 = vmin.f32 %v981, 1.0
    %v1046 = vmin.f32 %v982, 1.0
    %v1047 = vmin.f32 %v983, 1.0
    %v1048 = vmin.f32 %v984, 1.0
    %v1049 = vmin.f32 %v985, 1.0
    %v1050 = vmin.f32 %v986, 1.0
    %v1051 = vmin.f32 %v987, 1.0
    %v1052 = vmin.f32 %v988, 1.0
    %v1053 = vmin.f32 %v989, 1.0
    %v1054 = vmin.f32 %v990, 1.0
    %v1055 = vmin.f32 %v991, 1.0
    %v1056 = vmin.f32 %v992, 1.0
    %v1057 = vmin.f32 %v993, 1.0
    %v1058 = vmin.f32 %v994, 1.0
    %v1059 = vmin.f32 %v995, 1.0
    %v1060 = vmin.f32 %v996, 1.0
    %v1061 = vmin.f32 %v997, 1.0
    %v1062 = vrsqrt.pop %v998
    %v1063 = vmul.f32 %v1062, %v998
    %v1064 = vmul.f32 %v1063, %v1062
    %v1065 = vmul.f32 0.5, %v1064
    %v1066 = vsub.f32 1.5, %v1065
    %v1067 = vmul.f32 %v1062, %v1066
    %v1068 = vmul.f32 %v998, %v1067
    %vm1069 = vcmp.eq.f32.partialorder %v998, inf
    %v1070 = vsel %vm1069, %v998, %v1068
    %vm1071 = vcmp.eq.f32.partialorder %v998, 0.0
    %v1072 = vand.u32 %v998, 2147483648
    %v1073 = vsel %vm1071, %v1072, %v1070
    %v1074 = vrsqrt.pop %v999
    %v1075 = vmul.f32 %v1074, %v999
    %v1076 = vmul.f32 %v1075, %v1074
    %v1077 = vmul.f32 0.5, %v1076
    %v1078 = vsub.f32 1.5, %v1077
    %v1079 = vmul.f32 %v1074, %v1078
    %v1080 = vmul.f32 %v999, %v1079
    %vm1081 = vcmp.eq.f32.partialorder %v999, inf
    %v1082 = vsel %vm1081, %v999, %v1080
    %vm1083 = vcmp.eq.f32.partialorder %v999, 0.0
    %v1084 = vand.u32 %v999, 2147483648
    %v1085 = vsel %vm1083, %v1084, %v1082
    %v1086 = vrsqrt.pop %v1000
    %v1087 = vmul.f32 %v1086, %v1000
    %v1088 = vmul.f32 %v1087, %v1086
    %v1089 = vmul.f32 0.5, %v1088
    %v1090 = vsub.f32 1.5, %v1089
    %v1091 = vmul.f32 %v1086, %v1090
    %v1092 = vmul.f32 %v1000, %v1091
    %vm1093 = vcmp.eq.f32.partialorder %v1000, inf
    %v1094 = vsel %vm1093, %v1000, %v1092
    %vm1095 = vcmp.eq.f32.partialorder %v1000, 0.0
    %v1096 = vand.u32 %v1000, 2147483648
    %v1097 = vsel %vm1095, %v1096, %v1094
    %v1098 = vrsqrt.pop %v1001
    %v1099 = vmul.f32 %v1098, %v1001
    %v1100 = vmul.f32 %v1099, %v1098
    %v1101 = vmul.f32 0.5, %v1100
    %v1102 = vsub.f32 1.5, %v1101
    %v1103 = vmul.f32 %v1098, %v1102
    %v1104 = vmul.f32 %v1001, %v1103
    %vm1105 = vcmp.eq.f32.partialorder %v1001, inf
    %v1106 = vsel %vm1105, %v1001, %v1104
    %vm1107 = vcmp.eq.f32.partialorder %v1001, 0.0
    %v1108 = vand.u32 %v1001, 2147483648
    %v1109 = vsel %vm1107, %v1108, %v1106
    %v1110 = vrsqrt.pop %v1002
    %v1111 = vmul.f32 %v1110, %v1002
    %v1112 = vmul.f32 %v1111, %v1110
    %v1113 = vmul.f32 0.5, %v1112
    %v1114 = vsub.f32 1.5, %v1113
    %v1115 = vmul.f32 %v1110, %v1114
    %v1116 = vmul.f32 %v1002, %v1115
    %vm1117 = vcmp.eq.f32.partialorder %v1002, inf
    %v1118 = vsel %vm1117, %v1002, %v1116
    %vm1119 = vcmp.eq.f32.partialorder %v1002, 0.0
    %v1120 = vand.u32 %v1002, 2147483648
    %v1121 = vsel %vm1119, %v1120, %v1118
    %v1122 = vrsqrt.pop %v1003
    %v1123 = vmul.f32 %v1122, %v1003
    %v1124 = vmul.f32 %v1123, %v1122
    %v1125 = vmul.f32 0.5, %v1124
    %v1126 = vsub.f32 1.5, %v1125
    %v1127 = vmul.f32 %v1122, %v1126
    %v1128 = vmul.f32 %v1003, %v1127
    %vm1129 = vcmp.eq.f32.partialorder %v1003, inf
    %v1130 = vsel %vm1129, %v1003, %v1128
    %vm1131 = vcmp.eq.f32.partialorder %v1003, 0.0
    %v1132 = vand.u32 %v1003, 2147483648
    %v1133 = vsel %vm1131, %v1132, %v1130
    %v1134 = vrsqrt.pop %v1004
    %v1135 = vmul.f32 %v1134, %v1004
    %v1136 = vmul.f32 %v1135, %v1134
    %v1137 = vmul.f32 0.5, %v1136
    %v1138 = vsub.f32 1.5, %v1137
    %v1139 = vmul.f32 %v1134, %v1138
    %v1140 = vmul.f32 %v1004, %v1139
    %vm1141 = vcmp.eq.f32.partialorder %v1004, inf
    %v1142 = vsel %vm1141, %v1004, %v1140
    %vm1143 = vcmp.eq.f32.partialorder %v1004, 0.0
    %v1144 = vand.u32 %v1004, 2147483648
    %v1145 = vsel %vm1143, %v1144, %v1142
    %v1146 = vrsqrt.pop %v1005
    %v1147 = vmul.f32 %v1146, %v1005
    %v1148 = vmul.f32 %v1147, %v1146
    %v1149 = vmul.f32 0.5, %v1148
    %v1150 = vsub.f32 1.5, %v1149
    %v1151 = vmul.f32 %v1146, %v1150
    %v1152 = vmul.f32 %v1005, %v1151
    %vm1153 = vcmp.eq.f32.partialorder %v1005, inf
    %v1154 = vsel %vm1153, %v1005, %v1152
    %vm1155 = vcmp.eq.f32.partialorder %v1005, 0.0
    %v1156 = vand.u32 %v1005, 2147483648
    %v1157 = vsel %vm1155, %v1156, %v1154
    %v1158 = vrsqrt.pop %v1006
    %v1159 = vmul.f32 %v1158, %v1006
    %v1160 = vmul.f32 %v1159, %v1158
    %v1161 = vmul.f32 0.5, %v1160
    %v1162 = vsub.f32 1.5, %v1161
    %v1163 = vmul.f32 %v1158, %v1162
    %v1164 = vmul.f32 %v1006, %v1163
    %vm1165 = vcmp.eq.f32.partialorder %v1006, inf
    %v1166 = vsel %vm1165, %v1006, %v1164
    %vm1167 = vcmp.eq.f32.partialorder %v1006, 0.0
    %v1168 = vand.u32 %v1006, 2147483648
    %v1169 = vsel %vm1167, %v1168, %v1166
    %v1170 = vrsqrt.pop %v1007
    %v1171 = vmul.f32 %v1170, %v1007
    %v1172 = vmul.f32 %v1171, %v1170
    %v1173 = vmul.f32 0.5, %v1172
    %v1174 = vsub.f32 1.5, %v1173
    %v1175 = vmul.f32 %v1170, %v1174
    %v1176 = vmul.f32 %v1007, %v1175
    %vm1177 = vcmp.eq.f32.partialorder %v1007, inf
    %v1178 = vsel %vm1177, %v1007, %v1176
    %vm1179 = vcmp.eq.f32.partialorder %v1007, 0.0
    %v1180 = vand.u32 %v1007, 2147483648
    %v1181 = vsel %vm1179, %v1180, %v1178
    %v1182 = vrsqrt.pop %v1008
    %v1183 = vmul.f32 %v1182, %v1008
    %v1184 = vmul.f32 %v1183, %v1182
    %v1185 = vmul.f32 0.5, %v1184
    %v1186 = vsub.f32 1.5, %v1185
    %v1187 = vmul.f32 %v1182, %v1186
    %v1188 = vmul.f32 %v1008, %v1187
    %vm1189 = vcmp.eq.f32.partialorder %v1008, inf
    %v1190 = vsel %vm1189, %v1008, %v1188
    %vm1191 = vcmp.eq.f32.partialorder %v1008, 0.0
    %v1192 = vand.u32 %v1008, 2147483648
    %v1193 = vsel %vm1191, %v1192, %v1190
    %v1194 = vrsqrt.pop %v1009
    %v1195 = vmul.f32 %v1194, %v1009
    %v1196 = vmul.f32 %v1195, %v1194
    %v1197 = vmul.f32 0.5, %v1196
    %v1198 = vsub.f32 1.5, %v1197
    %v1199 = vmul.f32 %v1194, %v1198
    %v1200 = vmul.f32 %v1009, %v1199
    %vm1201 = vcmp.eq.f32.partialorder %v1009, inf
    %v1202 = vsel %vm1201, %v1009, %v1200
    %vm1203 = vcmp.eq.f32.partialorder %v1009, 0.0
    %v1204 = vand.u32 %v1009, 2147483648
    %v1205 = vsel %vm1203, %v1204, %v1202
    %v1206 = vrsqrt.pop %v1010
    %v1207 = vmul.f32 %v1206, %v1010
    %v1208 = vmul.f32 %v1207, %v1206
    %v1209 = vmul.f32 0.5, %v1208
    %v1210 = vsub.f32 1.5, %v1209
    %v1211 = vmul.f32 %v1206, %v1210
    %v1212 = vmul.f32 %v1010, %v1211
    %vm1213 = vcmp.eq.f32.partialorder %v1010, inf
    %v1214 = vsel %vm1213, %v1010, %v1212
    %vm1215 = vcmp.eq.f32.partialorder %v1010, 0.0
    %v1216 = vand.u32 %v1010, 2147483648
    %v1217 = vsel %vm1215, %v1216, %v1214
    %v1218 = vrsqrt.pop %v1011
    %v1219 = vmul.f32 %v1218, %v1011
    %v1220 = vmul.f32 %v1219, %v1218
    %v1221 = vmul.f32 0.5, %v1220
    %v1222 = vsub.f32 1.5, %v1221
    %v1223 = vmul.f32 %v1218, %v1222
    %v1224 = vmul.f32 %v1011, %v1223
    %vm1225 = vcmp.eq.f32.partialorder %v1011, inf
    %v1226 = vsel %vm1225, %v1011, %v1224
    %vm1227 = vcmp.eq.f32.partialorder %v1011, 0.0
    %v1228 = vand.u32 %v1011, 2147483648
    %v1229 = vsel %vm1227, %v1228, %v1226
    %v1230 = vrsqrt.pop %v1012
    %v1231 = vmul.f32 %v1230, %v1012
    %v1232 = vmul.f32 %v1231, %v1230
    %v1233 = vmul.f32 0.5, %v1232
    %v1234 = vsub.f32 1.5, %v1233
    %v1235 = vmul.f32 %v1230, %v1234
    %v1236 = vmul.f32 %v1012, %v1235
    %vm1237 = vcmp.eq.f32.partialorder %v1012, inf
    %v1238 = vsel %vm1237, %v1012, %v1236
    %vm1239 = vcmp.eq.f32.partialorder %v1012, 0.0
    %v1240 = vand.u32 %v1012, 2147483648
    %v1241 = vsel %vm1239, %v1240, %v1238
    %v1242 = vrsqrt.pop %v1013
    %v1243 = vmul.f32 %v1242, %v1013
    %v1244 = vmul.f32 %v1243, %v1242
    %v1245 = vmul.f32 0.5, %v1244
    %v1246 = vsub.f32 1.5, %v1245
    %v1247 = vmul.f32 %v1242, %v1246
    %v1248 = vmul.f32 %v1013, %v1247
    %vm1249 = vcmp.eq.f32.partialorder %v1013, inf
    %v1250 = vsel %vm1249, %v1013, %v1248
    %vm1251 = vcmp.eq.f32.partialorder %v1013, 0.0
    %v1252 = vand.u32 %v1013, 2147483648
    %v1253 = vsel %vm1251, %v1252, %v1250
    %v1254 = vrsqrt.pop %v1014
    %v1255 = vmul.f32 %v1254, %v1014
    %v1256 = vmul.f32 %v1255, %v1254
    %v1257 = vmul.f32 0.5, %v1256
    %v1258 = vsub.f32 1.5, %v1257
    %v1259 = vmul.f32 %v1254, %v1258
    %v1260 = vmul.f32 %v1014, %v1259
    %vm1261 = vcmp.eq.f32.partialorder %v1014, inf
    %v1262 = vsel %vm1261, %v1014, %v1260
    %vm1263 = vcmp.eq.f32.partialorder %v1014, 0.0
    %v1264 = vand.u32 %v1014, 2147483648
    %v1265 = vsel %vm1263, %v1264, %v1262
    %v1266 = vrsqrt.pop %v1015
    %v1267 = vmul.f32 %v1266, %v1015
    %v1268 = vmul.f32 %v1267, %v1266
    %v1269 = vmul.f32 0.5, %v1268
    %v1270 = vsub.f32 1.5, %v1269
    %v1271 = vmul.f32 %v1266, %v1270
    %v1272 = vmul.f32 %v1015, %v1271
    %vm1273 = vcmp.eq.f32.partialorder %v1015, inf
    %v1274 = vsel %vm1273, %v1015, %v1272
    %vm1275 = vcmp.eq.f32.partialorder %v1015, 0.0
    %v1276 = vand.u32 %v1015, 2147483648
    %v1277 = vsel %vm1275, %v1276, %v1274
    %v1278 = vrsqrt.pop %v1016
    %v1279 = vmul.f32 %v1278, %v1016
    %v1280 = vmul.f32 %v1279, %v1278
    %v1281 = vmul.f32 0.5, %v1280
    %v1282 = vsub.f32 1.5, %v1281
    %v1283 = vmul.f32 %v1278, %v1282
    %v1284 = vmul.f32 %v1016, %v1283
    %vm1285 = vcmp.eq.f32.partialorder %v1016, inf
    %v1286 = vsel %vm1285, %v1016, %v1284
    %vm1287 = vcmp.eq.f32.partialorder %v1016, 0.0
    %v1288 = vand.u32 %v1016, 2147483648
    %v1289 = vsel %vm1287, %v1288, %v1286
    %v1290 = vrsqrt.pop %v1017
    %v1291 = vmul.f32 %v1290, %v1017
    %v1292 = vmul.f32 %v1291, %v1290
    %v1293 = vmul.f32 0.5, %v1292
    %v1294 = vsub.f32 1.5, %v1293
    %v1295 = vmul.f32 %v1290, %v1294
    %v1296 = vmul.f32 %v1017, %v1295
    %vm1297 = vcmp.eq.f32.partialorder %v1017, inf
    %v1298 = vsel %vm1297, %v1017, %v1296
    %vm1299 = vcmp.eq.f32.partialorder %v1017, 0.0
    %v1300 = vand.u32 %v1017, 2147483648
    %v1301 = vsel %vm1299, %v1300, %v1298
    %v1302 = vrsqrt.pop %v1018
    %v1303 = vmul.f32 %v1302, %v1018
    %v1304 = vmul.f32 %v1303, %v1302
    %v1305 = vmul.f32 0.5, %v1304
    %v1306 = vsub.f32 1.5, %v1305
    %v1307 = vmul.f32 %v1302, %v1306
    %v1308 = vmul.f32 %v1018, %v1307
    %vm1309 = vcmp.eq.f32.partialorder %v1018, inf
    %v1310 = vsel %vm1309, %v1018, %v1308
    %vm1311 = vcmp.eq.f32.partialorder %v1018, 0.0
    %v1312 = vand.u32 %v1018, 2147483648
    %v1313 = vsel %vm1311, %v1312, %v1310
    %v1314 = vrsqrt.pop %v1019
    %v1315 = vmul.f32 %v1314, %v1019
    %v1316 = vmul.f32 %v1315, %v1314
    %v1317 = vmul.f32 0.5, %v1316
    %v1318 = vsub.f32 1.5, %v1317
    %v1319 = vmul.f32 %v1314, %v1318
    %v1320 = vmul.f32 %v1019, %v1319
    %vm1321 = vcmp.eq.f32.partialorder %v1019, inf
    %v1322 = vsel %vm1321, %v1019, %v1320
    %vm1323 = vcmp.eq.f32.partialorder %v1019, 0.0
    %v1324 = vand.u32 %v1019, 2147483648
    %v1325 = vsel %vm1323, %v1324, %v1322
    %v1326 = vrsqrt.pop %v1020
    %v1327 = vmul.f32 %v1326, %v1020
    %v1328 = vmul.f32 %v1327, %v1326
    %v1329 = vmul.f32 0.5, %v1328
    %v1330 = vsub.f32 1.5, %v1329
    %v1331 = vmul.f32 %v1326, %v1330
    %v1332 = vmul.f32 %v1020, %v1331
    %vm1333 = vcmp.eq.f32.partialorder %v1020, inf
    %v1334 = vsel %vm1333, %v1020, %v1332
    %vm1335 = vcmp.eq.f32.partialorder %v1020, 0.0
    %v1336 = vand.u32 %v1020, 2147483648
    %v1337 = vsel %vm1335, %v1336, %v1334
    %v1338 = vrsqrt.pop %v1021
    %v1339 = vmul.f32 %v1338, %v1021
    %v1340 = vmul.f32 %v1339, %v1338
    %v1341 = vmul.f32 0.5, %v1340
    %v1342 = vsub.f32 1.5, %v1341
    %v1343 = vmul.f32 %v1338, %v1342
    %v1344 = vmul.f32 %v1021, %v1343
    %vm1345 = vcmp.eq.f32.partialorder %v1021, inf
    %v1346 = vsel %vm1345, %v1021, %v1344
    %vm1347 = vcmp.eq.f32.partialorder %v1021, 0.0
    %v1348 = vand.u32 %v1021, 2147483648
    %v1349 = vsel %vm1347, %v1348, %v1346
    %v1350 = vrsqrt.pop %v1022
    %v1351 = vmul.f32 %v1350, %v1022
    %v1352 = vmul.f32 %v1351, %v1350
    %v1353 = vmul.f32 0.5, %v1352
    %v1354 = vsub.f32 1.5, %v1353
    %v1355 = vmul.f32 %v1350, %v1354
    %v1356 = vmul.f32 %v1022, %v1355
    %vm1357 = vcmp.eq.f32.partialorder %v1022, inf
    %v1358 = vsel %vm1357, %v1022, %v1356
    %vm1359 = vcmp.eq.f32.partialorder %v1022, 0.0
    %v1360 = vand.u32 %v1022, 2147483648
    %v1361 = vsel %vm1359, %v1360, %v1358
    %v1362 = vrsqrt.pop %v1023
    %v1363 = vmul.f32 %v1362, %v1023
    %v1364 = vmul.f32 %v1363, %v1362
    %v1365 = vmul.f32 0.5, %v1364
    %v1366 = vsub.f32 1.5, %v1365
    %v1367 = vmul.f32 %v1362, %v1366
    %v1368 = vmul.f32 %v1023, %v1367
    %vm1369 = vcmp.eq.f32.partialorder %v1023, inf
    %v1370 = vsel %vm1369, %v1023, %v1368
    %vm1371 = vcmp.eq.f32.partialorder %v1023, 0.0
    %v1372 = vand.u32 %v1023, 2147483648
    %v1373 = vsel %vm1371, %v1372, %v1370
    %v1374 = vrsqrt.pop %v1024
    %v1375 = vmul.f32 %v1374, %v1024
    %v1376 = vmul.f32 %v1375, %v1374
    %v1377 = vmul.f32 0.5, %v1376
    %v1378 = vsub.f32 1.5, %v1377
    %v1379 = vmul.f32 %v1374, %v1378
    %v1380 = vmul.f32 %v1024, %v1379
    %vm1381 = vcmp.eq.f32.partialorder %v1024, inf
    %v1382 = vsel %vm1381, %v1024, %v1380
    %vm1383 = vcmp.eq.f32.partialorder %v1024, 0.0
    %v1384 = vand.u32 %v1024, 2147483648
    %v1385 = vsel %vm1383, %v1384, %v1382
    %v1386 = vrsqrt.pop %v1025
    %v1387 = vmul.f32 %v1386, %v1025
    %v1388 = vmul.f32 %v1387, %v1386
    %v1389 = vmul.f32 0.5, %v1388
    %v1390 = vsub.f32 1.5, %v1389
    %v1391 = vmul.f32 %v1386, %v1390
    %v1392 = vmul.f32 %v1025, %v1391
    %vm1393 = vcmp.eq.f32.partialorder %v1025, inf
    %v1394 = vsel %vm1393, %v1025, %v1392
    %vm1395 = vcmp.eq.f32.partialorder %v1025, 0.0
    %v1396 = vand.u32 %v1025, 2147483648
    %v1397 = vsel %vm1395, %v1396, %v1394
    %v1398 = vrsqrt.pop %v1026
    %v1399 = vmul.f32 %v1398, %v1026
    %v1400 = vmul.f32 %v1399, %v1398
    %v1401 = vmul.f32 0.5, %v1400
    %v1402 = vsub.f32 1.5, %v1401
    %v1403 = vmul.f32 %v1398, %v1402
    %v1404 = vmul.f32 %v1026, %v1403
    %vm1405 = vcmp.eq.f32.partialorder %v1026, inf
    %v1406 = vsel %vm1405, %v1026, %v1404
    %vm1407 = vcmp.eq.f32.partialorder %v1026, 0.0
    %v1408 = vand.u32 %v1026, 2147483648
    %v1409 = vsel %vm1407, %v1408, %v1406
    %v1410 = vrsqrt.pop %v1027
    %v1411 = vmul.f32 %v1410, %v1027
    %v1412 = vmul.f32 %v1411, %v1410
    %v1413 = vmul.f32 0.5, %v1412
    %v1414 = vsub.f32 1.5, %v1413
    %v1415 = vmul.f32 %v1410, %v1414
    %v1416 = vmul.f32 %v1027, %v1415
    %vm1417 = vcmp.eq.f32.partialorder %v1027, inf
    %v1418 = vsel %vm1417, %v1027, %v1416
    %vm1419 = vcmp.eq.f32.partialorder %v1027, 0.0
    %v1420 = vand.u32 %v1027, 2147483648
    %v1421 = vsel %vm1419, %v1420, %v1418
    %v1422 = vrsqrt.pop %v1028
    %v1423 = vmul.f32 %v1422, %v1028
    %v1424 = vmul.f32 %v1423, %v1422
    %v1425 = vmul.f32 0.5, %v1424
    %v1426 = vsub.f32 1.5, %v1425
    %v1427 = vmul.f32 %v1422, %v1426
    %v1428 = vmul.f32 %v1028, %v1427
    %vm1429 = vcmp.eq.f32.partialorder %v1028, inf
    %v1430 = vsel %vm1429, %v1028, %v1428
    %vm1431 = vcmp.eq.f32.partialorder %v1028, 0.0
    %v1432 = vand.u32 %v1028, 2147483648
    %v1433 = vsel %vm1431, %v1432, %v1430
    %v1434 = vrsqrt.pop %v1029
    %v1435 = vmul.f32 %v1434, %v1029
    %v1436 = vmul.f32 %v1435, %v1434
    %v1437 = vmul.f32 0.5, %v1436
    %v1438 = vsub.f32 1.5, %v1437
    %v1439 = vmul.f32 %v1434, %v1438
    %v1440 = vmul.f32 %v1029, %v1439
    %vm1441 = vcmp.eq.f32.partialorder %v1029, inf
    %v1442 = vsel %vm1441, %v1029, %v1440
    %vm1443 = vcmp.eq.f32.partialorder %v1029, 0.0
    %v1444 = vand.u32 %v1029, 2147483648
    %v1445 = vsel %vm1443, %v1444, %v1442
    %v1446 = vrsqrt.pop %v1030
    %v1447 = vmul.f32 %v1446, %v1030
    %v1448 = vmul.f32 %v1447, %v1446
    %v1449 = vmul.f32 0.5, %v1448
    %v1450 = vsub.f32 1.5, %v1449
    %v1451 = vmul.f32 %v1446, %v1450
    %v1452 = vmul.f32 %v1030, %v1451
    %vm1453 = vcmp.eq.f32.partialorder %v1030, inf
    %v1454 = vsel %vm1453, %v1030, %v1452
    %vm1455 = vcmp.eq.f32.partialorder %v1030, 0.0
    %v1456 = vand.u32 %v1030, 2147483648
    %v1457 = vsel %vm1455, %v1456, %v1454
    %v1458 = vrsqrt.pop %v1031
    %v1459 = vmul.f32 %v1458, %v1031
    %v1460 = vmul.f32 %v1459, %v1458
    %v1461 = vmul.f32 0.5, %v1460
    %v1462 = vsub.f32 1.5, %v1461
    %v1463 = vmul.f32 %v1458, %v1462
    %v1464 = vmul.f32 %v1031, %v1463
    %vm1465 = vcmp.eq.f32.partialorder %v1031, inf
    %v1466 = vsel %vm1465, %v1031, %v1464
    %vm1467 = vcmp.eq.f32.partialorder %v1031, 0.0
    %v1468 = vand.u32 %v1031, 2147483648
    %v1469 = vsel %vm1467, %v1468, %v1466
    %v1470 = vrsqrt.pop %v1032
    %v1471 = vmul.f32 %v1470, %v1032
    %v1472 = vmul.f32 %v1471, %v1470
    %v1473 = vmul.f32 0.5, %v1472
    %v1474 = vsub.f32 1.5, %v1473
    %v1475 = vmul.f32 %v1470, %v1474
    %v1476 = vmul.f32 %v1032, %v1475
    %vm1477 = vcmp.eq.f32.partialorder %v1032, inf
    %v1478 = vsel %vm1477, %v1032, %v1476
    %vm1479 = vcmp.eq.f32.partialorder %v1032, 0.0
    %v1480 = vand.u32 %v1032, 2147483648
    %v1481 = vsel %vm1479, %v1480, %v1478
    %v1482 = vrsqrt.pop %v1033
    %v1483 = vmul.f32 %v1482, %v1033
    %v1484 = vmul.f32 %v1483, %v1482
    %v1485 = vmul.f32 0.5, %v1484
    %v1486 = vsub.f32 1.5, %v1485
    %v1487 = vmul.f32 %v1482, %v1486
    %v1488 = vmul.f32 %v1033, %v1487
    %vm1489 = vcmp.eq.f32.partialorder %v1033, inf
    %v1490 = vsel %vm1489, %v1033, %v1488
    %vm1491 = vcmp.eq.f32.partialorder %v1033, 0.0
    %v1492 = vand.u32 %v1033, 2147483648
    %v1493 = vsel %vm1491, %v1492, %v1490
    %v1494 = vrsqrt.pop %v1034
    %v1495 = vmul.f32 %v1494, %v1034
    %v1496 = vmul.f32 %v1495, %v1494
    %v1497 = vmul.f32 0.5, %v1496
    %v1498 = vsub.f32 1.5, %v1497
    %v1499 = vmul.f32 %v1494, %v1498
    %v1500 = vmul.f32 %v1034, %v1499
    %vm1501 = vcmp.eq.f32.partialorder %v1034, inf
    %v1502 = vsel %vm1501, %v1034, %v1500
    %vm1503 = vcmp.eq.f32.partialorder %v1034, 0.0
    %v1504 = vand.u32 %v1034, 2147483648
    %v1505 = vsel %vm1503, %v1504, %v1502
    %v1506 = vrsqrt.pop %v1035
    %v1507 = vmul.f32 %v1506, %v1035
    %v1508 = vmul.f32 %v1507, %v1506
    %v1509 = vmul.f32 0.5, %v1508
    %v1510 = vsub.f32 1.5, %v1509
    %v1511 = vmul.f32 %v1506, %v1510
    %v1512 = vmul.f32 %v1035, %v1511
    %vm1513 = vcmp.eq.f32.partialorder %v1035, inf
    %v1514 = vsel %vm1513, %v1035, %v1512
    %vm1515 = vcmp.eq.f32.partialorder %v1035, 0.0
    %v1516 = vand.u32 %v1035, 2147483648
    %v1517 = vsel %vm1515, %v1516, %v1514
    %v1518 = vrsqrt.pop %v1036
    %v1519 = vmul.f32 %v1518, %v1036
    %v1520 = vmul.f32 %v1519, %v1518
    %v1521 = vmul.f32 0.5, %v1520
    %v1522 = vsub.f32 1.5, %v1521
    %v1523 = vmul.f32 %v1518, %v1522
    %v1524 = vmul.f32 %v1036, %v1523
    %vm1525 = vcmp.eq.f32.partialorder %v1036, inf
    %v1526 = vsel %vm1525, %v1036, %v1524
    %vm1527 = vcmp.eq.f32.partialorder %v1036, 0.0
    %v1528 = vand.u32 %v1036, 2147483648
    %v1529 = vsel %vm1527, %v1528, %v1526
    %v1530 = vrsqrt.pop %v1037
    %v1531 = vmul.f32 %v1530, %v1037
    %v1532 = vmul.f32 %v1531, %v1530
    %v1533 = vmul.f32 0.5, %v1532
    %v1534 = vsub.f32 1.5, %v1533
    %v1535 = vmul.f32 %v1530, %v1534
    %v1536 = vmul.f32 %v1037, %v1535
    %vm1537 = vcmp.eq.f32.partialorder %v1037, inf
    %v1538 = vsel %vm1537, %v1037, %v1536
    %vm1539 = vcmp.eq.f32.partialorder %v1037, 0.0
    %v1540 = vand.u32 %v1037, 2147483648
    %v1541 = vsel %vm1539, %v1540, %v1538
    %v1542 = vrsqrt.pop %v1038
    %v1543 = vmul.f32 %v1542, %v1038
    %v1544 = vmul.f32 %v1543, %v1542
    %v1545 = vmul.f32 0.5, %v1544
    %v1546 = vsub.f32 1.5, %v1545
    %v1547 = vmul.f32 %v1542, %v1546
    %v1548 = vmul.f32 %v1038, %v1547
    %vm1549 = vcmp.eq.f32.partialorder %v1038, inf
    %v1550 = vsel %vm1549, %v1038, %v1548
    %vm1551 = vcmp.eq.f32.partialorder %v1038, 0.0
    %v1552 = vand.u32 %v1038, 2147483648
    %v1553 = vsel %vm1551, %v1552, %v1550
    %v1554 = vrsqrt.pop %v1039
    %v1555 = vmul.f32 %v1554, %v1039
    %v1556 = vmul.f32 %v1555, %v1554
    %v1557 = vmul.f32 0.5, %v1556
    %v1558 = vsub.f32 1.5, %v1557
    %v1559 = vmul.f32 %v1554, %v1558
    %v1560 = vmul.f32 %v1039, %v1559
    %vm1561 = vcmp.eq.f32.partialorder %v1039, inf
    %v1562 = vsel %vm1561, %v1039, %v1560
    %vm1563 = vcmp.eq.f32.partialorder %v1039, 0.0
    %v1564 = vand.u32 %v1039, 2147483648
    %v1565 = vsel %vm1563, %v1564, %v1562
    %v1566 = vrsqrt.pop %v1040
    %v1567 = vmul.f32 %v1566, %v1040
    %v1568 = vmul.f32 %v1567, %v1566
    %v1569 = vmul.f32 0.5, %v1568
    %v1570 = vsub.f32 1.5, %v1569
    %v1571 = vmul.f32 %v1566, %v1570
    %v1572 = vmul.f32 %v1040, %v1571
    %vm1573 = vcmp.eq.f32.partialorder %v1040, inf
    %v1574 = vsel %vm1573, %v1040, %v1572
    %vm1575 = vcmp.eq.f32.partialorder %v1040, 0.0
    %v1576 = vand.u32 %v1040, 2147483648
    %v1577 = vsel %vm1575, %v1576, %v1574
    %v1578 = vrsqrt.pop %v1041
    %v1579 = vmul.f32 %v1578, %v1041
    %v1580 = vmul.f32 %v1579, %v1578
    %v1581 = vmul.f32 0.5, %v1580
    %v1582 = vsub.f32 1.5, %v1581
    %v1583 = vmul.f32 %v1578, %v1582
    %v1584 = vmul.f32 %v1041, %v1583
    %vm1585 = vcmp.eq.f32.partialorder %v1041, inf
    %v1586 = vsel %vm1585, %v1041, %v1584
    %vm1587 = vcmp.eq.f32.partialorder %v1041, 0.0
    %v1588 = vand.u32 %v1041, 2147483648
    %v1589 = vsel %vm1587, %v1588, %v1586
    %v1590 = vrsqrt.pop %v1042
    %v1591 = vmul.f32 %v1590, %v1042
    %v1592 = vmul.f32 %v1591, %v1590
    %v1593 = vmul.f32 0.5, %v1592
    %v1594 = vsub.f32 1.5, %v1593
    %v1595 = vmul.f32 %v1590, %v1594
    %v1596 = vmul.f32 %v1042, %v1595
    %vm1597 = vcmp.eq.f32.partialorder %v1042, inf
    %v1598 = vsel %vm1597, %v1042, %v1596
    %vm1599 = vcmp.eq.f32.partialorder %v1042, 0.0
    %v1600 = vand.u32 %v1042, 2147483648
    %v1601 = vsel %vm1599, %v1600, %v1598
    %v1602 = vrsqrt.pop %v1043
    %v1603 = vmul.f32 %v1602, %v1043
    %v1604 = vmul.f32 %v1603, %v1602
    %v1605 = vmul.f32 0.5, %v1604
    %v1606 = vsub.f32 1.5, %v1605
    %v1607 = vmul.f32 %v1602, %v1606
    %v1608 = vmul.f32 %v1043, %v1607
    %vm1609 = vcmp.eq.f32.partialorder %v1043, inf
    %v1610 = vsel %vm1609, %v1043, %v1608
    %vm1611 = vcmp.eq.f32.partialorder %v1043, 0.0
    %v1612 = vand.u32 %v1043, 2147483648
    %v1613 = vsel %vm1611, %v1612, %v1610
    %v1614 = vrsqrt.pop %v1044
    %v1615 = vmul.f32 %v1614, %v1044
    %v1616 = vmul.f32 %v1615, %v1614
    %v1617 = vmul.f32 0.5, %v1616
    %v1618 = vsub.f32 1.5, %v1617
    %v1619 = vmul.f32 %v1614, %v1618
    %v1620 = vmul.f32 %v1044, %v1619
    %vm1621 = vcmp.eq.f32.partialorder %v1044, inf
    %v1622 = vsel %vm1621, %v1044, %v1620
    %vm1623 = vcmp.eq.f32.partialorder %v1044, 0.0
    %v1624 = vand.u32 %v1044, 2147483648
    %v1625 = vsel %vm1623, %v1624, %v1622
    %v1626 = vrsqrt.pop %v1045
    %v1627 = vmul.f32 %v1626, %v1045
    %v1628 = vmul.f32 %v1627, %v1626
    %v1629 = vmul.f32 0.5, %v1628
    %v1630 = vsub.f32 1.5, %v1629
    %v1631 = vmul.f32 %v1626, %v1630
    %v1632 = vmul.f32 %v1045, %v1631
    %vm1633 = vcmp.eq.f32.partialorder %v1045, inf
    %v1634 = vsel %vm1633, %v1045, %v1632
    %vm1635 = vcmp.eq.f32.partialorder %v1045, 0.0
    %v1636 = vand.u32 %v1045, 2147483648
    %v1637 = vsel %vm1635, %v1636, %v1634
    %v1638 = vrsqrt.pop %v1046
    %v1639 = vmul.f32 %v1638, %v1046
    %v1640 = vmul.f32 %v1639, %v1638
    %v1641 = vmul.f32 0.5, %v1640
    %v1642 = vsub.f32 1.5, %v1641
    %v1643 = vmul.f32 %v1638, %v1642
    %v1644 = vmul.f32 %v1046, %v1643
    %vm1645 = vcmp.eq.f32.partialorder %v1046, inf
    %v1646 = vsel %vm1645, %v1046, %v1644
    %vm1647 = vcmp.eq.f32.partialorder %v1046, 0.0
    %v1648 = vand.u32 %v1046, 2147483648
    %v1649 = vsel %vm1647, %v1648, %v1646
    %v1650 = vrsqrt.pop %v1047
    %v1651 = vmul.f32 %v1650, %v1047
    %v1652 = vmul.f32 %v1651, %v1650
    %v1653 = vmul.f32 0.5, %v1652
    %v1654 = vsub.f32 1.5, %v1653
    %v1655 = vmul.f32 %v1650, %v1654
    %v1656 = vmul.f32 %v1047, %v1655
    %vm1657 = vcmp.eq.f32.partialorder %v1047, inf
    %v1658 = vsel %vm1657, %v1047, %v1656
    %vm1659 = vcmp.eq.f32.partialorder %v1047, 0.0
    %v1660 = vand.u32 %v1047, 2147483648
    %v1661 = vsel %vm1659, %v1660, %v1658
    %v1662 = vrsqrt.pop %v1048
    %v1663 = vmul.f32 %v1662, %v1048
    %v1664 = vmul.f32 %v1663, %v1662
    %v1665 = vmul.f32 0.5, %v1664
    %v1666 = vsub.f32 1.5, %v1665
    %v1667 = vmul.f32 %v1662, %v1666
    %v1668 = vmul.f32 %v1048, %v1667
    %vm1669 = vcmp.eq.f32.partialorder %v1048, inf
    %v1670 = vsel %vm1669, %v1048, %v1668
    %vm1671 = vcmp.eq.f32.partialorder %v1048, 0.0
    %v1672 = vand.u32 %v1048, 2147483648
    %v1673 = vsel %vm1671, %v1672, %v1670
    %v1674 = vrsqrt.pop %v1049
    %v1675 = vmul.f32 %v1674, %v1049
    %v1676 = vmul.f32 %v1675, %v1674
    %v1677 = vmul.f32 0.5, %v1676
    %v1678 = vsub.f32 1.5, %v1677
    %v1679 = vmul.f32 %v1674, %v1678
    %v1680 = vmul.f32 %v1049, %v1679
    %vm1681 = vcmp.eq.f32.partialorder %v1049, inf
    %v1682 = vsel %vm1681, %v1049, %v1680
    %vm1683 = vcmp.eq.f32.partialorder %v1049, 0.0
    %v1684 = vand.u32 %v1049, 2147483648
    %v1685 = vsel %vm1683, %v1684, %v1682
    %v1686 = vrsqrt.pop %v1050
    %v1687 = vmul.f32 %v1686, %v1050
    %v1688 = vmul.f32 %v1687, %v1686
    %v1689 = vmul.f32 0.5, %v1688
    %v1690 = vsub.f32 1.5, %v1689
    %v1691 = vmul.f32 %v1686, %v1690
    %v1692 = vmul.f32 %v1050, %v1691
    %vm1693 = vcmp.eq.f32.partialorder %v1050, inf
    %v1694 = vsel %vm1693, %v1050, %v1692
    %vm1695 = vcmp.eq.f32.partialorder %v1050, 0.0
    %v1696 = vand.u32 %v1050, 2147483648
    %v1697 = vsel %vm1695, %v1696, %v1694
    %v1698 = vrsqrt.pop %v1051
    %v1699 = vmul.f32 %v1698, %v1051
    %v1700 = vmul.f32 %v1699, %v1698
    %v1701 = vmul.f32 0.5, %v1700
    %v1702 = vsub.f32 1.5, %v1701
    %v1703 = vmul.f32 %v1698, %v1702
    %v1704 = vmul.f32 %v1051, %v1703
    %vm1705 = vcmp.eq.f32.partialorder %v1051, inf
    %v1706 = vsel %vm1705, %v1051, %v1704
    %vm1707 = vcmp.eq.f32.partialorder %v1051, 0.0
    %v1708 = vand.u32 %v1051, 2147483648
    %v1709 = vsel %vm1707, %v1708, %v1706
    %v1710 = vrsqrt.pop %v1052
    %v1711 = vmul.f32 %v1710, %v1052
    %v1712 = vmul.f32 %v1711, %v1710
    %v1713 = vmul.f32 0.5, %v1712
    %v1714 = vsub.f32 1.5, %v1713
    %v1715 = vmul.f32 %v1710, %v1714
    %v1716 = vmul.f32 %v1052, %v1715
    %vm1717 = vcmp.eq.f32.partialorder %v1052, inf
    %v1718 = vsel %vm1717, %v1052, %v1716
    %vm1719 = vcmp.eq.f32.partialorder %v1052, 0.0
    %v1720 = vand.u32 %v1052, 2147483648
    %v1721 = vsel %vm1719, %v1720, %v1718
    %v1722 = vrsqrt.pop %v1053
    %v1723 = vmul.f32 %v1722, %v1053
    %v1724 = vmul.f32 %v1723, %v1722
    %v1725 = vmul.f32 0.5, %v1724
    %v1726 = vsub.f32 1.5, %v1725
    %v1727 = vmul.f32 %v1722, %v1726
    %v1728 = vmul.f32 %v1053, %v1727
    %vm1729 = vcmp.eq.f32.partialorder %v1053, inf
    %v1730 = vsel %vm1729, %v1053, %v1728
    %vm1731 = vcmp.eq.f32.partialorder %v1053, 0.0
    %v1732 = vand.u32 %v1053, 2147483648
    %v1733 = vsel %vm1731, %v1732, %v1730
    %v1734 = vrsqrt.pop %v1054
    %v1735 = vmul.f32 %v1734, %v1054
    %v1736 = vmul.f32 %v1735, %v1734
    %v1737 = vmul.f32 0.5, %v1736
    %v1738 = vsub.f32 1.5, %v1737
    %v1739 = vmul.f32 %v1734, %v1738
    %v1740 = vmul.f32 %v1054, %v1739
    %vm1741 = vcmp.eq.f32.partialorder %v1054, inf
    %v1742 = vsel %vm1741, %v1054, %v1740
    %vm1743 = vcmp.eq.f32.partialorder %v1054, 0.0
    %v1744 = vand.u32 %v1054, 2147483648
    %v1745 = vsel %vm1743, %v1744, %v1742
    %v1746 = vrsqrt.pop %v1055
    %v1747 = vmul.f32 %v1746, %v1055
    %v1748 = vmul.f32 %v1747, %v1746
    %v1749 = vmul.f32 0.5, %v1748
    %v1750 = vsub.f32 1.5, %v1749
    %v1751 = vmul.f32 %v1746, %v1750
    %v1752 = vmul.f32 %v1055, %v1751
    %vm1753 = vcmp.eq.f32.partialorder %v1055, inf
    %v1754 = vsel %vm1753, %v1055, %v1752
    %vm1755 = vcmp.eq.f32.partialorder %v1055, 0.0
    %v1756 = vand.u32 %v1055, 2147483648
    %v1757 = vsel %vm1755, %v1756, %v1754
    %v1758 = vrsqrt.pop %v1056
    %v1759 = vmul.f32 %v1758, %v1056
    %v1760 = vmul.f32 %v1759, %v1758
    %v1761 = vmul.f32 0.5, %v1760
    %v1762 = vsub.f32 1.5, %v1761
    %v1763 = vmul.f32 %v1758, %v1762
    %v1764 = vmul.f32 %v1056, %v1763
    %vm1765 = vcmp.eq.f32.partialorder %v1056, inf
    %v1766 = vsel %vm1765, %v1056, %v1764
    %vm1767 = vcmp.eq.f32.partialorder %v1056, 0.0
    %v1768 = vand.u32 %v1056, 2147483648
    %v1769 = vsel %vm1767, %v1768, %v1766
    %v1770 = vrsqrt.pop %v1057
    %v1771 = vmul.f32 %v1770, %v1057
    %v1772 = vmul.f32 %v1771, %v1770
    %v1773 = vmul.f32 0.5, %v1772
    %v1774 = vsub.f32 1.5, %v1773
    %v1775 = vmul.f32 %v1770, %v1774
    %v1776 = vmul.f32 %v1057, %v1775
    %vm1777 = vcmp.eq.f32.partialorder %v1057, inf
    %v1778 = vsel %vm1777, %v1057, %v1776
    %vm1779 = vcmp.eq.f32.partialorder %v1057, 0.0
    %v1780 = vand.u32 %v1057, 2147483648
    %v1781 = vsel %vm1779, %v1780, %v1778
    %v1782 = vrsqrt.pop %v1058
    %v1783 = vmul.f32 %v1782, %v1058
    %v1784 = vmul.f32 %v1783, %v1782
    %v1785 = vmul.f32 0.5, %v1784
    %v1786 = vsub.f32 1.5, %v1785
    %v1787 = vmul.f32 %v1782, %v1786
    %v1788 = vmul.f32 %v1058, %v1787
    %vm1789 = vcmp.eq.f32.partialorder %v1058, inf
    %v1790 = vsel %vm1789, %v1058, %v1788
    %vm1791 = vcmp.eq.f32.partialorder %v1058, 0.0
    %v1792 = vand.u32 %v1058, 2147483648
    %v1793 = vsel %vm1791, %v1792, %v1790
    %v1794 = vrsqrt.pop %v1059
    %v1795 = vmul.f32 %v1794, %v1059
    %v1796 = vmul.f32 %v1795, %v1794
    %v1797 = vmul.f32 0.5, %v1796
    %v1798 = vsub.f32 1.5, %v1797
    %v1799 = vmul.f32 %v1794, %v1798
    %v1800 = vmul.f32 %v1059, %v1799
    %vm1801 = vcmp.eq.f32.partialorder %v1059, inf
    %v1802 = vsel %vm1801, %v1059, %v1800
    %vm1803 = vcmp.eq.f32.partialorder %v1059, 0.0
    %v1804 = vand.u32 %v1059, 2147483648
    %v1805 = vsel %vm1803, %v1804, %v1802
    %v1806 = vrsqrt.pop %v1060
    %v1807 = vmul.f32 %v1806, %v1060
    %v1808 = vmul.f32 %v1807, %v1806
    %v1809 = vmul.f32 0.5, %v1808
    %v1810 = vsub.f32 1.5, %v1809
    %v1811 = vmul.f32 %v1806, %v1810
    %v1812 = vmul.f32 %v1060, %v1811
    %vm1813 = vcmp.eq.f32.partialorder %v1060, inf
    %v1814 = vsel %vm1813, %v1060, %v1812
    %vm1815 = vcmp.eq.f32.partialorder %v1060, 0.0
    %v1816 = vand.u32 %v1060, 2147483648
    %v1817 = vsel %vm1815, %v1816, %v1814
    %v1818 = vrsqrt.pop %v1061
    %v1819 = vmul.f32 %v1818, %v1061
    %v1820 = vmul.f32 %v1819, %v1818
    %v1821 = vmul.f32 0.5, %v1820
    %v1822 = vsub.f32 1.5, %v1821
    %v1823 = vmul.f32 %v1818, %v1822
    %v1824 = vmul.f32 %v1061, %v1823
    %vm1825 = vcmp.eq.f32.partialorder %v1061, inf
    %v1826 = vsel %vm1825, %v1061, %v1824
    %vm1827 = vcmp.eq.f32.partialorder %v1061, 0.0
    %v1828 = vand.u32 %v1061, 2147483648
    %v1829 = vsel %vm1827, %v1828, %v1826
    %v1830 = vmul.f32 %v294, 0.87758255
    %v1831 = vmul.f32 %v297, 0.87758255
    %v1832 = vmul.f32 %v300, 0.87758255
    %v1833 = vmul.f32 %v303, 0.87758255
    %v1834 = vmul.f32 %v306, 0.87758255
    %v1835 = vmul.f32 %v309, 0.87758255
    %v1836 = vmul.f32 %v312, 0.87758255
    %v1837 = vmul.f32 %v315, 0.87758255
    %v1838 = vmul.f32 %v318, 0.87758255
    %v1839 = vmul.f32 %v321, 0.87758255
    %v1840 = vmul.f32 %v324, 0.87758255
    %v1841 = vmul.f32 %v327, 0.87758255
    %v1842 = vmul.f32 %v330, 0.87758255
    %v1843 = vmul.f32 %v333, 0.87758255
    %v1844 = vmul.f32 %v336, 0.87758255
    %v1845 = vmul.f32 %v339, 0.87758255
    %v1846 = vmul.f32 %v342, 0.87758255
    %v1847 = vmul.f32 %v345, 0.87758255
    %v1848 = vmul.f32 %v348, 0.87758255
    %v1849 = vmul.f32 %v351, 0.87758255
    %v1850 = vmul.f32 %v354, 0.87758255
    %v1851 = vmul.f32 %v357, 0.87758255
    %v1852 = vmul.f32 %v360, 0.87758255
    %v1853 = vmul.f32 %v363, 0.87758255
    %v1854 = vmul.f32 %v366, 0.87758255
    %v1855 = vmul.f32 %v369, 0.87758255
    %v1856 = vmul.f32 %v372, 0.87758255
    %v1857 = vmul.f32 %v375, 0.87758255
    %v1858 = vmul.f32 %v378, 0.87758255
    %v1859 = vmul.f32 %v381, 0.87758255
    %v1860 = vmul.f32 %v384, 0.87758255
    %v1861 = vmul.f32 %v387, 0.87758255
    %v1862 = vmul.f32 %v390, 0.87758255
    %v1863 = vmul.f32 %v393, 0.87758255
    %v1864 = vmul.f32 %v396, 0.87758255
    %v1865 = vmul.f32 %v399, 0.87758255
    %v1866 = vmul.f32 %v402, 0.87758255
    %v1867 = vmul.f32 %v405, 0.87758255
    %v1868 = vmul.f32 %v408, 0.87758255
    %v1869 = vmul.f32 %v411, 0.87758255
    %v1870 = vmul.f32 %v414, 0.87758255
    %v1871 = vmul.f32 %v417, 0.87758255
    %v1872 = vmul.f32 %v420, 0.87758255
    %v1873 = vmul.f32 %v423, 0.87758255
    %v1874 = vmul.f32 %v426, 0.87758255
    %v1875 = vmul.f32 %v429, 0.87758255
    %v1876 = vmul.f32 %v432, 0.87758255
    %v1877 = vmul.f32 %v435, 0.87758255
    %v1878 = vmul.f32 %v438, 0.87758255
    %v1879 = vmul.f32 %v441, 0.87758255
    %v1880 = vmul.f32 %v444, 0.87758255
    %v1881 = vmul.f32 %v447, 0.87758255
    %v1882 = vmul.f32 %v450, 0.87758255
    %v1883 = vmul.f32 %v453, 0.87758255
    %v1884 = vmul.f32 %v456, 0.87758255
    %v1885 = vmul.f32 %v459, 0.87758255
    %v1886 = vmul.f32 %v462, 0.87758255
    %v1887 = vmul.f32 %v465, 0.87758255
    %v1888 = vmul.f32 %v468, 0.87758255
    %v1889 = vmul.f32 %v471, 0.87758255
    %v1890 = vmul.f32 %v474, 0.87758255
    %v1891 = vmul.f32 %v477, 0.87758255
    %v1892 = vmul.f32 %v480, 0.87758255
    %v1893 = vmul.f32 %v483, 0.87758255
    %v1894 = vmul.f32 %v1073, 0.47942555
    %v1895 = vmul.f32 %v1085, 0.47942555
    %v1896 = vmul.f32 %v1097, 0.47942555
    %v1897 = vmul.f32 %v1109, 0.47942555
    %v1898 = vmul.f32 %v1121, 0.47942555
    %v1899 = vmul.f32 %v1133, 0.47942555
    %v1900 = vmul.f32 %v1145, 0.47942555
    %v1901 = vmul.f32 %v1157, 0.47942555
    %v1902 = vmul.f32 %v1169, 0.47942555
    %v1903 = vmul.f32 %v1181, 0.47942555
    %v1904 = vmul.f32 %v1193, 0.47942555
    %v1905 = vmul.f32 %v1205, 0.47942555
    %v1906 = vmul.f32 %v1217, 0.47942555
    %v1907 = vmul.f32 %v1229, 0.47942555
    %v1908 = vmul.f32 %v1241, 0.47942555
    %v1909 = vmul.f32 %v1253, 0.47942555
    %v1910 = vmul.f32 %v1265, 0.47942555
    %v1911 = vmul.f32 %v1277, 0.47942555
    %v1912 = vmul.f32 %v1289, 0.47942555
    %v1913 = vmul.f32 %v1301, 0.47942555
    %v1914 = vmul.f32 %v1313, 0.47942555
    %v1915 = vmul.f32 %v1325, 0.47942555
    %v1916 = vmul.f32 %v1337, 0.47942555
    %v1917 = vmul.f32 %v1349, 0.47942555
    %v1918 = vmul.f32 %v1361, 0.47942555
    %v1919 = vmul.f32 %v1373, 0.47942555
    %v1920 = vmul.f32 %v1385, 0.47942555
    %v1921 = vmul.f32 %v1397, 0.47942555
    %v1922 = vmul.f32 %v1409, 0.47942555
    %v1923 = vmul.f32 %v1421, 0.47942555
    %v1924 = vmul.f32 %v1433, 0.47942555
    %v1925 = vmul.f32 %v1445, 0.47942555
    %v1926 = vmul.f32 %v1457, 0.47942555
    %v1927 = vmul.f32 %v1469, 0.47942555
    %v1928 = vmul.f32 %v1481, 0.47942555
    %v1929 = vmul.f32 %v1493, 0.47942555
    %v1930 = vmul.f32 %v1505, 0.47942555
    %v1931 = vmul.f32 %v1517, 0.47942555
    %v1932 = vmul.f32 %v1529, 0.47942555
    %v1933 = vmul.f32 %v1541, 0.47942555
    %v1934 = vmul.f32 %v1553, 0.47942555
    %v1935 = vmul.f32 %v1565, 0.47942555
    %v1936 = vmul.f32 %v1577, 0.47942555
    %v1937 = vmul.f32 %v1589, 0.47942555
    %v1938 = vmul.f32 %v1601, 0.47942555
    %v1939 = vmul.f32 %v1613, 0.47942555
    %v1940 = vmul.f32 %v1625, 0.47942555
    %v1941 = vmul.f32 %v1637, 0.47942555
    %v1942 = vmul.f32 %v1649, 0.47942555
    %v1943 = vmul.f32 %v1661, 0.47942555
    %v1944 = vmul.f32 %v1673, 0.47942555
    %v1945 = vmul.f32 %v1685, 0.47942555
    %v1946 = vmul.f32 %v1697, 0.47942555
    %v1947 = vmul.f32 %v1709, 0.47942555
    %v1948 = vmul.f32 %v1721, 0.47942555
    %v1949 = vmul.f32 %v1733, 0.47942555
    %v1950 = vmul.f32 %v1745, 0.47942555
    %v1951 = vmul.f32 %v1757, 0.47942555
    %v1952 = vmul.f32 %v1769, 0.47942555
    %v1953 = vmul.f32 %v1781, 0.47942555
    %v1954 = vmul.f32 %v1793, 0.47942555
    %v1955 = vmul.f32 %v1805, 0.47942555
    %v1956 = vmul.f32 %v1817, 0.47942555
    %v1957 = vmul.f32 %v1829, 0.47942555
    %v1958 = vsub.f32 %v1830, %v1894
    %v1959 = vsub.f32 %v1831, %v1895
    %v1960 = vsub.f32 %v1832, %v1896
    %v1961 = vsub.f32 %v1833, %v1897
    %v1962 = vsub.f32 %v1834, %v1898
    %v1963 = vsub.f32 %v1835, %v1899
    %v1964 = vsub.f32 %v1836, %v1900
    %v1965 = vsub.f32 %v1837, %v1901
    %v1966 = vsub.f32 %v1838, %v1902
    %v1967 = vsub.f32 %v1839, %v1903
    %v1968 = vsub.f32 %v1840, %v1904
    %v1969 = vsub.f32 %v1841, %v1905
    %v1970 = vsub.f32 %v1842, %v1906
    %v1971 = vsub.f32 %v1843, %v1907
    %v1972 = vsub.f32 %v1844, %v1908
    %v1973 = vsub.f32 %v1845, %v1909
    %v1974 = vsub.f32 %v1846, %v1910
    %v1975 = vsub.f32 %v1847, %v1911
    %v1976 = vsub.f32 %v1848, %v1912
    %v1977 = vsub.f32 %v1849, %v1913
    %v1978 = vsub.f32 %v1850, %v1914
    %v1979 = vsub.f32 %v1851, %v1915
    %v1980 = vsub.f32 %v1852, %v1916
    %v1981 = vsub.f32 %v1853, %v1917
    %v1982 = vsub.f32 %v1854, %v1918
    %v1983 = vsub.f32 %v1855, %v1919
    %v1984 = vsub.f32 %v1856, %v1920
    %v1985 = vsub.f32 %v1857, %v1921
    %v1986 = vsub.f32 %v1858, %v1922
    %v1987 = vsub.f32 %v1859, %v1923
    %v1988 = vsub.f32 %v1860, %v1924
    %v1989 = vsub.f32 %v1861, %v1925
    %v1990 = vsub.f32 %v1862, %v1926
    %v1991 = vsub.f32 %v1863, %v1927
    %v1992 = vsub.f32 %v1864, %v1928
    %v1993 = vsub.f32 %v1865, %v1929
    %v1994 = vsub.f32 %v1866, %v1930
    %v1995 = vsub.f32 %v1867, %v1931
    %v1996 = vsub.f32 %v1868, %v1932
    %v1997 = vsub.f32 %v1869, %v1933
    %v1998 = vsub.f32 %v1870, %v1934
    %v1999 = vsub.f32 %v1871, %v1935
    %v2000 = vsub.f32 %v1872, %v1936
    %v2001 = vsub.f32 %v1873, %v1937
    %v2002 = vsub.f32 %v1874, %v1938
    %v2003 = vsub.f32 %v1875, %v1939
    %v2004 = vsub.f32 %v1876, %v1940
    %v2005 = vsub.f32 %v1877, %v1941
    %v2006 = vsub.f32 %v1878, %v1942
    %v2007 = vsub.f32 %v1879, %v1943
    %v2008 = vsub.f32 %v1880, %v1944
    %v2009 = vsub.f32 %v1881, %v1945
    %v2010 = vsub.f32 %v1882, %v1946
    %v2011 = vsub.f32 %v1883, %v1947
    %v2012 = vsub.f32 %v1884, %v1948
    %v2013 = vsub.f32 %v1885, %v1949
    %v2014 = vsub.f32 %v1886, %v1950
    %v2015 = vsub.f32 %v1887, %v1951
    %v2016 = vsub.f32 %v1888, %v1952
    %v2017 = vsub.f32 %v1889, %v1953
    %v2018 = vsub.f32 %v1890, %v1954
    %v2019 = vsub.f32 %v1891, %v1955
    %v2020 = vsub.f32 %v1892, %v1956
    %v2021 = vsub.f32 %v1893, %v1957
    %vm2022 = vcmp.gt.f32.partialorder %v294, -0.87758255
    %vm2023 = vcmp.gt.f32.partialorder %v297, -0.87758255
    %vm2024 = vcmp.gt.f32.partialorder %v300, -0.87758255
    %vm2025 = vcmp.gt.f32.partialorder %v303, -0.87758255
    %vm2026 = vcmp.gt.f32.partialorder %v306, -0.87758255
    %vm2027 = vcmp.gt.f32.partialorder %v309, -0.87758255
    %vm2028 = vcmp.gt.f32.partialorder %v312, -0.87758255
    %vm2029 = vcmp.gt.f32.partialorder %v315, -0.87758255
    %vm2030 = vcmp.gt.f32.partialorder %v318, -0.87758255
    %vm2031 = vcmp.gt.f32.partialorder %v321, -0.87758255
    %vm2032 = vcmp.gt.f32.partialorder %v324, -0.87758255
    %vm2033 = vcmp.gt.f32.partialorder %v327, -0.87758255
    %vm2034 = vcmp.gt.f32.partialorder %v330, -0.87758255
    %vm2035 = vcmp.gt.f32.partialorder %v333, -0.87758255
    %vm2036 = vcmp.gt.f32.partialorder %v336, -0.87758255
    %vm2037 = vcmp.gt.f32.partialorder %v339, -0.87758255
    %vm2038 = vcmp.gt.f32.partialorder %v342, -0.87758255
    %vm2039 = vcmp.gt.f32.partialorder %v345, -0.87758255
    %vm2040 = vcmp.gt.f32.partialorder %v348, -0.87758255
    %vm2041 = vcmp.gt.f32.partialorder %v351, -0.87758255
    %vm2042 = vcmp.gt.f32.partialorder %v354, -0.87758255
    %vm2043 = vcmp.gt.f32.partialorder %v357, -0.87758255
    %vm2044 = vcmp.gt.f32.partialorder %v360, -0.87758255
    %vm2045 = vcmp.gt.f32.partialorder %v363, -0.87758255
    %vm2046 = vcmp.gt.f32.partialorder %v366, -0.87758255
    %vm2047 = vcmp.gt.f32.partialorder %v369, -0.87758255
    %vm2048 = vcmp.gt.f32.partialorder %v372, -0.87758255
    %vm2049 = vcmp.gt.f32.partialorder %v375, -0.87758255
    %vm2050 = vcmp.gt.f32.partialorder %v378, -0.87758255
    %vm2051 = vcmp.gt.f32.partialorder %v381, -0.87758255
    %vm2052 = vcmp.gt.f32.partialorder %v384, -0.87758255
    %vm2053 = vcmp.gt.f32.partialorder %v387, -0.87758255
    %vm2054 = vcmp.gt.f32.partialorder %v390, -0.87758255
    %vm2055 = vcmp.gt.f32.partialorder %v393, -0.87758255
    %vm2056 = vcmp.gt.f32.partialorder %v396, -0.87758255
    %vm2057 = vcmp.gt.f32.partialorder %v399, -0.87758255
    %vm2058 = vcmp.gt.f32.partialorder %v402, -0.87758255
    %vm2059 = vcmp.gt.f32.partialorder %v405, -0.87758255
    %vm2060 = vcmp.gt.f32.partialorder %v408, -0.87758255
    %vm2061 = vcmp.gt.f32.partialorder %v411, -0.87758255
    %vm2062 = vcmp.gt.f32.partialorder %v414, -0.87758255
    %vm2063 = vcmp.gt.f32.partialorder %v417, -0.87758255
    %vm2064 = vcmp.gt.f32.partialorder %v420, -0.87758255
    %vm2065 = vcmp.gt.f32.partialorder %v423, -0.87758255
    %vm2066 = vcmp.gt.f32.partialorder %v426, -0.87758255
    %vm2067 = vcmp.gt.f32.partialorder %v429, -0.87758255
    %vm2068 = vcmp.gt.f32.partialorder %v432, -0.87758255
    %vm2069 = vcmp.gt.f32.partialorder %v435, -0.87758255
    %vm2070 = vcmp.gt.f32.partialorder %v438, -0.87758255
    %vm2071 = vcmp.gt.f32.partialorder %v441, -0.87758255
    %vm2072 = vcmp.gt.f32.partialorder %v444, -0.87758255
    %vm2073 = vcmp.gt.f32.partialorder %v447, -0.87758255
    %vm2074 = vcmp.gt.f32.partialorder %v450, -0.87758255
    %vm2075 = vcmp.gt.f32.partialorder %v453, -0.87758255
    %vm2076 = vcmp.gt.f32.partialorder %v456, -0.87758255
    %vm2077 = vcmp.gt.f32.partialorder %v459, -0.87758255
    %vm2078 = vcmp.gt.f32.partialorder %v462, -0.87758255
    %vm2079 = vcmp.gt.f32.partialorder %v465, -0.87758255
    %vm2080 = vcmp.gt.f32.partialorder %v468, -0.87758255
    %vm2081 = vcmp.gt.f32.partialorder %v471, -0.87758255
    %vm2082 = vcmp.gt.f32.partialorder %v474, -0.87758255
    %vm2083 = vcmp.gt.f32.partialorder %v477, -0.87758255
    %vm2084 = vcmp.gt.f32.partialorder %v480, -0.87758255
    %vm2085 = vcmp.gt.f32.partialorder %v483, -0.87758255
    %v2086 = vsub.f32 %v294, 0.23971277
    %v2087 = vsub.f32 %v297, 0.23971277
    %v2088 = vsub.f32 %v300, 0.23971277
    %v2089 = vsub.f32 %v303, 0.23971277
    %v2090 = vsub.f32 %v306, 0.23971277
    %v2091 = vsub.f32 %v309, 0.23971277
    %v2092 = vsub.f32 %v312, 0.23971277
    %v2093 = vsub.f32 %v315, 0.23971277
    %v2094 = vsub.f32 %v318, 0.23971277
    %v2095 = vsub.f32 %v321, 0.23971277
    %v2096 = vsub.f32 %v324, 0.23971277
    %v2097 = vsub.f32 %v327, 0.23971277
    %v2098 = vsub.f32 %v330, 0.23971277
    %v2099 = vsub.f32 %v333, 0.23971277
    %v2100 = vsub.f32 %v336, 0.23971277
    %v2101 = vsub.f32 %v339, 0.23971277
    %v2102 = vsub.f32 %v342, 0.23971277
    %v2103 = vsub.f32 %v345, 0.23971277
    %v2104 = vsub.f32 %v348, 0.23971277
    %v2105 = vsub.f32 %v351, 0.23971277
    %v2106 = vsub.f32 %v354, 0.23971277
    %v2107 = vsub.f32 %v357, 0.23971277
    %v2108 = vsub.f32 %v360, 0.23971277
    %v2109 = vsub.f32 %v363, 0.23971277
    %v2110 = vsub.f32 %v366, 0.23971277
    %v2111 = vsub.f32 %v369, 0.23971277
    %v2112 = vsub.f32 %v372, 0.23971277
    %v2113 = vsub.f32 %v375, 0.23971277
    %v2114 = vsub.f32 %v378, 0.23971277
    %v2115 = vsub.f32 %v381, 0.23971277
    %v2116 = vsub.f32 %v384, 0.23971277
    %v2117 = vsub.f32 %v387, 0.23971277
    %v2118 = vsub.f32 %v390, 0.23971277
    %v2119 = vsub.f32 %v393, 0.23971277
    %v2120 = vsub.f32 %v396, 0.23971277
    %v2121 = vsub.f32 %v399, 0.23971277
    %v2122 = vsub.f32 %v402, 0.23971277
    %v2123 = vsub.f32 %v405, 0.23971277
    %v2124 = vsub.f32 %v408, 0.23971277
    %v2125 = vsub.f32 %v411, 0.23971277
    %v2126 = vsub.f32 %v414, 0.23971277
    %v2127 = vsub.f32 %v417, 0.23971277
    %v2128 = vsub.f32 %v420, 0.23971277
    %v2129 = vsub.f32 %v423, 0.23971277
    %v2130 = vsub.f32 %v426, 0.23971277
    %v2131 = vsub.f32 %v429, 0.23971277
    %v2132 = vsub.f32 %v432, 0.23971277
    %v2133 = vsub.f32 %v435, 0.23971277
    %v2134 = vsub.f32 %v438, 0.23971277
    %v2135 = vsub.f32 %v441, 0.23971277
    %v2136 = vsub.f32 %v444, 0.23971277
    %v2137 = vsub.f32 %v447, 0.23971277
    %v2138 = vsub.f32 %v450, 0.23971277
    %v2139 = vsub.f32 %v453, 0.23971277
    %v2140 = vsub.f32 %v456, 0.23971277
    %v2141 = vsub.f32 %v459, 0.23971277
    %v2142 = vsub.f32 %v462, 0.23971277
    %v2143 = vsub.f32 %v465, 0.23971277
    %v2144 = vsub.f32 %v468, 0.23971277
    %v2145 = vsub.f32 %v471, 0.23971277
    %v2146 = vsub.f32 %v474, 0.23971277
    %v2147 = vsub.f32 %v477, 0.23971277
    %v2148 = vsub.f32 %v480, 0.23971277
    %v2149 = vsub.f32 %v483, 0.23971277
    %v2150 = vsel %vm2022, %v1958, %v2086
    %v2151 = vsel %vm2023, %v1959, %v2087
    %v2152 = vsel %vm2024, %v1960, %v2088
    %v2153 = vsel %vm2025, %v1961, %v2089
    %v2154 = vsel %vm2026, %v1962, %v2090
    %v2155 = vsel %vm2027, %v1963, %v2091
    %v2156 = vsel %vm2028, %v1964, %v2092
    %v2157 = vsel %vm2029, %v1965, %v2093
    %v2158 = vsel %vm2030, %v1966, %v2094
    %v2159 = vsel %vm2031, %v1967, %v2095
    %v2160 = vsel %vm2032, %v1968, %v2096
    %v2161 = vsel %vm2033, %v1969, %v2097
    %v2162 = vsel %vm2034, %v1970, %v2098
    %v2163 = vsel %vm2035, %v1971, %v2099
    %v2164 = vsel %vm2036, %v1972, %v2100
    %v2165 = vsel %vm2037, %v1973, %v2101
    %v2166 = vsel %vm2038, %v1974, %v2102
    %v2167 = vsel %vm2039, %v1975, %v2103
    %v2168 = vsel %vm2040, %v1976, %v2104
    %v2169 = vsel %vm2041, %v1977, %v2105
    %v2170 = vsel %vm2042, %v1978, %v2106
    %v2171 = vsel %vm2043, %v1979, %v2107
    %v2172 = vsel %vm2044, %v1980, %v2108
    %v2173 = vsel %vm2045, %v1981, %v2109
    %v2174 = vsel %vm2046, %v1982, %v2110
    %v2175 = vsel %vm2047, %v1983, %v2111
    %v2176 = vsel %vm2048, %v1984, %v2112
    %v2177 = vsel %vm2049, %v1985, %v2113
    %v2178 = vsel %vm2050, %v1986, %v2114
    %v2179 = vsel %vm2051, %v1987, %v2115
    %v2180 = vsel %vm2052, %v1988, %v2116
    %v2181 = vsel %vm2053, %v1989, %v2117
    %v2182 = vsel %vm2054, %v1990, %v2118
    %v2183 = vsel %vm2055, %v1991, %v2119
    %v2184 = vsel %vm2056, %v1992, %v2120
    %v2185 = vsel %vm2057, %v1993, %v2121
    %v2186 = vsel %vm2058, %v1994, %v2122
    %v2187 = vsel %vm2059, %v1995, %v2123
    %v2188 = vsel %vm2060, %v1996, %v2124
    %v2189 = vsel %vm2061, %v1997, %v2125
    %v2190 = vsel %vm2062, %v1998, %v2126
    %v2191 = vsel %vm2063, %v1999, %v2127
    %v2192 = vsel %vm2064, %v2000, %v2128
    %v2193 = vsel %vm2065, %v2001, %v2129
    %v2194 = vsel %vm2066, %v2002, %v2130
    %v2195 = vsel %vm2067, %v2003, %v2131
    %v2196 = vsel %vm2068, %v2004, %v2132
    %v2197 = vsel %vm2069, %v2005, %v2133
    %v2198 = vsel %vm2070, %v2006, %v2134
    %v2199 = vsel %vm2071, %v2007, %v2135
    %v2200 = vsel %vm2072, %v2008, %v2136
    %v2201 = vsel %vm2073, %v2009, %v2137
    %v2202 = vsel %vm2074, %v2010, %v2138
    %v2203 = vsel %vm2075, %v2011, %v2139
    %v2204 = vsel %vm2076, %v2012, %v2140
    %v2205 = vsel %vm2077, %v2013, %v2141
    %v2206 = vsel %vm2078, %v2014, %v2142
    %v2207 = vsel %vm2079, %v2015, %v2143
    %v2208 = vsel %vm2080, %v2016, %v2144
    %v2209 = vsel %vm2081, %v2017, %v2145
    %v2210 = vsel %vm2082, %v2018, %v2146
    %v2211 = vsel %vm2083, %v2019, %v2147
    %v2212 = vsel %vm2084, %v2020, %v2148
    %v2213 = vsel %vm2085, %v2021, %v2149
    %v2214 = vmul.f32 %v2150, 14.285714
    %v2215 = vmul.f32 %v2151, 14.285714
    %v2216 = vmul.f32 %v2152, 14.285714
    %v2217 = vmul.f32 %v2153, 14.285714
    %v2218 = vmul.f32 %v2154, 14.285714
    %v2219 = vmul.f32 %v2155, 14.285714
    %v2220 = vmul.f32 %v2156, 14.285714
    %v2221 = vmul.f32 %v2157, 14.285714
    %v2222 = vmul.f32 %v2158, 14.285714
    %v2223 = vmul.f32 %v2159, 14.285714
    %v2224 = vmul.f32 %v2160, 14.285714
    %v2225 = vmul.f32 %v2161, 14.285714
    %v2226 = vmul.f32 %v2162, 14.285714
    %v2227 = vmul.f32 %v2163, 14.285714
    %v2228 = vmul.f32 %v2164, 14.285714
    %v2229 = vmul.f32 %v2165, 14.285714
    %v2230 = vmul.f32 %v2166, 14.285714
    %v2231 = vmul.f32 %v2167, 14.285714
    %v2232 = vmul.f32 %v2168, 14.285714
    %v2233 = vmul.f32 %v2169, 14.285714
    %v2234 = vmul.f32 %v2170, 14.285714
    %v2235 = vmul.f32 %v2171, 14.285714
    %v2236 = vmul.f32 %v2172, 14.285714
    %v2237 = vmul.f32 %v2173, 14.285714
    %v2238 = vmul.f32 %v2174, 14.285714
    %v2239 = vmul.f32 %v2175, 14.285714
    %v2240 = vmul.f32 %v2176, 14.285714
    %v2241 = vmul.f32 %v2177, 14.285714
    %v2242 = vmul.f32 %v2178, 14.285714
    %v2243 = vmul.f32 %v2179, 14.285714
    %v2244 = vmul.f32 %v2180, 14.285714
    %v2245 = vmul.f32 %v2181, 14.285714
    %v2246 = vmul.f32 %v2182, 14.285714
    %v2247 = vmul.f32 %v2183, 14.285714
    %v2248 = vmul.f32 %v2184, 14.285714
    %v2249 = vmul.f32 %v2185, 14.285714
    %v2250 = vmul.f32 %v2186, 14.285714
    %v2251 = vmul.f32 %v2187, 14.285714
    %v2252 = vmul.f32 %v2188, 14.285714
    %v2253 = vmul.f32 %v2189, 14.285714
    %v2254 = vmul.f32 %v2190, 14.285714
    %v2255 = vmul.f32 %v2191, 14.285714
    %v2256 = vmul.f32 %v2192, 14.285714
    %v2257 = vmul.f32 %v2193, 14.285714
    %v2258 = vmul.f32 %v2194, 14.285714
    %v2259 = vmul.f32 %v2195, 14.285714
    %v2260 = vmul.f32 %v2196, 14.285714
    %v2261 = vmul.f32 %v2197, 14.285714
    %v2262 = vmul.f32 %v2198, 14.285714
    %v2263 = vmul.f32 %v2199, 14.285714
    %v2264 = vmul.f32 %v2200, 14.285714
    %v2265 = vmul.f32 %v2201, 14.285714
    %v2266 = vmul.f32 %v2202, 14.285714
    %v2267 = vmul.f32 %v2203, 14.285714
    %v2268 = vmul.f32 %v2204, 14.285714
    %v2269 = vmul.f32 %v2205, 14.285714
    %v2270 = vmul.f32 %v2206, 14.285714
    %v2271 = vmul.f32 %v2207, 14.285714
    %v2272 = vmul.f32 %v2208, 14.285714
    %v2273 = vmul.f32 %v2209, 14.285714
    %v2274 = vmul.f32 %v2210, 14.285714
    %v2275 = vmul.f32 %v2211, 14.285714
    %v2276 = vmul.f32 %v2212, 14.285714
    %v2277 = vmul.f32 %v2213, 14.285714
    %v2278 = vsel %vm549, %v2214, -inf
    %2279 = vmax.xlane.f32.xlu0 %v2278
    %v2280 = vpop.xlane.xlu0 %2279
    %v2281 = vsel %vm549, %v2215, -inf
    %2282 = vmax.xlane.f32.xlu0 %v2281
    %v2283 = vpop.xlane.xlu0 %2282
    %v2284 = vsel %vm549, %v2216, -inf
    %2285 = vmax.xlane.f32.xlu0 %v2284
    %v2286 = vpop.xlane.xlu0 %2285
    %v2287 = vsel %vm549, %v2217, -inf
    %2288 = vmax.xlane.f32.xlu0 %v2287
    %v2289 = vpop.xlane.xlu0 %2288
    %v2290 = vsel %vm549, %v2218, -inf
    %2291 = vmax.xlane.f32.xlu0 %v2290
    %v2292 = vpop.xlane.xlu0 %2291
    %v2293 = vsel %vm549, %v2219, -inf
    %2294 = vmax.xlane.f32.xlu0 %v2293
    %v2295 = vpop.xlane.xlu0 %2294
    %v2296 = vsel %vm549, %v2220, -inf
    %2297 = vmax.xlane.f32.xlu0 %v2296
    %v2298 = vpop.xlane.xlu0 %2297
    %v2299 = vsel %vm549, %v2221, -inf
    %2300 = vmax.xlane.f32.xlu0 %v2299
    %v2301 = vpop.xlane.xlu0 %2300
    %v2302 = vsel %vm549, %v2222, -inf
    %2303 = vmax.xlane.f32.xlu0 %v2302
    %v2304 = vpop.xlane.xlu0 %2303
    %v2305 = vsel %vm549, %v2223, -inf
    %2306 = vmax.xlane.f32.xlu0 %v2305
    %v2307 = vpop.xlane.xlu0 %2306
    %v2308 = vsel %vm549, %v2224, -inf
    %2309 = vmax.xlane.f32.xlu0 %v2308
    %v2310 = vpop.xlane.xlu0 %2309
    %v2311 = vsel %vm549, %v2225, -inf
    %2312 = vmax.xlane.f32.xlu0 %v2311
    %v2313 = vpop.xlane.xlu0 %2312
    %v2314 = vsel %vm549, %v2226, -inf
    %2315 = vmax.xlane.f32.xlu0 %v2314
    %v2316 = vpop.xlane.xlu0 %2315
    %v2317 = vsel %vm549, %v2227, -inf
    %2318 = vmax.xlane.f32.xlu0 %v2317
    %v2319 = vpop.xlane.xlu0 %2318
    %v2320 = vsel %vm549, %v2228, -inf
    %2321 = vmax.xlane.f32.xlu0 %v2320
    %v2322 = vpop.xlane.xlu0 %2321
    %v2323 = vsel %vm549, %v2229, -inf
    %2324 = vmax.xlane.f32.xlu0 %v2323
    %v2325 = vpop.xlane.xlu0 %2324
    %v2326 = vsel %vm549, %v2230, -inf
    %2327 = vmax.xlane.f32.xlu0 %v2326
    %v2328 = vpop.xlane.xlu0 %2327
    %v2329 = vsel %vm549, %v2231, -inf
    %2330 = vmax.xlane.f32.xlu0 %v2329
    %v2331 = vpop.xlane.xlu0 %2330
    %v2332 = vsel %vm549, %v2232, -inf
    %2333 = vmax.xlane.f32.xlu0 %v2332
    %v2334 = vpop.xlane.xlu0 %2333
    %v2335 = vsel %vm549, %v2233, -inf
    %2336 = vmax.xlane.f32.xlu0 %v2335
    %v2337 = vpop.xlane.xlu0 %2336
    %v2338 = vsel %vm549, %v2234, -inf
    %2339 = vmax.xlane.f32.xlu0 %v2338
    %v2340 = vpop.xlane.xlu0 %2339
    %v2341 = vsel %vm549, %v2235, -inf
    %2342 = vmax.xlane.f32.xlu0 %v2341
    %v2343 = vpop.xlane.xlu0 %2342
    %v2344 = vsel %vm549, %v2236, -inf
    %2345 = vmax.xlane.f32.xlu0 %v2344
    %v2346 = vpop.xlane.xlu0 %2345
    %v2347 = vsel %vm549, %v2237, -inf
    %2348 = vmax.xlane.f32.xlu0 %v2347
    %v2349 = vpop.xlane.xlu0 %2348
    %v2350 = vsel %vm549, %v2238, -inf
    %2351 = vmax.xlane.f32.xlu0 %v2350
    %v2352 = vpop.xlane.xlu0 %2351
    %v2353 = vsel %vm549, %v2239, -inf
    %2354 = vmax.xlane.f32.xlu0 %v2353
    %v2355 = vpop.xlane.xlu0 %2354
    %v2356 = vsel %vm549, %v2240, -inf
    %2357 = vmax.xlane.f32.xlu0 %v2356
    %v2358 = vpop.xlane.xlu0 %2357
    %v2359 = vsel %vm549, %v2241, -inf
    %2360 = vmax.xlane.f32.xlu0 %v2359
    %v2361 = vpop.xlane.xlu0 %2360
    %v2362 = vsel %vm549, %v2242, -inf
    %2363 = vmax.xlane.f32.xlu0 %v2362
    %v2364 = vpop.xlane.xlu0 %2363
    %v2365 = vsel %vm549, %v2243, -inf
    %2366 = vmax.xlane.f32.xlu0 %v2365
    %v2367 = vpop.xlane.xlu0 %2366
    %v2368 = vsel %vm549, %v2244, -inf
    %2369 = vmax.xlane.f32.xlu0 %v2368
    %v2370 = vpop.xlane.xlu0 %2369
    %v2371 = vsel %vm549, %v2245, -inf
    %2372 = vmax.xlane.f32.xlu0 %v2371
    %v2373 = vpop.xlane.xlu0 %2372
    %v2374 = vsel %vm549, %v2246, -inf
    %2375 = vmax.xlane.f32.xlu0 %v2374
    %v2376 = vpop.xlane.xlu0 %2375
    %v2377 = vsel %vm549, %v2247, -inf
    %2378 = vmax.xlane.f32.xlu0 %v2377
    %v2379 = vpop.xlane.xlu0 %2378
    %v2380 = vsel %vm549, %v2248, -inf
    %2381 = vmax.xlane.f32.xlu0 %v2380
    %v2382 = vpop.xlane.xlu0 %2381
    %v2383 = vsel %vm549, %v2249, -inf
    %2384 = vmax.xlane.f32.xlu0 %v2383
    %v2385 = vpop.xlane.xlu0 %2384
    %v2386 = vsel %vm549, %v2250, -inf
    %2387 = vmax.xlane.f32.xlu0 %v2386
    %v2388 = vpop.xlane.xlu0 %2387
    %v2389 = vsel %vm549, %v2251, -inf
    %2390 = vmax.xlane.f32.xlu0 %v2389
    %v2391 = vpop.xlane.xlu0 %2390
    %v2392 = vsel %vm549, %v2252, -inf
    %2393 = vmax.xlane.f32.xlu0 %v2392
    %v2394 = vpop.xlane.xlu0 %2393
    %v2395 = vsel %vm549, %v2253, -inf
    %2396 = vmax.xlane.f32.xlu0 %v2395
    %v2397 = vpop.xlane.xlu0 %2396
    %v2398 = vsel %vm549, %v2254, -inf
    %2399 = vmax.xlane.f32.xlu0 %v2398
    %v2400 = vpop.xlane.xlu0 %2399
    %v2401 = vsel %vm549, %v2255, -inf
    %2402 = vmax.xlane.f32.xlu0 %v2401
    %v2403 = vpop.xlane.xlu0 %2402
    %v2404 = vsel %vm549, %v2256, -inf
    %2405 = vmax.xlane.f32.xlu0 %v2404
    %v2406 = vpop.xlane.xlu0 %2405
    %v2407 = vsel %vm549, %v2257, -inf
    %2408 = vmax.xlane.f32.xlu0 %v2407
    %v2409 = vpop.xlane.xlu0 %2408
    %v2410 = vsel %vm549, %v2258, -inf
    %2411 = vmax.xlane.f32.xlu0 %v2410
    %v2412 = vpop.xlane.xlu0 %2411
    %v2413 = vsel %vm549, %v2259, -inf
    %2414 = vmax.xlane.f32.xlu0 %v2413
    %v2415 = vpop.xlane.xlu0 %2414
    %v2416 = vsel %vm549, %v2260, -inf
    %2417 = vmax.xlane.f32.xlu0 %v2416
    %v2418 = vpop.xlane.xlu0 %2417
    %v2419 = vsel %vm549, %v2261, -inf
    %2420 = vmax.xlane.f32.xlu0 %v2419
    %v2421 = vpop.xlane.xlu0 %2420
    %v2422 = vsel %vm549, %v2262, -inf
    %2423 = vmax.xlane.f32.xlu0 %v2422
    %v2424 = vpop.xlane.xlu0 %2423
    %v2425 = vsel %vm549, %v2263, -inf
    %2426 = vmax.xlane.f32.xlu0 %v2425
    %v2427 = vpop.xlane.xlu0 %2426
    %v2428 = vsel %vm549, %v2264, -inf
    %2429 = vmax.xlane.f32.xlu0 %v2428
    %v2430 = vpop.xlane.xlu0 %2429
    %v2431 = vsel %vm549, %v2265, -inf
    %2432 = vmax.xlane.f32.xlu0 %v2431
    %v2433 = vpop.xlane.xlu0 %2432
    %v2434 = vsel %vm549, %v2266, -inf
    %2435 = vmax.xlane.f32.xlu0 %v2434
    %v2436 = vpop.xlane.xlu0 %2435
    %v2437 = vsel %vm549, %v2267, -inf
    %2438 = vmax.xlane.f32.xlu0 %v2437
    %v2439 = vpop.xlane.xlu0 %2438
    %v2440 = vsel %vm549, %v2268, -inf
    %2441 = vmax.xlane.f32.xlu0 %v2440
    %v2442 = vpop.xlane.xlu0 %2441
    %v2443 = vsel %vm549, %v2269, -inf
    %2444 = vmax.xlane.f32.xlu0 %v2443
    %v2445 = vpop.xlane.xlu0 %2444
    %v2446 = vsel %vm549, %v2270, -inf
    %2447 = vmax.xlane.f32.xlu0 %v2446
    %v2448 = vpop.xlane.xlu0 %2447
    %v2449 = vsel %vm549, %v2271, -inf
    %2450 = vmax.xlane.f32.xlu0 %v2449
    %v2451 = vpop.xlane.xlu0 %2450
    %v2452 = vsel %vm549, %v2272, -inf
    %2453 = vmax.xlane.f32.xlu0 %v2452
    %v2454 = vpop.xlane.xlu0 %2453
    %v2455 = vsel %vm549, %v2273, -inf
    %2456 = vmax.xlane.f32.xlu0 %v2455
    %v2457 = vpop.xlane.xlu0 %2456
    %v2458 = vsel %vm549, %v2274, -inf
    %2459 = vmax.xlane.f32.xlu0 %v2458
    %v2460 = vpop.xlane.xlu0 %2459
    %v2461 = vsel %vm549, %v2275, -inf
    %2462 = vmax.xlane.f32.xlu0 %v2461
    %v2463 = vpop.xlane.xlu0 %2462
    %v2464 = vsel %vm549, %v2276, -inf
    %2465 = vmax.xlane.f32.xlu0 %v2464
    %v2466 = vpop.xlane.xlu0 %2465
    %v2467 = vsel %vm549, %v2277, -inf
    %2468 = vmax.xlane.f32.xlu0 %v2467
    %v2469 = vpop.xlane.xlu0 %2468
    %v2470 = vsub.f32 %v2214, %v2280
    %v2471 = vsub.f32 %v2215, %v2283
    %v2472 = vsub.f32 %v2216, %v2286
    %v2473 = vsub.f32 %v2217, %v2289
    %v2474 = vsub.f32 %v2218, %v2292
    %v2475 = vsub.f32 %v2219, %v2295
    %v2476 = vsub.f32 %v2220, %v2298
    %v2477 = vsub.f32 %v2221, %v2301
    %v2478 = vsub.f32 %v2222, %v2304
    %v2479 = vsub.f32 %v2223, %v2307
    %v2480 = vsub.f32 %v2224, %v2310
    %v2481 = vsub.f32 %v2225, %v2313
    %v2482 = vsub.f32 %v2226, %v2316
    %v2483 = vsub.f32 %v2227, %v2319
    %v2484 = vsub.f32 %v2228, %v2322
    %v2485 = vsub.f32 %v2229, %v2325
    %v2486 = vsub.f32 %v2230, %v2328
    %v2487 = vsub.f32 %v2231, %v2331
    %v2488 = vsub.f32 %v2232, %v2334
    %v2489 = vsub.f32 %v2233, %v2337
    %v2490 = vsub.f32 %v2234, %v2340
    %v2491 = vsub.f32 %v2235, %v2343
    %v2492 = vsub.f32 %v2236, %v2346
    %v2493 = vsub.f32 %v2237, %v2349
    %v2494 = vsub.f32 %v2238, %v2352
    %v2495 = vsub.f32 %v2239, %v2355
    %v2496 = vsub.f32 %v2240, %v2358
    %v2497 = vsub.f32 %v2241, %v2361
    %v2498 = vsub.f32 %v2242, %v2364
    %v2499 = vsub.f32 %v2243, %v2367
    %v2500 = vsub.f32 %v2244, %v2370
    %v2501 = vsub.f32 %v2245, %v2373
    %v2502 = vsub.f32 %v2246, %v2376
    %v2503 = vsub.f32 %v2247, %v2379
    %v2504 = vsub.f32 %v2248, %v2382
    %v2505 = vsub.f32 %v2249, %v2385
    %v2506 = vsub.f32 %v2250, %v2388
    %v2507 = vsub.f32 %v2251, %v2391
    %v2508 = vsub.f32 %v2252, %v2394
    %v2509 = vsub.f32 %v2253, %v2397
    %v2510 = vsub.f32 %v2254, %v2400
    %v2511 = vsub.f32 %v2255, %v2403
    %v2512 = vsub.f32 %v2256, %v2406
    %v2513 = vsub.f32 %v2257, %v2409
    %v2514 = vsub.f32 %v2258, %v2412
    %v2515 = vsub.f32 %v2259, %v2415
    %v2516 = vsub.f32 %v2260, %v2418
    %v2517 = vsub.f32 %v2261, %v2421
    %v2518 = vsub.f32 %v2262, %v2424
    %v2519 = vsub.f32 %v2263, %v2427
    %v2520 = vsub.f32 %v2264, %v2430
    %v2521 = vsub.f32 %v2265, %v2433
    %v2522 = vsub.f32 %v2266, %v2436
    %v2523 = vsub.f32 %v2267, %v2439
    %v2524 = vsub.f32 %v2268, %v2442
    %v2525 = vsub.f32 %v2269, %v2445
    %v2526 = vsub.f32 %v2270, %v2448
    %v2527 = vsub.f32 %v2271, %v2451
    %v2528 = vsub.f32 %v2272, %v2454
    %v2529 = vsub.f32 %v2273, %v2457
    %v2530 = vsub.f32 %v2274, %v2460
    %v2531 = vsub.f32 %v2275, %v2463
    %v2532 = vsub.f32 %v2276, %v2466
    %v2533 = vsub.f32 %v2277, %v2469
    %v2534 = vlaneseq
    %v2535 = vand.u32 %v2534, 127
    %v2536 = vld [vmem:[%s1] sm:$0xff]
    %v2537 = vld [vmem:[%s1 + $0x8] sm:$0xff]
    %v2538 = vld [vmem:[%s1 + $0x10] sm:$0xff]
    %v2539 = vld [vmem:[%s1 + $0x18] sm:$0xff]
    %v2540 = vld [vmem:[%s1 + $0x20] sm:$0xff]
    %v2541 = vld [vmem:[%s1 + $0x28] sm:$0xff]
    %v2542 = vld [vmem:[%s1 + $0x30] sm:$0xff]
    %v2543 = vld [vmem:[%s1 + $0x38] sm:$0xff]
    %v2544 = vld [vmem:[%s1 + $0x40] sm:$0xff]
    %v2545 = vld [vmem:[%s1 + $0x48] sm:$0xff]
    %v2546 = vld [vmem:[%s1 + $0x50] sm:$0xff]
    %v2547 = vld [vmem:[%s1 + $0x58] sm:$0xff]
    %v2548 = vld [vmem:[%s1 + $0x60] sm:$0xff]
    %v2549 = vld [vmem:[%s1 + $0x68] sm:$0xff]
    %v2550 = vld [vmem:[%s1 + $0x70] sm:$0xff]
    %v2551 = vld [vmem:[%s1 + $0x78] sm:$0xff]
    %v2552 = vld [vmem:[%s1 + $0x80] sm:$0xff]
    %v2553 = vld [vmem:[%s1 + $0x88] sm:$0xff]
    %v2554 = vld [vmem:[%s1 + $0x90] sm:$0xff]
    %v2555 = vld [vmem:[%s1 + $0x98] sm:$0xff]
    %v2556 = vld [vmem:[%s1 + $0xa0] sm:$0xff]
    %v2557 = vld [vmem:[%s1 + $0xa8] sm:$0xff]
    %v2558 = vld [vmem:[%s1 + $0xb0] sm:$0xff]
    %v2559 = vld [vmem:[%s1 + $0xb8] sm:$0xff]
    %v2560 = vld [vmem:[%s1 + $0xc0] sm:$0xff]
    %v2561 = vld [vmem:[%s1 + $0xc8] sm:$0xff]
    %v2562 = vld [vmem:[%s1 + $0xd0] sm:$0xff]
    %v2563 = vld [vmem:[%s1 + $0xd8] sm:$0xff]
    %v2564 = vld [vmem:[%s1 + $0xe0] sm:$0xff]
    %v2565 = vld [vmem:[%s1 + $0xe8] sm:$0xff]
    %v2566 = vld [vmem:[%s1 + $0xf0] sm:$0xff]
    %v2567 = vld [vmem:[%s1 + $0xf8] sm:$0xff]
    %v2568 = vld [vmem:[%s1 + $0x100] sm:$0xff]
    %v2569 = vld [vmem:[%s1 + $0x108] sm:$0xff]
    %v2570 = vld [vmem:[%s1 + $0x110] sm:$0xff]
    %v2571 = vld [vmem:[%s1 + $0x118] sm:$0xff]
    %v2572 = vld [vmem:[%s1 + $0x120] sm:$0xff]
    %v2573 = vld [vmem:[%s1 + $0x128] sm:$0xff]
    %v2574 = vld [vmem:[%s1 + $0x130] sm:$0xff]
    %v2575 = vld [vmem:[%s1 + $0x138] sm:$0xff]
    %v2576 = vld [vmem:[%s1 + $0x140] sm:$0xff]
    %v2577 = vld [vmem:[%s1 + $0x148] sm:$0xff]
    %v2578 = vld [vmem:[%s1 + $0x150] sm:$0xff]
    %v2579 = vld [vmem:[%s1 + $0x158] sm:$0xff]
    %v2580 = vld [vmem:[%s1 + $0x160] sm:$0xff]
    %v2581 = vld [vmem:[%s1 + $0x168] sm:$0xff]
    %v2582 = vld [vmem:[%s1 + $0x170] sm:$0xff]
    %v2583 = vld [vmem:[%s1 + $0x178] sm:$0xff]
    %v2584 = vld [vmem:[%s1 + $0x180] sm:$0xff]
    %v2585 = vld [vmem:[%s1 + $0x188] sm:$0xff]
    %v2586 = vld [vmem:[%s1 + $0x190] sm:$0xff]
    %v2587 = vld [vmem:[%s1 + $0x198] sm:$0xff]
    %v2588 = vld [vmem:[%s1 + $0x1a0] sm:$0xff]
    %v2589 = vld [vmem:[%s1 + $0x1a8] sm:$0xff]
    %v2590 = vld [vmem:[%s1 + $0x1b0] sm:$0xff]
    %v2591 = vld [vmem:[%s1 + $0x1b8] sm:$0xff]
    %v2592 = vld [vmem:[%s1 + $0x1c0] sm:$0xff]
    %v2593 = vld [vmem:[%s1 + $0x1c8] sm:$0xff]
    %v2594 = vld [vmem:[%s1 + $0x1d0] sm:$0xff]
    %v2595 = vld [vmem:[%s1 + $0x1d8] sm:$0xff]
    %v2596 = vld [vmem:[%s1 + $0x1e0] sm:$0xff]
    %v2597 = vld [vmem:[%s1 + $0x1e8] sm:$0xff]
    %v2598 = vld [vmem:[%s1 + $0x1f0] sm:$0xff]
    %v2599 = vld [vmem:[%s1 + $0x1f8] sm:$0xff]
    %2600 = vset.pattern.permute.xlu0 0
    %2601 = vperm.xlu0 %2600, %v2536
    %v2602 = vpop.permute.xlu0 %2601
    %2603 = vset.pattern.permute.xlu0 0
    %2604 = vperm.xlu0 %2603, %v2537
    %v2605 = vpop.permute.xlu0 %2604
    %2606 = vset.pattern.permute.xlu0 0
    %2607 = vperm.xlu0 %2606, %v2538
    %v2608 = vpop.permute.xlu0 %2607
    %2609 = vset.pattern.permute.xlu0 0
    %2610 = vperm.xlu0 %2609, %v2539
    %v2611 = vpop.permute.xlu0 %2610
    %2612 = vset.pattern.permute.xlu0 0
    %2613 = vperm.xlu0 %2612, %v2540
    %v2614 = vpop.permute.xlu0 %2613
    %2615 = vset.pattern.permute.xlu0 0
    %2616 = vperm.xlu0 %2615, %v2541
    %v2617 = vpop.permute.xlu0 %2616
    %2618 = vset.pattern.permute.xlu0 0
    %2619 = vperm.xlu0 %2618, %v2542
    %v2620 = vpop.permute.xlu0 %2619
    %2621 = vset.pattern.permute.xlu0 0
    %2622 = vperm.xlu0 %2621, %v2543
    %v2623 = vpop.permute.xlu0 %2622
    %2624 = vset.pattern.permute.xlu0 0
    %2625 = vperm.xlu0 %2624, %v2544
    %v2626 = vpop.permute.xlu0 %2625
    %2627 = vset.pattern.permute.xlu0 0
    %2628 = vperm.xlu0 %2627, %v2545
    %v2629 = vpop.permute.xlu0 %2628
    %2630 = vset.pattern.permute.xlu0 0
    %2631 = vperm.xlu0 %2630, %v2546
    %v2632 = vpop.permute.xlu0 %2631
    %2633 = vset.pattern.permute.xlu0 0
    %2634 = vperm.xlu0 %2633, %v2547
    %v2635 = vpop.permute.xlu0 %2634
    %2636 = vset.pattern.permute.xlu0 0
    %2637 = vperm.xlu0 %2636, %v2548
    %v2638 = vpop.permute.xlu0 %2637
    %2639 = vset.pattern.permute.xlu0 0
    %2640 = vperm.xlu0 %2639, %v2549
    %v2641 = vpop.permute.xlu0 %2640
    %2642 = vset.pattern.permute.xlu0 0
    %2643 = vperm.xlu0 %2642, %v2550
    %v2644 = vpop.permute.xlu0 %2643
    %2645 = vset.pattern.permute.xlu0 0
    %2646 = vperm.xlu0 %2645, %v2551
    %v2647 = vpop.permute.xlu0 %2646
    %2648 = vset.pattern.permute.xlu0 0
    %2649 = vperm.xlu0 %2648, %v2552
    %v2650 = vpop.permute.xlu0 %2649
    %2651 = vset.pattern.permute.xlu0 0
    %2652 = vperm.xlu0 %2651, %v2553
    %v2653 = vpop.permute.xlu0 %2652
    %2654 = vset.pattern.permute.xlu0 0
    %2655 = vperm.xlu0 %2654, %v2554
    %v2656 = vpop.permute.xlu0 %2655
    %2657 = vset.pattern.permute.xlu0 0
    %2658 = vperm.xlu0 %2657, %v2555
    %v2659 = vpop.permute.xlu0 %2658
    %2660 = vset.pattern.permute.xlu0 0
    %2661 = vperm.xlu0 %2660, %v2556
    %v2662 = vpop.permute.xlu0 %2661
    %2663 = vset.pattern.permute.xlu0 0
    %2664 = vperm.xlu0 %2663, %v2557
    %v2665 = vpop.permute.xlu0 %2664
    %2666 = vset.pattern.permute.xlu0 0
    %2667 = vperm.xlu0 %2666, %v2558
    %v2668 = vpop.permute.xlu0 %2667
    %2669 = vset.pattern.permute.xlu0 0
    %2670 = vperm.xlu0 %2669, %v2559
    %v2671 = vpop.permute.xlu0 %2670
    %2672 = vset.pattern.permute.xlu0 0
    %2673 = vperm.xlu0 %2672, %v2560
    %v2674 = vpop.permute.xlu0 %2673
    %2675 = vset.pattern.permute.xlu0 0
    %2676 = vperm.xlu0 %2675, %v2561
    %v2677 = vpop.permute.xlu0 %2676
    %2678 = vset.pattern.permute.xlu0 0
    %2679 = vperm.xlu0 %2678, %v2562
    %v2680 = vpop.permute.xlu0 %2679
    %2681 = vset.pattern.permute.xlu0 0
    %2682 = vperm.xlu0 %2681, %v2563
    %v2683 = vpop.permute.xlu0 %2682
    %2684 = vset.pattern.permute.xlu0 0
    %2685 = vperm.xlu0 %2684, %v2564
    %v2686 = vpop.permute.xlu0 %2685
    %2687 = vset.pattern.permute.xlu0 0
    %2688 = vperm.xlu0 %2687, %v2565
    %v2689 = vpop.permute.xlu0 %2688
    %2690 = vset.pattern.permute.xlu0 0
    %2691 = vperm.xlu0 %2690, %v2566
    %v2692 = vpop.permute.xlu0 %2691
    %2693 = vset.pattern.permute.xlu0 0
    %2694 = vperm.xlu0 %2693, %v2567
    %v2695 = vpop.permute.xlu0 %2694
    %2696 = vset.pattern.permute.xlu0 0
    %2697 = vperm.xlu0 %2696, %v2568
    %v2698 = vpop.permute.xlu0 %2697
    %2699 = vset.pattern.permute.xlu0 0
    %2700 = vperm.xlu0 %2699, %v2569
    %v2701 = vpop.permute.xlu0 %2700
    %2702 = vset.pattern.permute.xlu0 0
    %2703 = vperm.xlu0 %2702, %v2570
    %v2704 = vpop.permute.xlu0 %2703
    %2705 = vset.pattern.permute.xlu0 0
    %2706 = vperm.xlu0 %2705, %v2571
    %v2707 = vpop.permute.xlu0 %2706
    %2708 = vset.pattern.permute.xlu0 0
    %2709 = vperm.xlu0 %2708, %v2572
    %v2710 = vpop.permute.xlu0 %2709
    %2711 = vset.pattern.permute.xlu0 0
    %2712 = vperm.xlu0 %2711, %v2573
    %v2713 = vpop.permute.xlu0 %2712
    %2714 = vset.pattern.permute.xlu0 0
    %2715 = vperm.xlu0 %2714, %v2574
    %v2716 = vpop.permute.xlu0 %2715
    %2717 = vset.pattern.permute.xlu0 0
    %2718 = vperm.xlu0 %2717, %v2575
    %v2719 = vpop.permute.xlu0 %2718
    %2720 = vset.pattern.permute.xlu0 0
    %2721 = vperm.xlu0 %2720, %v2576
    %v2722 = vpop.permute.xlu0 %2721
    %2723 = vset.pattern.permute.xlu0 0
    %2724 = vperm.xlu0 %2723, %v2577
    %v2725 = vpop.permute.xlu0 %2724
    %2726 = vset.pattern.permute.xlu0 0
    %2727 = vperm.xlu0 %2726, %v2578
    %v2728 = vpop.permute.xlu0 %2727
    %2729 = vset.pattern.permute.xlu0 0
    %2730 = vperm.xlu0 %2729, %v2579
    %v2731 = vpop.permute.xlu0 %2730
    %2732 = vset.pattern.permute.xlu0 0
    %2733 = vperm.xlu0 %2732, %v2580
    %v2734 = vpop.permute.xlu0 %2733
    %2735 = vset.pattern.permute.xlu0 0
    %2736 = vperm.xlu0 %2735, %v2581
    %v2737 = vpop.permute.xlu0 %2736
    %2738 = vset.pattern.permute.xlu0 0
    %2739 = vperm.xlu0 %2738, %v2582
    %v2740 = vpop.permute.xlu0 %2739
    %2741 = vset.pattern.permute.xlu0 0
    %2742 = vperm.xlu0 %2741, %v2583
    %v2743 = vpop.permute.xlu0 %2742
    %2744 = vset.pattern.permute.xlu0 0
    %2745 = vperm.xlu0 %2744, %v2584
    %v2746 = vpop.permute.xlu0 %2745
    %2747 = vset.pattern.permute.xlu0 0
    %2748 = vperm.xlu0 %2747, %v2585
    %v2749 = vpop.permute.xlu0 %2748
    %2750 = vset.pattern.permute.xlu0 0
    %2751 = vperm.xlu0 %2750, %v2586
    %v2752 = vpop.permute.xlu0 %2751
    %2753 = vset.pattern.permute.xlu0 0
    %2754 = vperm.xlu0 %2753, %v2587
    %v2755 = vpop.permute.xlu0 %2754
    %2756 = vset.pattern.permute.xlu0 0
    %2757 = vperm.xlu0 %2756, %v2588
    %v2758 = vpop.permute.xlu0 %2757
    %2759 = vset.pattern.permute.xlu0 0
    %2760 = vperm.xlu0 %2759, %v2589
    %v2761 = vpop.permute.xlu0 %2760
    %2762 = vset.pattern.permute.xlu0 0
    %2763 = vperm.xlu0 %2762, %v2590
    %v2764 = vpop.permute.xlu0 %2763
    %2765 = vset.pattern.permute.xlu0 0
    %2766 = vperm.xlu0 %2765, %v2591
    %v2767 = vpop.permute.xlu0 %2766
    %2768 = vset.pattern.permute.xlu0 0
    %2769 = vperm.xlu0 %2768, %v2592
    %v2770 = vpop.permute.xlu0 %2769
    %2771 = vset.pattern.permute.xlu0 0
    %2772 = vperm.xlu0 %2771, %v2593
    %v2773 = vpop.permute.xlu0 %2772
    %2774 = vset.pattern.permute.xlu0 0
    %2775 = vperm.xlu0 %2774, %v2594
    %v2776 = vpop.permute.xlu0 %2775
    %2777 = vset.pattern.permute.xlu0 0
    %2778 = vperm.xlu0 %2777, %v2595
    %v2779 = vpop.permute.xlu0 %2778
    %2780 = vset.pattern.permute.xlu0 0
    %2781 = vperm.xlu0 %2780, %v2596
    %v2782 = vpop.permute.xlu0 %2781
    %2783 = vset.pattern.permute.xlu0 0
    %2784 = vperm.xlu0 %2783, %v2597
    %v2785 = vpop.permute.xlu0 %2784
    %2786 = vset.pattern.permute.xlu0 0
    %2787 = vperm.xlu0 %2786, %v2598
    %v2788 = vpop.permute.xlu0 %2787
    %2789 = vset.pattern.permute.xlu0 0
    %2790 = vperm.xlu0 %2789, %v2599
    %v2791 = vpop.permute.xlu0 %2790
    %vm2792 = vcmp.eq.s32.totalorder %v2602, %v2535
    %vm2793 = vcmp.eq.s32.totalorder %v2605, %v2535
    %vm2794 = vcmp.eq.s32.totalorder %v2608, %v2535
    %vm2795 = vcmp.eq.s32.totalorder %v2611, %v2535
    %vm2796 = vcmp.eq.s32.totalorder %v2614, %v2535
    %vm2797 = vcmp.eq.s32.totalorder %v2617, %v2535
    %vm2798 = vcmp.eq.s32.totalorder %v2620, %v2535
    %vm2799 = vcmp.eq.s32.totalorder %v2623, %v2535
    %vm2800 = vcmp.eq.s32.totalorder %v2626, %v2535
    %vm2801 = vcmp.eq.s32.totalorder %v2629, %v2535
    %vm2802 = vcmp.eq.s32.totalorder %v2632, %v2535
    %vm2803 = vcmp.eq.s32.totalorder %v2635, %v2535
    %vm2804 = vcmp.eq.s32.totalorder %v2638, %v2535
    %vm2805 = vcmp.eq.s32.totalorder %v2641, %v2535
    %vm2806 = vcmp.eq.s32.totalorder %v2644, %v2535
    %vm2807 = vcmp.eq.s32.totalorder %v2647, %v2535
    %vm2808 = vcmp.eq.s32.totalorder %v2650, %v2535
    %vm2809 = vcmp.eq.s32.totalorder %v2653, %v2535
    %vm2810 = vcmp.eq.s32.totalorder %v2656, %v2535
    %vm2811 = vcmp.eq.s32.totalorder %v2659, %v2535
    %vm2812 = vcmp.eq.s32.totalorder %v2662, %v2535
    %vm2813 = vcmp.eq.s32.totalorder %v2665, %v2535
    %vm2814 = vcmp.eq.s32.totalorder %v2668, %v2535
    %vm2815 = vcmp.eq.s32.totalorder %v2671, %v2535
    %vm2816 = vcmp.eq.s32.totalorder %v2674, %v2535
    %vm2817 = vcmp.eq.s32.totalorder %v2677, %v2535
    %vm2818 = vcmp.eq.s32.totalorder %v2680, %v2535
    %vm2819 = vcmp.eq.s32.totalorder %v2683, %v2535
    %vm2820 = vcmp.eq.s32.totalorder %v2686, %v2535
    %vm2821 = vcmp.eq.s32.totalorder %v2689, %v2535
    %vm2822 = vcmp.eq.s32.totalorder %v2692, %v2535
    %vm2823 = vcmp.eq.s32.totalorder %v2695, %v2535
    %vm2824 = vcmp.eq.s32.totalorder %v2698, %v2535
    %vm2825 = vcmp.eq.s32.totalorder %v2701, %v2535
    %vm2826 = vcmp.eq.s32.totalorder %v2704, %v2535
    %vm2827 = vcmp.eq.s32.totalorder %v2707, %v2535
    %vm2828 = vcmp.eq.s32.totalorder %v2710, %v2535
    %vm2829 = vcmp.eq.s32.totalorder %v2713, %v2535
    %vm2830 = vcmp.eq.s32.totalorder %v2716, %v2535
    %vm2831 = vcmp.eq.s32.totalorder %v2719, %v2535
    %vm2832 = vcmp.eq.s32.totalorder %v2722, %v2535
    %vm2833 = vcmp.eq.s32.totalorder %v2725, %v2535
    %vm2834 = vcmp.eq.s32.totalorder %v2728, %v2535
    %vm2835 = vcmp.eq.s32.totalorder %v2731, %v2535
    %vm2836 = vcmp.eq.s32.totalorder %v2734, %v2535
    %vm2837 = vcmp.eq.s32.totalorder %v2737, %v2535
    %vm2838 = vcmp.eq.s32.totalorder %v2740, %v2535
    %vm2839 = vcmp.eq.s32.totalorder %v2743, %v2535
    %vm2840 = vcmp.eq.s32.totalorder %v2746, %v2535
    %vm2841 = vcmp.eq.s32.totalorder %v2749, %v2535
    %vm2842 = vcmp.eq.s32.totalorder %v2752, %v2535
    %vm2843 = vcmp.eq.s32.totalorder %v2755, %v2535
    %vm2844 = vcmp.eq.s32.totalorder %v2758, %v2535
    %vm2845 = vcmp.eq.s32.totalorder %v2761, %v2535
    %vm2846 = vcmp.eq.s32.totalorder %v2764, %v2535
    %vm2847 = vcmp.eq.s32.totalorder %v2767, %v2535
    %vm2848 = vcmp.eq.s32.totalorder %v2770, %v2535
    %vm2849 = vcmp.eq.s32.totalorder %v2773, %v2535
    %vm2850 = vcmp.eq.s32.totalorder %v2776, %v2535
    %vm2851 = vcmp.eq.s32.totalorder %v2779, %v2535
    %vm2852 = vcmp.eq.s32.totalorder %v2782, %v2535
    %vm2853 = vcmp.eq.s32.totalorder %v2785, %v2535
    %vm2854 = vcmp.eq.s32.totalorder %v2788, %v2535
    %vm2855 = vcmp.eq.s32.totalorder %v2791, %v2535
    %v2856 = vsel %vm2792, 1, 0
    %v2857 = vsel %vm2793, 1, 0
    %v2858 = vsel %vm2794, 1, 0
    %v2859 = vsel %vm2795, 1, 0
    %v2860 = vsel %vm2796, 1, 0
    %v2861 = vsel %vm2797, 1, 0
    %v2862 = vsel %vm2798, 1, 0
    %v2863 = vsel %vm2799, 1, 0
    %v2864 = vsel %vm2800, 1, 0
    %v2865 = vsel %vm2801, 1, 0
    %v2866 = vsel %vm2802, 1, 0
    %v2867 = vsel %vm2803, 1, 0
    %v2868 = vsel %vm2804, 1, 0
    %v2869 = vsel %vm2805, 1, 0
    %v2870 = vsel %vm2806, 1, 0
    %v2871 = vsel %vm2807, 1, 0
    %v2872 = vsel %vm2808, 1, 0
    %v2873 = vsel %vm2809, 1, 0
    %v2874 = vsel %vm2810, 1, 0
    %v2875 = vsel %vm2811, 1, 0
    %v2876 = vsel %vm2812, 1, 0
    %v2877 = vsel %vm2813, 1, 0
    %v2878 = vsel %vm2814, 1, 0
    %v2879 = vsel %vm2815, 1, 0
    %v2880 = vsel %vm2816, 1, 0
    %v2881 = vsel %vm2817, 1, 0
    %v2882 = vsel %vm2818, 1, 0
    %v2883 = vsel %vm2819, 1, 0
    %v2884 = vsel %vm2820, 1, 0
    %v2885 = vsel %vm2821, 1, 0
    %v2886 = vsel %vm2822, 1, 0
    %v2887 = vsel %vm2823, 1, 0
    %v2888 = vsel %vm2824, 1, 0
    %v2889 = vsel %vm2825, 1, 0
    %v2890 = vsel %vm2826, 1, 0
    %v2891 = vsel %vm2827, 1, 0
    %v2892 = vsel %vm2828, 1, 0
    %v2893 = vsel %vm2829, 1, 0
    %v2894 = vsel %vm2830, 1, 0
    %v2895 = vsel %vm2831, 1, 0
    %v2896 = vsel %vm2832, 1, 0
    %v2897 = vsel %vm2833, 1, 0
    %v2898 = vsel %vm2834, 1, 0
    %v2899 = vsel %vm2835, 1, 0
    %v2900 = vsel %vm2836, 1, 0
    %v2901 = vsel %vm2837, 1, 0
    %v2902 = vsel %vm2838, 1, 0
    %v2903 = vsel %vm2839, 1, 0
    %v2904 = vsel %vm2840, 1, 0
    %v2905 = vsel %vm2841, 1, 0
    %v2906 = vsel %vm2842, 1, 0
    %v2907 = vsel %vm2843, 1, 0
    %v2908 = vsel %vm2844, 1, 0
    %v2909 = vsel %vm2845, 1, 0
    %v2910 = vsel %vm2846, 1, 0
    %v2911 = vsel %vm2847, 1, 0
    %v2912 = vsel %vm2848, 1, 0
    %v2913 = vsel %vm2849, 1, 0
    %v2914 = vsel %vm2850, 1, 0
    %v2915 = vsel %vm2851, 1, 0
    %v2916 = vsel %vm2852, 1, 0
    %v2917 = vsel %vm2853, 1, 0
    %v2918 = vsel %vm2854, 1, 0
    %v2919 = vsel %vm2855, 1, 0
    %v2920 = vcvt.s32.f32 %v2856
    %v2921 = vcvt.s32.f32 %v2857
    %v2922 = vcvt.s32.f32 %v2858
    %v2923 = vcvt.s32.f32 %v2859
    %v2924 = vcvt.s32.f32 %v2860
    %v2925 = vcvt.s32.f32 %v2861
    %v2926 = vcvt.s32.f32 %v2862
    %v2927 = vcvt.s32.f32 %v2863
    %v2928 = vcvt.s32.f32 %v2864
    %v2929 = vcvt.s32.f32 %v2865
    %v2930 = vcvt.s32.f32 %v2866
    %v2931 = vcvt.s32.f32 %v2867
    %v2932 = vcvt.s32.f32 %v2868
    %v2933 = vcvt.s32.f32 %v2869
    %v2934 = vcvt.s32.f32 %v2870
    %v2935 = vcvt.s32.f32 %v2871
    %v2936 = vcvt.s32.f32 %v2872
    %v2937 = vcvt.s32.f32 %v2873
    %v2938 = vcvt.s32.f32 %v2874
    %v2939 = vcvt.s32.f32 %v2875
    %v2940 = vcvt.s32.f32 %v2876
    %v2941 = vcvt.s32.f32 %v2877
    %v2942 = vcvt.s32.f32 %v2878
    %v2943 = vcvt.s32.f32 %v2879
    %v2944 = vcvt.s32.f32 %v2880
    %v2945 = vcvt.s32.f32 %v2881
    %v2946 = vcvt.s32.f32 %v2882
    %v2947 = vcvt.s32.f32 %v2883
    %v2948 = vcvt.s32.f32 %v2884
    %v2949 = vcvt.s32.f32 %v2885
    %v2950 = vcvt.s32.f32 %v2886
    %v2951 = vcvt.s32.f32 %v2887
    %v2952 = vcvt.s32.f32 %v2888
    %v2953 = vcvt.s32.f32 %v2889
    %v2954 = vcvt.s32.f32 %v2890
    %v2955 = vcvt.s32.f32 %v2891
    %v2956 = vcvt.s32.f32 %v2892
    %v2957 = vcvt.s32.f32 %v2893
    %v2958 = vcvt.s32.f32 %v2894
    %v2959 = vcvt.s32.f32 %v2895
    %v2960 = vcvt.s32.f32 %v2896
    %v2961 = vcvt.s32.f32 %v2897
    %v2962 = vcvt.s32.f32 %v2898
    %v2963 = vcvt.s32.f32 %v2899
    %v2964 = vcvt.s32.f32 %v2900
    %v2965 = vcvt.s32.f32 %v2901
    %v2966 = vcvt.s32.f32 %v2902
    %v2967 = vcvt.s32.f32 %v2903
    %v2968 = vcvt.s32.f32 %v2904
    %v2969 = vcvt.s32.f32 %v2905
    %v2970 = vcvt.s32.f32 %v2906
    %v2971 = vcvt.s32.f32 %v2907
    %v2972 = vcvt.s32.f32 %v2908
    %v2973 = vcvt.s32.f32 %v2909
    %v2974 = vcvt.s32.f32 %v2910
    %v2975 = vcvt.s32.f32 %v2911
    %v2976 = vcvt.s32.f32 %v2912
    %v2977 = vcvt.s32.f32 %v2913
    %v2978 = vcvt.s32.f32 %v2914
    %v2979 = vcvt.s32.f32 %v2915
    %v2980 = vcvt.s32.f32 %v2916
    %v2981 = vcvt.s32.f32 %v2917
    %v2982 = vcvt.s32.f32 %v2918
    %v2983 = vcvt.s32.f32 %v2919
    %v2984 = vsub.f32 1.0, %v2920
    %v2985 = vsub.f32 1.0, %v2921
    %v2986 = vsub.f32 1.0, %v2922
    %v2987 = vsub.f32 1.0, %v2923
    %v2988 = vsub.f32 1.0, %v2924
    %v2989 = vsub.f32 1.0, %v2925
    %v2990 = vsub.f32 1.0, %v2926
    %v2991 = vsub.f32 1.0, %v2927
    %v2992 = vsub.f32 1.0, %v2928
    %v2993 = vsub.f32 1.0, %v2929
    %v2994 = vsub.f32 1.0, %v2930
    %v2995 = vsub.f32 1.0, %v2931
    %v2996 = vsub.f32 1.0, %v2932
    %v2997 = vsub.f32 1.0, %v2933
    %v2998 = vsub.f32 1.0, %v2934
    %v2999 = vsub.f32 1.0, %v2935
    %v3000 = vsub.f32 1.0, %v2936
    %v3001 = vsub.f32 1.0, %v2937
    %v3002 = vsub.f32 1.0, %v2938
    %v3003 = vsub.f32 1.0, %v2939
    %v3004 = vsub.f32 1.0, %v2940
    %v3005 = vsub.f32 1.0, %v2941
    %v3006 = vsub.f32 1.0, %v2942
    %v3007 = vsub.f32 1.0, %v2943
    %v3008 = vsub.f32 1.0, %v2944
    %v3009 = vsub.f32 1.0, %v2945
    %v3010 = vsub.f32 1.0, %v2946
    %v3011 = vsub.f32 1.0, %v2947
    %v3012 = vsub.f32 1.0, %v2948
    %v3013 = vsub.f32 1.0, %v2949
    %v3014 = vsub.f32 1.0, %v2950
    %v3015 = vsub.f32 1.0, %v2951
    %v3016 = vsub.f32 1.0, %v2952
    %v3017 = vsub.f32 1.0, %v2953
    %v3018 = vsub.f32 1.0, %v2954
    %v3019 = vsub.f32 1.0, %v2955
    %v3020 = vsub.f32 1.0, %v2956
    %v3021 = vsub.f32 1.0, %v2957
    %v3022 = vsub.f32 1.0, %v2958
    %v3023 = vsub.f32 1.0, %v2959
    %v3024 = vsub.f32 1.0, %v2960
    %v3025 = vsub.f32 1.0, %v2961
    %v3026 = vsub.f32 1.0, %v2962
    %v3027 = vsub.f32 1.0, %v2963
    %v3028 = vsub.f32 1.0, %v2964
    %v3029 = vsub.f32 1.0, %v2965
    %v3030 = vsub.f32 1.0, %v2966
    %v3031 = vsub.f32 1.0, %v2967
    %v3032 = vsub.f32 1.0, %v2968
    %v3033 = vsub.f32 1.0, %v2969
    %v3034 = vsub.f32 1.0, %v2970
    %v3035 = vsub.f32 1.0, %v2971
    %v3036 = vsub.f32 1.0, %v2972
    %v3037 = vsub.f32 1.0, %v2973
    %v3038 = vsub.f32 1.0, %v2974
    %v3039 = vsub.f32 1.0, %v2975
    %v3040 = vsub.f32 1.0, %v2976
    %v3041 = vsub.f32 1.0, %v2977
    %v3042 = vsub.f32 1.0, %v2978
    %v3043 = vsub.f32 1.0, %v2979
    %v3044 = vsub.f32 1.0, %v2980
    %v3045 = vsub.f32 1.0, %v2981
    %v3046 = vsub.f32 1.0, %v2982
    %v3047 = vsub.f32 1.0, %v2983
    %v3048 = vmul.f32 %v742, %v2984
    %v3049 = vmul.f32 %v743, %v2985
    %v3050 = vmul.f32 %v744, %v2986
    %v3051 = vmul.f32 %v745, %v2987
    %v3052 = vmul.f32 %v746, %v2988
    %v3053 = vmul.f32 %v747, %v2989
    %v3054 = vmul.f32 %v748, %v2990
    %v3055 = vmul.f32 %v749, %v2991
    %v3056 = vmul.f32 %v750, %v2992
    %v3057 = vmul.f32 %v751, %v2993
    %v3058 = vmul.f32 %v752, %v2994
    %v3059 = vmul.f32 %v753, %v2995
    %v3060 = vmul.f32 %v754, %v2996
    %v3061 = vmul.f32 %v755, %v2997
    %v3062 = vmul.f32 %v756, %v2998
    %v3063 = vmul.f32 %v757, %v2999
    %v3064 = vmul.f32 %v758, %v3000
    %v3065 = vmul.f32 %v759, %v3001
    %v3066 = vmul.f32 %v760, %v3002
    %v3067 = vmul.f32 %v761, %v3003
    %v3068 = vmul.f32 %v762, %v3004
    %v3069 = vmul.f32 %v763, %v3005
    %v3070 = vmul.f32 %v764, %v3006
    %v3071 = vmul.f32 %v765, %v3007
    %v3072 = vmul.f32 %v766, %v3008
    %v3073 = vmul.f32 %v767, %v3009
    %v3074 = vmul.f32 %v768, %v3010
    %v3075 = vmul.f32 %v769, %v3011
    %v3076 = vmul.f32 %v770, %v3012
    %v3077 = vmul.f32 %v771, %v3013
    %v3078 = vmul.f32 %v772, %v3014
    %v3079 = vmul.f32 %v773, %v3015
    %v3080 = vmul.f32 %v774, %v3016
    %v3081 = vmul.f32 %v775, %v3017
    %v3082 = vmul.f32 %v776, %v3018
    %v3083 = vmul.f32 %v777, %v3019
    %v3084 = vmul.f32 %v778, %v3020
    %v3085 = vmul.f32 %v779, %v3021
    %v3086 = vmul.f32 %v780, %v3022
    %v3087 = vmul.f32 %v781, %v3023
    %v3088 = vmul.f32 %v782, %v3024
    %v3089 = vmul.f32 %v783, %v3025
    %v3090 = vmul.f32 %v784, %v3026
    %v3091 = vmul.f32 %v785, %v3027
    %v3092 = vmul.f32 %v786, %v3028
    %v3093 = vmul.f32 %v787, %v3029
    %v3094 = vmul.f32 %v788, %v3030
    %v3095 = vmul.f32 %v789, %v3031
    %v3096 = vmul.f32 %v790, %v3032
    %v3097 = vmul.f32 %v791, %v3033
    %v3098 = vmul.f32 %v792, %v3034
    %v3099 = vmul.f32 %v793, %v3035
    %v3100 = vmul.f32 %v794, %v3036
    %v3101 = vmul.f32 %v795, %v3037
    %v3102 = vmul.f32 %v796, %v3038
    %v3103 = vmul.f32 %v797, %v3039
    %v3104 = vmul.f32 %v798, %v3040
    %v3105 = vmul.f32 %v799, %v3041
    %v3106 = vmul.f32 %v800, %v3042
    %v3107 = vmul.f32 %v801, %v3043
    %v3108 = vmul.f32 %v802, %v3044
    %v3109 = vmul.f32 %v803, %v3045
    %v3110 = vmul.f32 %v804, %v3046
    %v3111 = vmul.f32 %v805, %v3047
    %v3112 = vmul.f32 %v2470, %v2920
    %v3113 = vmul.f32 %v2471, %v2921
    %v3114 = vmul.f32 %v2472, %v2922
    %v3115 = vmul.f32 %v2473, %v2923
    %v3116 = vmul.f32 %v2474, %v2924
    %v3117 = vmul.f32 %v2475, %v2925
    %v3118 = vmul.f32 %v2476, %v2926
    %v3119 = vmul.f32 %v2477, %v2927
    %v3120 = vmul.f32 %v2478, %v2928
    %v3121 = vmul.f32 %v2479, %v2929
    %v3122 = vmul.f32 %v2480, %v2930
    %v3123 = vmul.f32 %v2481, %v2931
    %v3124 = vmul.f32 %v2482, %v2932
    %v3125 = vmul.f32 %v2483, %v2933
    %v3126 = vmul.f32 %v2484, %v2934
    %v3127 = vmul.f32 %v2485, %v2935
    %v3128 = vmul.f32 %v2486, %v2936
    %v3129 = vmul.f32 %v2487, %v2937
    %v3130 = vmul.f32 %v2488, %v2938
    %v3131 = vmul.f32 %v2489, %v2939
    %v3132 = vmul.f32 %v2490, %v2940
    %v3133 = vmul.f32 %v2491, %v2941
    %v3134 = vmul.f32 %v2492, %v2942
    %v3135 = vmul.f32 %v2493, %v2943
    %v3136 = vmul.f32 %v2494, %v2944
    %v3137 = vmul.f32 %v2495, %v2945
    %v3138 = vmul.f32 %v2496, %v2946
    %v3139 = vmul.f32 %v2497, %v2947
    %v3140 = vmul.f32 %v2498, %v2948
    %v3141 = vmul.f32 %v2499, %v2949
    %v3142 = vmul.f32 %v2500, %v2950
    %v3143 = vmul.f32 %v2501, %v2951
    %v3144 = vmul.f32 %v2502, %v2952
    %v3145 = vmul.f32 %v2503, %v2953
    %v3146 = vmul.f32 %v2504, %v2954
    %v3147 = vmul.f32 %v2505, %v2955
    %v3148 = vmul.f32 %v2506, %v2956
    %v3149 = vmul.f32 %v2507, %v2957
    %v3150 = vmul.f32 %v2508, %v2958
    %v3151 = vmul.f32 %v2509, %v2959
    %v3152 = vmul.f32 %v2510, %v2960
    %v3153 = vmul.f32 %v2511, %v2961
    %v3154 = vmul.f32 %v2512, %v2962
    %v3155 = vmul.f32 %v2513, %v2963
    %v3156 = vmul.f32 %v2514, %v2964
    %v3157 = vmul.f32 %v2515, %v2965
    %v3158 = vmul.f32 %v2516, %v2966
    %v3159 = vmul.f32 %v2517, %v2967
    %v3160 = vmul.f32 %v2518, %v2968
    %v3161 = vmul.f32 %v2519, %v2969
    %v3162 = vmul.f32 %v2520, %v2970
    %v3163 = vmul.f32 %v2521, %v2971
    %v3164 = vmul.f32 %v2522, %v2972
    %v3165 = vmul.f32 %v2523, %v2973
    %v3166 = vmul.f32 %v2524, %v2974
    %v3167 = vmul.f32 %v2525, %v2975
    %v3168 = vmul.f32 %v2526, %v2976
    %v3169 = vmul.f32 %v2527, %v2977
    %v3170 = vmul.f32 %v2528, %v2978
    %v3171 = vmul.f32 %v2529, %v2979
    %v3172 = vmul.f32 %v2530, %v2980
    %v3173 = vmul.f32 %v2531, %v2981
    %v3174 = vmul.f32 %v2532, %v2982
    %v3175 = vmul.f32 %v2533, %v2983
    %v3176 = vadd.f32 %v3048, %v3112
    %v3177 = vadd.f32 %v3049, %v3113
    %v3178 = vadd.f32 %v3050, %v3114
    %v3179 = vadd.f32 %v3051, %v3115
    %v3180 = vadd.f32 %v3052, %v3116
    %v3181 = vadd.f32 %v3053, %v3117
    %v3182 = vadd.f32 %v3054, %v3118
    %v3183 = vadd.f32 %v3055, %v3119
    %v3184 = vadd.f32 %v3056, %v3120
    %v3185 = vadd.f32 %v3057, %v3121
    %v3186 = vadd.f32 %v3058, %v3122
    %v3187 = vadd.f32 %v3059, %v3123
    %v3188 = vadd.f32 %v3060, %v3124
    %v3189 = vadd.f32 %v3061, %v3125
    %v3190 = vadd.f32 %v3062, %v3126
    %v3191 = vadd.f32 %v3063, %v3127
    %v3192 = vadd.f32 %v3064, %v3128
    %v3193 = vadd.f32 %v3065, %v3129
    %v3194 = vadd.f32 %v3066, %v3130
    %v3195 = vadd.f32 %v3067, %v3131
    %v3196 = vadd.f32 %v3068, %v3132
    %v3197 = vadd.f32 %v3069, %v3133
    %v3198 = vadd.f32 %v3070, %v3134
    %v3199 = vadd.f32 %v3071, %v3135
    %v3200 = vadd.f32 %v3072, %v3136
    %v3201 = vadd.f32 %v3073, %v3137
    %v3202 = vadd.f32 %v3074, %v3138
    %v3203 = vadd.f32 %v3075, %v3139
    %v3204 = vadd.f32 %v3076, %v3140
    %v3205 = vadd.f32 %v3077, %v3141
    %v3206 = vadd.f32 %v3078, %v3142
    %v3207 = vadd.f32 %v3079, %v3143
    %v3208 = vadd.f32 %v3080, %v3144
    %v3209 = vadd.f32 %v3081, %v3145
    %v3210 = vadd.f32 %v3082, %v3146
    %v3211 = vadd.f32 %v3083, %v3147
    %v3212 = vadd.f32 %v3084, %v3148
    %v3213 = vadd.f32 %v3085, %v3149
    %v3214 = vadd.f32 %v3086, %v3150
    %v3215 = vadd.f32 %v3087, %v3151
    %v3216 = vadd.f32 %v3088, %v3152
    %v3217 = vadd.f32 %v3089, %v3153
    %v3218 = vadd.f32 %v3090, %v3154
    %v3219 = vadd.f32 %v3091, %v3155
    %v3220 = vadd.f32 %v3092, %v3156
    %v3221 = vadd.f32 %v3093, %v3157
    %v3222 = vadd.f32 %v3094, %v3158
    %v3223 = vadd.f32 %v3095, %v3159
    %v3224 = vadd.f32 %v3096, %v3160
    %v3225 = vadd.f32 %v3097, %v3161
    %v3226 = vadd.f32 %v3098, %v3162
    %v3227 = vadd.f32 %v3099, %v3163
    %v3228 = vadd.f32 %v3100, %v3164
    %v3229 = vadd.f32 %v3101, %v3165
    %v3230 = vadd.f32 %v3102, %v3166
    %v3231 = vadd.f32 %v3103, %v3167
    %v3232 = vadd.f32 %v3104, %v3168
    %v3233 = vadd.f32 %v3105, %v3169
    %v3234 = vadd.f32 %v3106, %v3170
    %v3235 = vadd.f32 %v3107, %v3171
    %v3236 = vadd.f32 %v3108, %v3172
    %v3237 = vadd.f32 %v3109, %v3173
    %v3238 = vadd.f32 %v3110, %v3174
    %v3239 = vadd.f32 %v3111, %v3175
    %v3240 = vmul.f32 %v3176, 1.442695
    %v3241 = vpow.pop %v3240
    %v3242 = vmul.f32 %v3177, 1.442695
    %v3243 = vpow.pop %v3242
    %v3244 = vmul.f32 %v3178, 1.442695
    %v3245 = vpow.pop %v3244
    %v3246 = vmul.f32 %v3179, 1.442695
    %v3247 = vpow.pop %v3246
    %v3248 = vmul.f32 %v3180, 1.442695
    %v3249 = vpow.pop %v3248
    %v3250 = vmul.f32 %v3181, 1.442695
    %v3251 = vpow.pop %v3250
    %v3252 = vmul.f32 %v3182, 1.442695
    %v3253 = vpow.pop %v3252
    %v3254 = vmul.f32 %v3183, 1.442695
    %v3255 = vpow.pop %v3254
    %v3256 = vmul.f32 %v3184, 1.442695
    %v3257 = vpow.pop %v3256
    %v3258 = vmul.f32 %v3185, 1.442695
    %v3259 = vpow.pop %v3258
    %v3260 = vmul.f32 %v3186, 1.442695
    %v3261 = vpow.pop %v3260
    %v3262 = vmul.f32 %v3187, 1.442695
    %v3263 = vpow.pop %v3262
    %v3264 = vmul.f32 %v3188, 1.442695
    %v3265 = vpow.pop %v3264
    %v3266 = vmul.f32 %v3189, 1.442695
    %v3267 = vpow.pop %v3266
    %v3268 = vmul.f32 %v3190, 1.442695
    %v3269 = vpow.pop %v3268
    %v3270 = vmul.f32 %v3191, 1.442695
    %v3271 = vpow.pop %v3270
    %v3272 = vmul.f32 %v3192, 1.442695
    %v3273 = vpow.pop %v3272
    %v3274 = vmul.f32 %v3193, 1.442695
    %v3275 = vpow.pop %v3274
    %v3276 = vmul.f32 %v3194, 1.442695
    %v3277 = vpow.pop %v3276
    %v3278 = vmul.f32 %v3195, 1.442695
    %v3279 = vpow.pop %v3278
    %v3280 = vmul.f32 %v3196, 1.442695
    %v3281 = vpow.pop %v3280
    %v3282 = vmul.f32 %v3197, 1.442695
    %v3283 = vpow.pop %v3282
    %v3284 = vmul.f32 %v3198, 1.442695
    %v3285 = vpow.pop %v3284
    %v3286 = vmul.f32 %v3199, 1.442695
    %v3287 = vpow.pop %v3286
    %v3288 = vmul.f32 %v3200, 1.442695
    %v3289 = vpow.pop %v3288
    %v3290 = vmul.f32 %v3201, 1.442695
    %v3291 = vpow.pop %v3290
    %v3292 = vmul.f32 %v3202, 1.442695
    %v3293 = vpow.pop %v3292
    %v3294 = vmul.f32 %v3203, 1.442695
    %v3295 = vpow.pop %v3294
    %v3296 = vmul.f32 %v3204, 1.442695
    %v3297 = vpow.pop %v3296
    %v3298 = vmul.f32 %v3205, 1.442695
    %v3299 = vpow.pop %v3298
    %v3300 = vmul.f32 %v3206, 1.442695
    %v3301 = vpow.pop %v3300
    %v3302 = vmul.f32 %v3207, 1.442695
    %v3303 = vpow.pop %v3302
    %v3304 = vmul.f32 %v3208, 1.442695
    %v3305 = vpow.pop %v3304
    %v3306 = vmul.f32 %v3209, 1.442695
    %v3307 = vpow.pop %v3306
    %v3308 = vmul.f32 %v3210, 1.442695
    %v3309 = vpow.pop %v3308
    %v3310 = vmul.f32 %v3211, 1.442695
    %v3311 = vpow.pop %v3310
    %v3312 = vmul.f32 %v3212, 1.442695
    %v3313 = vpow.pop %v3312
    %v3314 = vmul.f32 %v3213, 1.442695
    %v3315 = vpow.pop %v3314
    %v3316 = vmul.f32 %v3214, 1.442695
    %v3317 = vpow.pop %v3316
    %v3318 = vmul.f32 %v3215, 1.442695
    %v3319 = vpow.pop %v3318
    %v3320 = vmul.f32 %v3216, 1.442695
    %v3321 = vpow.pop %v3320
    %v3322 = vmul.f32 %v3217, 1.442695
    %v3323 = vpow.pop %v3322
    %v3324 = vmul.f32 %v3218, 1.442695
    %v3325 = vpow.pop %v3324
    %v3326 = vmul.f32 %v3219, 1.442695
    %v3327 = vpow.pop %v3326
    %v3328 = vmul.f32 %v3220, 1.442695
    %v3329 = vpow.pop %v3328
    %v3330 = vmul.f32 %v3221, 1.442695
    %v3331 = vpow.pop %v3330
    %v3332 = vmul.f32 %v3222, 1.442695
    %v3333 = vpow.pop %v3332
    %v3334 = vmul.f32 %v3223, 1.442695
    %v3335 = vpow.pop %v3334
    %v3336 = vmul.f32 %v3224, 1.442695
    %v3337 = vpow.pop %v3336
    %v3338 = vmul.f32 %v3225, 1.442695
    %v3339 = vpow.pop %v3338
    %v3340 = vmul.f32 %v3226, 1.442695
    %v3341 = vpow.pop %v3340
    %v3342 = vmul.f32 %v3227, 1.442695
    %v3343 = vpow.pop %v3342
    %v3344 = vmul.f32 %v3228, 1.442695
    %v3345 = vpow.pop %v3344
    %v3346 = vmul.f32 %v3229, 1.442695
    %v3347 = vpow.pop %v3346
    %v3348 = vmul.f32 %v3230, 1.442695
    %v3349 = vpow.pop %v3348
    %v3350 = vmul.f32 %v3231, 1.442695
    %v3351 = vpow.pop %v3350
    %v3352 = vmul.f32 %v3232, 1.442695
    %v3353 = vpow.pop %v3352
    %v3354 = vmul.f32 %v3233, 1.442695
    %v3355 = vpow.pop %v3354
    %v3356 = vmul.f32 %v3234, 1.442695
    %v3357 = vpow.pop %v3356
    %v3358 = vmul.f32 %v3235, 1.442695
    %v3359 = vpow.pop %v3358
    %v3360 = vmul.f32 %v3236, 1.442695
    %v3361 = vpow.pop %v3360
    %v3362 = vmul.f32 %v3237, 1.442695
    %v3363 = vpow.pop %v3362
    %v3364 = vmul.f32 %v3238, 1.442695
    %v3365 = vpow.pop %v3364
    %v3366 = vmul.f32 %v3239, 1.442695
    %v3367 = vpow.pop %v3366
    %v3368 = vsel %vm549, %v3241, 0.0
    %3369 = vadd.xlane.f32.xlu0 %v3368
    %v3370 = vpop.xlane.xlu0 %3369
    %v3371 = vsel %vm549, %v3243, 0.0
    %3372 = vadd.xlane.f32.xlu0 %v3371
    %v3373 = vpop.xlane.xlu0 %3372
    %v3374 = vsel %vm549, %v3245, 0.0
    %3375 = vadd.xlane.f32.xlu0 %v3374
    %v3376 = vpop.xlane.xlu0 %3375
    %v3377 = vsel %vm549, %v3247, 0.0
    %3378 = vadd.xlane.f32.xlu0 %v3377
    %v3379 = vpop.xlane.xlu0 %3378
    %v3380 = vsel %vm549, %v3249, 0.0
    %3381 = vadd.xlane.f32.xlu0 %v3380
    %v3382 = vpop.xlane.xlu0 %3381
    %v3383 = vsel %vm549, %v3251, 0.0
    %3384 = vadd.xlane.f32.xlu0 %v3383
    %v3385 = vpop.xlane.xlu0 %3384
    %v3386 = vsel %vm549, %v3253, 0.0
    %3387 = vadd.xlane.f32.xlu0 %v3386
    %v3388 = vpop.xlane.xlu0 %3387
    %v3389 = vsel %vm549, %v3255, 0.0
    %3390 = vadd.xlane.f32.xlu0 %v3389
    %v3391 = vpop.xlane.xlu0 %3390
    %v3392 = vsel %vm549, %v3257, 0.0
    %3393 = vadd.xlane.f32.xlu0 %v3392
    %v3394 = vpop.xlane.xlu0 %3393
    %v3395 = vsel %vm549, %v3259, 0.0
    %3396 = vadd.xlane.f32.xlu0 %v3395
    %v3397 = vpop.xlane.xlu0 %3396
    %v3398 = vsel %vm549, %v3261, 0.0
    %3399 = vadd.xlane.f32.xlu0 %v3398
    %v3400 = vpop.xlane.xlu0 %3399
    %v3401 = vsel %vm549, %v3263, 0.0
    %3402 = vadd.xlane.f32.xlu0 %v3401
    %v3403 = vpop.xlane.xlu0 %3402
    %v3404 = vsel %vm549, %v3265, 0.0
    %3405 = vadd.xlane.f32.xlu0 %v3404
    %v3406 = vpop.xlane.xlu0 %3405
    %v3407 = vsel %vm549, %v3267, 0.0
    %3408 = vadd.xlane.f32.xlu0 %v3407
    %v3409 = vpop.xlane.xlu0 %3408
    %v3410 = vsel %vm549, %v3269, 0.0
    %3411 = vadd.xlane.f32.xlu0 %v3410
    %v3412 = vpop.xlane.xlu0 %3411
    %v3413 = vsel %vm549, %v3271, 0.0
    %3414 = vadd.xlane.f32.xlu0 %v3413
    %v3415 = vpop.xlane.xlu0 %3414
    %v3416 = vsel %vm549, %v3273, 0.0
    %3417 = vadd.xlane.f32.xlu0 %v3416
    %v3418 = vpop.xlane.xlu0 %3417
    %v3419 = vsel %vm549, %v3275, 0.0
    %3420 = vadd.xlane.f32.xlu0 %v3419
    %v3421 = vpop.xlane.xlu0 %3420
    %v3422 = vsel %vm549, %v3277, 0.0
    %3423 = vadd.xlane.f32.xlu0 %v3422
    %v3424 = vpop.xlane.xlu0 %3423
    %v3425 = vsel %vm549, %v3279, 0.0
    %3426 = vadd.xlane.f32.xlu0 %v3425
    %v3427 = vpop.xlane.xlu0 %3426
    %v3428 = vsel %vm549, %v3281, 0.0
    %3429 = vadd.xlane.f32.xlu0 %v3428
    %v3430 = vpop.xlane.xlu0 %3429
    %v3431 = vsel %vm549, %v3283, 0.0
    %3432 = vadd.xlane.f32.xlu0 %v3431
    %v3433 = vpop.xlane.xlu0 %3432
    %v3434 = vsel %vm549, %v3285, 0.0
    %3435 = vadd.xlane.f32.xlu0 %v3434
    %v3436 = vpop.xlane.xlu0 %3435
    %v3437 = vsel %vm549, %v3287, 0.0
    %3438 = vadd.xlane.f32.xlu0 %v3437
    %v3439 = vpop.xlane.xlu0 %3438
    %v3440 = vsel %vm549, %v3289, 0.0
    %3441 = vadd.xlane.f32.xlu0 %v3440
    %v3442 = vpop.xlane.xlu0 %3441
    %v3443 = vsel %vm549, %v3291, 0.0
    %3444 = vadd.xlane.f32.xlu0 %v3443
    %v3445 = vpop.xlane.xlu0 %3444
    %v3446 = vsel %vm549, %v3293, 0.0
    %3447 = vadd.xlane.f32.xlu0 %v3446
    %v3448 = vpop.xlane.xlu0 %3447
    %v3449 = vsel %vm549, %v3295, 0.0
    %3450 = vadd.xlane.f32.xlu0 %v3449
    %v3451 = vpop.xlane.xlu0 %3450
    %v3452 = vsel %vm549, %v3297, 0.0
    %3453 = vadd.xlane.f32.xlu0 %v3452
    %v3454 = vpop.xlane.xlu0 %3453
    %v3455 = vsel %vm549, %v3299, 0.0
    %3456 = vadd.xlane.f32.xlu0 %v3455
    %v3457 = vpop.xlane.xlu0 %3456
    %v3458 = vsel %vm549, %v3301, 0.0
    %3459 = vadd.xlane.f32.xlu0 %v3458
    %v3460 = vpop.xlane.xlu0 %3459
    %v3461 = vsel %vm549, %v3303, 0.0
    %3462 = vadd.xlane.f32.xlu0 %v3461
    %v3463 = vpop.xlane.xlu0 %3462
    %v3464 = vsel %vm549, %v3305, 0.0
    %3465 = vadd.xlane.f32.xlu0 %v3464
    %v3466 = vpop.xlane.xlu0 %3465
    %v3467 = vsel %vm549, %v3307, 0.0
    %3468 = vadd.xlane.f32.xlu0 %v3467
    %v3469 = vpop.xlane.xlu0 %3468
    %v3470 = vsel %vm549, %v3309, 0.0
    %3471 = vadd.xlane.f32.xlu0 %v3470
    %v3472 = vpop.xlane.xlu0 %3471
    %v3473 = vsel %vm549, %v3311, 0.0
    %3474 = vadd.xlane.f32.xlu0 %v3473
    %v3475 = vpop.xlane.xlu0 %3474
    %v3476 = vsel %vm549, %v3313, 0.0
    %3477 = vadd.xlane.f32.xlu0 %v3476
    %v3478 = vpop.xlane.xlu0 %3477
    %v3479 = vsel %vm549, %v3315, 0.0
    %3480 = vadd.xlane.f32.xlu0 %v3479
    %v3481 = vpop.xlane.xlu0 %3480
    %v3482 = vsel %vm549, %v3317, 0.0
    %3483 = vadd.xlane.f32.xlu0 %v3482
    %v3484 = vpop.xlane.xlu0 %3483
    %v3485 = vsel %vm549, %v3319, 0.0
    %3486 = vadd.xlane.f32.xlu0 %v3485
    %v3487 = vpop.xlane.xlu0 %3486
    %v3488 = vsel %vm549, %v3321, 0.0
    %3489 = vadd.xlane.f32.xlu0 %v3488
    %v3490 = vpop.xlane.xlu0 %3489
    %v3491 = vsel %vm549, %v3323, 0.0
    %3492 = vadd.xlane.f32.xlu0 %v3491
    %v3493 = vpop.xlane.xlu0 %3492
    %v3494 = vsel %vm549, %v3325, 0.0
    %3495 = vadd.xlane.f32.xlu0 %v3494
    %v3496 = vpop.xlane.xlu0 %3495
    %v3497 = vsel %vm549, %v3327, 0.0
    %3498 = vadd.xlane.f32.xlu0 %v3497
    %v3499 = vpop.xlane.xlu0 %3498
    %v3500 = vsel %vm549, %v3329, 0.0
    %3501 = vadd.xlane.f32.xlu0 %v3500
    %v3502 = vpop.xlane.xlu0 %3501
    %v3503 = vsel %vm549, %v3331, 0.0
    %3504 = vadd.xlane.f32.xlu0 %v3503
    %v3505 = vpop.xlane.xlu0 %3504
    %v3506 = vsel %vm549, %v3333, 0.0
    %3507 = vadd.xlane.f32.xlu0 %v3506
    %v3508 = vpop.xlane.xlu0 %3507
    %v3509 = vsel %vm549, %v3335, 0.0
    %3510 = vadd.xlane.f32.xlu0 %v3509
    %v3511 = vpop.xlane.xlu0 %3510
    %v3512 = vsel %vm549, %v3337, 0.0
    %3513 = vadd.xlane.f32.xlu0 %v3512
    %v3514 = vpop.xlane.xlu0 %3513
    %v3515 = vsel %vm549, %v3339, 0.0
    %3516 = vadd.xlane.f32.xlu0 %v3515
    %v3517 = vpop.xlane.xlu0 %3516
    %v3518 = vsel %vm549, %v3341, 0.0
    %3519 = vadd.xlane.f32.xlu0 %v3518
    %v3520 = vpop.xlane.xlu0 %3519
    %v3521 = vsel %vm549, %v3343, 0.0
    %3522 = vadd.xlane.f32.xlu0 %v3521
    %v3523 = vpop.xlane.xlu0 %3522
    %v3524 = vsel %vm549, %v3345, 0.0
    %3525 = vadd.xlane.f32.xlu0 %v3524
    %v3526 = vpop.xlane.xlu0 %3525
    %v3527 = vsel %vm549, %v3347, 0.0
    %3528 = vadd.xlane.f32.xlu0 %v3527
    %v3529 = vpop.xlane.xlu0 %3528
    %v3530 = vsel %vm549, %v3349, 0.0
    %3531 = vadd.xlane.f32.xlu0 %v3530
    %v3532 = vpop.xlane.xlu0 %3531
    %v3533 = vsel %vm549, %v3351, 0.0
    %3534 = vadd.xlane.f32.xlu0 %v3533
    %v3535 = vpop.xlane.xlu0 %3534
    %v3536 = vsel %vm549, %v3353, 0.0
    %3537 = vadd.xlane.f32.xlu0 %v3536
    %v3538 = vpop.xlane.xlu0 %3537
    %v3539 = vsel %vm549, %v3355, 0.0
    %3540 = vadd.xlane.f32.xlu0 %v3539
    %v3541 = vpop.xlane.xlu0 %3540
    %v3542 = vsel %vm549, %v3357, 0.0
    %3543 = vadd.xlane.f32.xlu0 %v3542
    %v3544 = vpop.xlane.xlu0 %3543
    %v3545 = vsel %vm549, %v3359, 0.0
    %3546 = vadd.xlane.f32.xlu0 %v3545
    %v3547 = vpop.xlane.xlu0 %3546
    %v3548 = vsel %vm549, %v3361, 0.0
    %3549 = vadd.xlane.f32.xlu0 %v3548
    %v3550 = vpop.xlane.xlu0 %3549
    %v3551 = vsel %vm549, %v3363, 0.0
    %3552 = vadd.xlane.f32.xlu0 %v3551
    %v3553 = vpop.xlane.xlu0 %3552
    %v3554 = vsel %vm549, %v3365, 0.0
    %3555 = vadd.xlane.f32.xlu0 %v3554
    %v3556 = vpop.xlane.xlu0 %3555
    %v3557 = vsel %vm549, %v3367, 0.0
    %3558 = vadd.xlane.f32.xlu0 %v3557
    %v3559 = vpop.xlane.xlu0 %3558
    %v3560 = vadd.f32 %v3370, 0.0001
    %v3561 = vadd.f32 %v3373, 0.0001
    %v3562 = vadd.f32 %v3376, 0.0001
    %v3563 = vadd.f32 %v3379, 0.0001
    %v3564 = vadd.f32 %v3382, 0.0001
    %v3565 = vadd.f32 %v3385, 0.0001
    %v3566 = vadd.f32 %v3388, 0.0001
    %v3567 = vadd.f32 %v3391, 0.0001
    %v3568 = vadd.f32 %v3394, 0.0001
    %v3569 = vadd.f32 %v3397, 0.0001
    %v3570 = vadd.f32 %v3400, 0.0001
    %v3571 = vadd.f32 %v3403, 0.0001
    %v3572 = vadd.f32 %v3406, 0.0001
    %v3573 = vadd.f32 %v3409, 0.0001
    %v3574 = vadd.f32 %v3412, 0.0001
    %v3575 = vadd.f32 %v3415, 0.0001
    %v3576 = vadd.f32 %v3418, 0.0001
    %v3577 = vadd.f32 %v3421, 0.0001
    %v3578 = vadd.f32 %v3424, 0.0001
    %v3579 = vadd.f32 %v3427, 0.0001
    %v3580 = vadd.f32 %v3430, 0.0001
    %v3581 = vadd.f32 %v3433, 0.0001
    %v3582 = vadd.f32 %v3436, 0.0001
    %v3583 = vadd.f32 %v3439, 0.0001
    %v3584 = vadd.f32 %v3442, 0.0001
    %v3585 = vadd.f32 %v3445, 0.0001
    %v3586 = vadd.f32 %v3448, 0.0001
    %v3587 = vadd.f32 %v3451, 0.0001
    %v3588 = vadd.f32 %v3454, 0.0001
    %v3589 = vadd.f32 %v3457, 0.0001
    %v3590 = vadd.f32 %v3460, 0.0001
    %v3591 = vadd.f32 %v3463, 0.0001
    %v3592 = vadd.f32 %v3466, 0.0001
    %v3593 = vadd.f32 %v3469, 0.0001
    %v3594 = vadd.f32 %v3472, 0.0001
    %v3595 = vadd.f32 %v3475, 0.0001
    %v3596 = vadd.f32 %v3478, 0.0001
    %v3597 = vadd.f32 %v3481, 0.0001
    %v3598 = vadd.f32 %v3484, 0.0001
    %v3599 = vadd.f32 %v3487, 0.0001
    %v3600 = vadd.f32 %v3490, 0.0001
    %v3601 = vadd.f32 %v3493, 0.0001
    %v3602 = vadd.f32 %v3496, 0.0001
    %v3603 = vadd.f32 %v3499, 0.0001
    %v3604 = vadd.f32 %v3502, 0.0001
    %v3605 = vadd.f32 %v3505, 0.0001
    %v3606 = vadd.f32 %v3508, 0.0001
    %v3607 = vadd.f32 %v3511, 0.0001
    %v3608 = vadd.f32 %v3514, 0.0001
    %v3609 = vadd.f32 %v3517, 0.0001
    %v3610 = vadd.f32 %v3520, 0.0001
    %v3611 = vadd.f32 %v3523, 0.0001
    %v3612 = vadd.f32 %v3526, 0.0001
    %v3613 = vadd.f32 %v3529, 0.0001
    %v3614 = vadd.f32 %v3532, 0.0001
    %v3615 = vadd.f32 %v3535, 0.0001
    %v3616 = vadd.f32 %v3538, 0.0001
    %v3617 = vadd.f32 %v3541, 0.0001
    %v3618 = vadd.f32 %v3544, 0.0001
    %v3619 = vadd.f32 %v3547, 0.0001
    %v3620 = vadd.f32 %v3550, 0.0001
    %v3621 = vadd.f32 %v3553, 0.0001
    %v3622 = vadd.f32 %v3556, 0.0001
    %v3623 = vadd.f32 %v3559, 0.0001
    %v3624 = vlog2.pop %v3560
    %v3625 = vmul.f32 %v3624, 0.6931472
    %v3626 = vlog2.pop %v3561
    %v3627 = vmul.f32 %v3626, 0.6931472
    %v3628 = vlog2.pop %v3562
    %v3629 = vmul.f32 %v3628, 0.6931472
    %v3630 = vlog2.pop %v3563
    %v3631 = vmul.f32 %v3630, 0.6931472
    %v3632 = vlog2.pop %v3564
    %v3633 = vmul.f32 %v3632, 0.6931472
    %v3634 = vlog2.pop %v3565
    %v3635 = vmul.f32 %v3634, 0.6931472
    %v3636 = vlog2.pop %v3566
    %v3637 = vmul.f32 %v3636, 0.6931472
    %v3638 = vlog2.pop %v3567
    %v3639 = vmul.f32 %v3638, 0.6931472
    %v3640 = vlog2.pop %v3568
    %v3641 = vmul.f32 %v3640, 0.6931472
    %v3642 = vlog2.pop %v3569
    %v3643 = vmul.f32 %v3642, 0.6931472
    %v3644 = vlog2.pop %v3570
    %v3645 = vmul.f32 %v3644, 0.6931472
    %v3646 = vlog2.pop %v3571
    %v3647 = vmul.f32 %v3646, 0.6931472
    %v3648 = vlog2.pop %v3572
    %v3649 = vmul.f32 %v3648, 0.6931472
    %v3650 = vlog2.pop %v3573
    %v3651 = vmul.f32 %v3650, 0.6931472
    %v3652 = vlog2.pop %v3574
    %v3653 = vmul.f32 %v3652, 0.6931472
    %v3654 = vlog2.pop %v3575
    %v3655 = vmul.f32 %v3654, 0.6931472
    %v3656 = vlog2.pop %v3576
    %v3657 = vmul.f32 %v3656, 0.6931472
    %v3658 = vlog2.pop %v3577
    %v3659 = vmul.f32 %v3658, 0.6931472
    %v3660 = vlog2.pop %v3578
    %v3661 = vmul.f32 %v3660, 0.6931472
    %v3662 = vlog2.pop %v3579
    %v3663 = vmul.f32 %v3662, 0.6931472
    %v3664 = vlog2.pop %v3580
    %v3665 = vmul.f32 %v3664, 0.6931472
    %v3666 = vlog2.pop %v3581
    %v3667 = vmul.f32 %v3666, 0.6931472
    %v3668 = vlog2.pop %v3582
    %v3669 = vmul.f32 %v3668, 0.6931472
    %v3670 = vlog2.pop %v3583
    %v3671 = vmul.f32 %v3670, 0.6931472
    %v3672 = vlog2.pop %v3584
    %v3673 = vmul.f32 %v3672, 0.6931472
    %v3674 = vlog2.pop %v3585
    %v3675 = vmul.f32 %v3674, 0.6931472
    %v3676 = vlog2.pop %v3586
    %v3677 = vmul.f32 %v3676, 0.6931472
    %v3678 = vlog2.pop %v3587
    %v3679 = vmul.f32 %v3678, 0.6931472
    %v3680 = vlog2.pop %v3588
    %v3681 = vmul.f32 %v3680, 0.6931472
    %v3682 = vlog2.pop %v3589
    %v3683 = vmul.f32 %v3682, 0.6931472
    %v3684 = vlog2.pop %v3590
    %v3685 = vmul.f32 %v3684, 0.6931472
    %v3686 = vlog2.pop %v3591
    %v3687 = vmul.f32 %v3686, 0.6931472
    %v3688 = vlog2.pop %v3592
    %v3689 = vmul.f32 %v3688, 0.6931472
    %v3690 = vlog2.pop %v3593
    %v3691 = vmul.f32 %v3690, 0.6931472
    %v3692 = vlog2.pop %v3594
    %v3693 = vmul.f32 %v3692, 0.6931472
    %v3694 = vlog2.pop %v3595
    %v3695 = vmul.f32 %v3694, 0.6931472
    %v3696 = vlog2.pop %v3596
    %v3697 = vmul.f32 %v3696, 0.6931472
    %v3698 = vlog2.pop %v3597
    %v3699 = vmul.f32 %v3698, 0.6931472
    %v3700 = vlog2.pop %v3598
    %v3701 = vmul.f32 %v3700, 0.6931472
    %v3702 = vlog2.pop %v3599
    %v3703 = vmul.f32 %v3702, 0.6931472
    %v3704 = vlog2.pop %v3600
    %v3705 = vmul.f32 %v3704, 0.6931472
    %v3706 = vlog2.pop %v3601
    %v3707 = vmul.f32 %v3706, 0.6931472
    %v3708 = vlog2.pop %v3602
    %v3709 = vmul.f32 %v3708, 0.6931472
    %v3710 = vlog2.pop %v3603
    %v3711 = vmul.f32 %v3710, 0.6931472
    %v3712 = vlog2.pop %v3604
    %v3713 = vmul.f32 %v3712, 0.6931472
    %v3714 = vlog2.pop %v3605
    %v3715 = vmul.f32 %v3714, 0.6931472
    %v3716 = vlog2.pop %v3606
    %v3717 = vmul.f32 %v3716, 0.6931472
    %v3718 = vlog2.pop %v3607
    %v3719 = vmul.f32 %v3718, 0.6931472
    %v3720 = vlog2.pop %v3608
    %v3721 = vmul.f32 %v3720, 0.6931472
    %v3722 = vlog2.pop %v3609
    %v3723 = vmul.f32 %v3722, 0.6931472
    %v3724 = vlog2.pop %v3610
    %v3725 = vmul.f32 %v3724, 0.6931472
    %v3726 = vlog2.pop %v3611
    %v3727 = vmul.f32 %v3726, 0.6931472
    %v3728 = vlog2.pop %v3612
    %v3729 = vmul.f32 %v3728, 0.6931472
    %v3730 = vlog2.pop %v3613
    %v3731 = vmul.f32 %v3730, 0.6931472
    %v3732 = vlog2.pop %v3614
    %v3733 = vmul.f32 %v3732, 0.6931472
    %v3734 = vlog2.pop %v3615
    %v3735 = vmul.f32 %v3734, 0.6931472
    %v3736 = vlog2.pop %v3616
    %v3737 = vmul.f32 %v3736, 0.6931472
    %v3738 = vlog2.pop %v3617
    %v3739 = vmul.f32 %v3738, 0.6931472
    %v3740 = vlog2.pop %v3618
    %v3741 = vmul.f32 %v3740, 0.6931472
    %v3742 = vlog2.pop %v3619
    %v3743 = vmul.f32 %v3742, 0.6931472
    %v3744 = vlog2.pop %v3620
    %v3745 = vmul.f32 %v3744, 0.6931472
    %v3746 = vlog2.pop %v3621
    %v3747 = vmul.f32 %v3746, 0.6931472
    %v3748 = vlog2.pop %v3622
    %v3749 = vmul.f32 %v3748, 0.6931472
    %v3750 = vlog2.pop %v3623
    %v3751 = vmul.f32 %v3750, 0.6931472
    %v3752 = vsub.f32 %v3176, %v3625
    %v3753 = vsub.f32 %v3177, %v3627
    %v3754 = vsub.f32 %v3178, %v3629
    %v3755 = vsub.f32 %v3179, %v3631
    %v3756 = vsub.f32 %v3180, %v3633
    %v3757 = vsub.f32 %v3181, %v3635
    %v3758 = vsub.f32 %v3182, %v3637
    %v3759 = vsub.f32 %v3183, %v3639
    %v3760 = vsub.f32 %v3184, %v3641
    %v3761 = vsub.f32 %v3185, %v3643
    %v3762 = vsub.f32 %v3186, %v3645
    %v3763 = vsub.f32 %v3187, %v3647
    %v3764 = vsub.f32 %v3188, %v3649
    %v3765 = vsub.f32 %v3189, %v3651
    %v3766 = vsub.f32 %v3190, %v3653
    %v3767 = vsub.f32 %v3191, %v3655
    %v3768 = vsub.f32 %v3192, %v3657
    %v3769 = vsub.f32 %v3193, %v3659
    %v3770 = vsub.f32 %v3194, %v3661
    %v3771 = vsub.f32 %v3195, %v3663
    %v3772 = vsub.f32 %v3196, %v3665
    %v3773 = vsub.f32 %v3197, %v3667
    %v3774 = vsub.f32 %v3198, %v3669
    %v3775 = vsub.f32 %v3199, %v3671
    %v3776 = vsub.f32 %v3200, %v3673
    %v3777 = vsub.f32 %v3201, %v3675
    %v3778 = vsub.f32 %v3202, %v3677
    %v3779 = vsub.f32 %v3203, %v3679
    %v3780 = vsub.f32 %v3204, %v3681
    %v3781 = vsub.f32 %v3205, %v3683
    %v3782 = vsub.f32 %v3206, %v3685
    %v3783 = vsub.f32 %v3207, %v3687
    %v3784 = vsub.f32 %v3208, %v3689
    %v3785 = vsub.f32 %v3209, %v3691
    %v3786 = vsub.f32 %v3210, %v3693
    %v3787 = vsub.f32 %v3211, %v3695
    %v3788 = vsub.f32 %v3212, %v3697
    %v3789 = vsub.f32 %v3213, %v3699
    %v3790 = vsub.f32 %v3214, %v3701
    %v3791 = vsub.f32 %v3215, %v3703
    %v3792 = vsub.f32 %v3216, %v3705
    %v3793 = vsub.f32 %v3217, %v3707
    %v3794 = vsub.f32 %v3218, %v3709
    %v3795 = vsub.f32 %v3219, %v3711
    %v3796 = vsub.f32 %v3220, %v3713
    %v3797 = vsub.f32 %v3221, %v3715
    %v3798 = vsub.f32 %v3222, %v3717
    %v3799 = vsub.f32 %v3223, %v3719
    %v3800 = vsub.f32 %v3224, %v3721
    %v3801 = vsub.f32 %v3225, %v3723
    %v3802 = vsub.f32 %v3226, %v3725
    %v3803 = vsub.f32 %v3227, %v3727
    %v3804 = vsub.f32 %v3228, %v3729
    %v3805 = vsub.f32 %v3229, %v3731
    %v3806 = vsub.f32 %v3230, %v3733
    %v3807 = vsub.f32 %v3231, %v3735
    %v3808 = vsub.f32 %v3232, %v3737
    %v3809 = vsub.f32 %v3233, %v3739
    %v3810 = vsub.f32 %v3234, %v3741
    %v3811 = vsub.f32 %v3235, %v3743
    %v3812 = vsub.f32 %v3236, %v3745
    %v3813 = vsub.f32 %v3237, %v3747
    %v3814 = vsub.f32 %v3238, %v3749
    %v3815 = vsub.f32 %v3239, %v3751
    %v3816 = vmul.f32 %v2920, %v3752
    %v3817 = vmul.f32 %v2921, %v3753
    %v3818 = vmul.f32 %v2922, %v3754
    %v3819 = vmul.f32 %v2923, %v3755
    %v3820 = vmul.f32 %v2924, %v3756
    %v3821 = vmul.f32 %v2925, %v3757
    %v3822 = vmul.f32 %v2926, %v3758
    %v3823 = vmul.f32 %v2927, %v3759
    %v3824 = vmul.f32 %v2928, %v3760
    %v3825 = vmul.f32 %v2929, %v3761
    %v3826 = vmul.f32 %v2930, %v3762
    %v3827 = vmul.f32 %v2931, %v3763
    %v3828 = vmul.f32 %v2932, %v3764
    %v3829 = vmul.f32 %v2933, %v3765
    %v3830 = vmul.f32 %v2934, %v3766
    %v3831 = vmul.f32 %v2935, %v3767
    %v3832 = vmul.f32 %v2936, %v3768
    %v3833 = vmul.f32 %v2937, %v3769
    %v3834 = vmul.f32 %v2938, %v3770
    %v3835 = vmul.f32 %v2939, %v3771
    %v3836 = vmul.f32 %v2940, %v3772
    %v3837 = vmul.f32 %v2941, %v3773
    %v3838 = vmul.f32 %v2942, %v3774
    %v3839 = vmul.f32 %v2943, %v3775
    %v3840 = vmul.f32 %v2944, %v3776
    %v3841 = vmul.f32 %v2945, %v3777
    %v3842 = vmul.f32 %v2946, %v3778
    %v3843 = vmul.f32 %v2947, %v3779
    %v3844 = vmul.f32 %v2948, %v3780
    %v3845 = vmul.f32 %v2949, %v3781
    %v3846 = vmul.f32 %v2950, %v3782
    %v3847 = vmul.f32 %v2951, %v3783
    %v3848 = vmul.f32 %v2952, %v3784
    %v3849 = vmul.f32 %v2953, %v3785
    %v3850 = vmul.f32 %v2954, %v3786
    %v3851 = vmul.f32 %v2955, %v3787
    %v3852 = vmul.f32 %v2956, %v3788
    %v3853 = vmul.f32 %v2957, %v3789
    %v3854 = vmul.f32 %v2958, %v3790
    %v3855 = vmul.f32 %v2959, %v3791
    %v3856 = vmul.f32 %v2960, %v3792
    %v3857 = vmul.f32 %v2961, %v3793
    %v3858 = vmul.f32 %v2962, %v3794
    %v3859 = vmul.f32 %v2963, %v3795
    %v3860 = vmul.f32 %v2964, %v3796
    %v3861 = vmul.f32 %v2965, %v3797
    %v3862 = vmul.f32 %v2966, %v3798
    %v3863 = vmul.f32 %v2967, %v3799
    %v3864 = vmul.f32 %v2968, %v3800
    %v3865 = vmul.f32 %v2969, %v3801
    %v3866 = vmul.f32 %v2970, %v3802
    %v3867 = vmul.f32 %v2971, %v3803
    %v3868 = vmul.f32 %v2972, %v3804
    %v3869 = vmul.f32 %v2973, %v3805
    %v3870 = vmul.f32 %v2974, %v3806
    %v3871 = vmul.f32 %v2975, %v3807
    %v3872 = vmul.f32 %v2976, %v3808
    %v3873 = vmul.f32 %v2977, %v3809
    %v3874 = vmul.f32 %v2978, %v3810
    %v3875 = vmul.f32 %v2979, %v3811
    %v3876 = vmul.f32 %v2980, %v3812
    %v3877 = vmul.f32 %v2981, %v3813
    %v3878 = vmul.f32 %v2982, %v3814
    %v3879 = vmul.f32 %v2983, %v3815
    %v3880 = vsel %vm549, %v3816, 0.0
    %3881 = vadd.xlane.f32.xlu0 %v3880
    %v3882 = vpop.xlane.xlu0 %3881
    %v3883 = vsel %vm549, %v3817, 0.0
    %3884 = vadd.xlane.f32.xlu0 %v3883
    %v3885 = vpop.xlane.xlu0 %3884
    %v3886 = vsel %vm549, %v3818, 0.0
    %3887 = vadd.xlane.f32.xlu0 %v3886
    %v3888 = vpop.xlane.xlu0 %3887
    %v3889 = vsel %vm549, %v3819, 0.0
    %3890 = vadd.xlane.f32.xlu0 %v3889
    %v3891 = vpop.xlane.xlu0 %3890
    %v3892 = vsel %vm549, %v3820, 0.0
    %3893 = vadd.xlane.f32.xlu0 %v3892
    %v3894 = vpop.xlane.xlu0 %3893
    %v3895 = vsel %vm549, %v3821, 0.0
    %3896 = vadd.xlane.f32.xlu0 %v3895
    %v3897 = vpop.xlane.xlu0 %3896
    %v3898 = vsel %vm549, %v3822, 0.0
    %3899 = vadd.xlane.f32.xlu0 %v3898
    %v3900 = vpop.xlane.xlu0 %3899
    %v3901 = vsel %vm549, %v3823, 0.0
    %3902 = vadd.xlane.f32.xlu0 %v3901
    %v3903 = vpop.xlane.xlu0 %3902
    %v3904 = vsel %vm549, %v3824, 0.0
    %3905 = vadd.xlane.f32.xlu0 %v3904
    %v3906 = vpop.xlane.xlu0 %3905
    %v3907 = vsel %vm549, %v3825, 0.0
    %3908 = vadd.xlane.f32.xlu0 %v3907
    %v3909 = vpop.xlane.xlu0 %3908
    %v3910 = vsel %vm549, %v3826, 0.0
    %3911 = vadd.xlane.f32.xlu0 %v3910
    %v3912 = vpop.xlane.xlu0 %3911
    %v3913 = vsel %vm549, %v3827, 0.0
    %3914 = vadd.xlane.f32.xlu0 %v3913
    %v3915 = vpop.xlane.xlu0 %3914
    %v3916 = vsel %vm549, %v3828, 0.0
    %3917 = vadd.xlane.f32.xlu0 %v3916
    %v3918 = vpop.xlane.xlu0 %3917
    %v3919 = vsel %vm549, %v3829, 0.0
    %3920 = vadd.xlane.f32.xlu0 %v3919
    %v3921 = vpop.xlane.xlu0 %3920
    %v3922 = vsel %vm549, %v3830, 0.0
    %3923 = vadd.xlane.f32.xlu0 %v3922
    %v3924 = vpop.xlane.xlu0 %3923
    %v3925 = vsel %vm549, %v3831, 0.0
    %3926 = vadd.xlane.f32.xlu0 %v3925
    %v3927 = vpop.xlane.xlu0 %3926
    %v3928 = vsel %vm549, %v3832, 0.0
    %3929 = vadd.xlane.f32.xlu0 %v3928
    %v3930 = vpop.xlane.xlu0 %3929
    %v3931 = vsel %vm549, %v3833, 0.0
    %3932 = vadd.xlane.f32.xlu0 %v3931
    %v3933 = vpop.xlane.xlu0 %3932
    %v3934 = vsel %vm549, %v3834, 0.0
    %3935 = vadd.xlane.f32.xlu0 %v3934
    %v3936 = vpop.xlane.xlu0 %3935
    %v3937 = vsel %vm549, %v3835, 0.0
    %3938 = vadd.xlane.f32.xlu0 %v3937
    %v3939 = vpop.xlane.xlu0 %3938
    %v3940 = vsel %vm549, %v3836, 0.0
    %3941 = vadd.xlane.f32.xlu0 %v3940
    %v3942 = vpop.xlane.xlu0 %3941
    %v3943 = vsel %vm549, %v3837, 0.0
    %3944 = vadd.xlane.f32.xlu0 %v3943
    %v3945 = vpop.xlane.xlu0 %3944
    %v3946 = vsel %vm549, %v3838, 0.0
    %3947 = vadd.xlane.f32.xlu0 %v3946
    %v3948 = vpop.xlane.xlu0 %3947
    %v3949 = vsel %vm549, %v3839, 0.0
    %3950 = vadd.xlane.f32.xlu0 %v3949
    %v3951 = vpop.xlane.xlu0 %3950
    %v3952 = vsel %vm549, %v3840, 0.0
    %3953 = vadd.xlane.f32.xlu0 %v3952
    %v3954 = vpop.xlane.xlu0 %3953
    %v3955 = vsel %vm549, %v3841, 0.0
    %3956 = vadd.xlane.f32.xlu0 %v3955
    %v3957 = vpop.xlane.xlu0 %3956
    %v3958 = vsel %vm549, %v3842, 0.0
    %3959 = vadd.xlane.f32.xlu0 %v3958
    %v3960 = vpop.xlane.xlu0 %3959
    %v3961 = vsel %vm549, %v3843, 0.0
    %3962 = vadd.xlane.f32.xlu0 %v3961
    %v3963 = vpop.xlane.xlu0 %3962
    %v3964 = vsel %vm549, %v3844, 0.0
    %3965 = vadd.xlane.f32.xlu0 %v3964
    %v3966 = vpop.xlane.xlu0 %3965
    %v3967 = vsel %vm549, %v3845, 0.0
    %3968 = vadd.xlane.f32.xlu0 %v3967
    %v3969 = vpop.xlane.xlu0 %3968
    %v3970 = vsel %vm549, %v3846, 0.0
    %3971 = vadd.xlane.f32.xlu0 %v3970
    %v3972 = vpop.xlane.xlu0 %3971
    %v3973 = vsel %vm549, %v3847, 0.0
    %3974 = vadd.xlane.f32.xlu0 %v3973
    %v3975 = vpop.xlane.xlu0 %3974
    %v3976 = vsel %vm549, %v3848, 0.0
    %3977 = vadd.xlane.f32.xlu0 %v3976
    %v3978 = vpop.xlane.xlu0 %3977
    %v3979 = vsel %vm549, %v3849, 0.0
    %3980 = vadd.xlane.f32.xlu0 %v3979
    %v3981 = vpop.xlane.xlu0 %3980
    %v3982 = vsel %vm549, %v3850, 0.0
    %3983 = vadd.xlane.f32.xlu0 %v3982
    %v3984 = vpop.xlane.xlu0 %3983
    %v3985 = vsel %vm549, %v3851, 0.0
    %3986 = vadd.xlane.f32.xlu0 %v3985
    %v3987 = vpop.xlane.xlu0 %3986
    %v3988 = vsel %vm549, %v3852, 0.0
    %3989 = vadd.xlane.f32.xlu0 %v3988
    %v3990 = vpop.xlane.xlu0 %3989
    %v3991 = vsel %vm549, %v3853, 0.0
    %3992 = vadd.xlane.f32.xlu0 %v3991
    %v3993 = vpop.xlane.xlu0 %3992
    %v3994 = vsel %vm549, %v3854, 0.0
    %3995 = vadd.xlane.f32.xlu0 %v3994
    %v3996 = vpop.xlane.xlu0 %3995
    %v3997 = vsel %vm549, %v3855, 0.0
    %3998 = vadd.xlane.f32.xlu0 %v3997
    %v3999 = vpop.xlane.xlu0 %3998
    %v4000 = vsel %vm549, %v3856, 0.0
    %4001 = vadd.xlane.f32.xlu0 %v4000
    %v4002 = vpop.xlane.xlu0 %4001
    %v4003 = vsel %vm549, %v3857, 0.0
    %4004 = vadd.xlane.f32.xlu0 %v4003
    %v4005 = vpop.xlane.xlu0 %4004
    %v4006 = vsel %vm549, %v3858, 0.0
    %4007 = vadd.xlane.f32.xlu0 %v4006
    %v4008 = vpop.xlane.xlu0 %4007
    %v4009 = vsel %vm549, %v3859, 0.0
    %4010 = vadd.xlane.f32.xlu0 %v4009
    %v4011 = vpop.xlane.xlu0 %4010
    %v4012 = vsel %vm549, %v3860, 0.0
    %4013 = vadd.xlane.f32.xlu0 %v4012
    %v4014 = vpop.xlane.xlu0 %4013
    %v4015 = vsel %vm549, %v3861, 0.0
    %4016 = vadd.xlane.f32.xlu0 %v4015
    %v4017 = vpop.xlane.xlu0 %4016
    %v4018 = vsel %vm549, %v3862, 0.0
    %4019 = vadd.xlane.f32.xlu0 %v4018
    %v4020 = vpop.xlane.xlu0 %4019
    %v4021 = vsel %vm549, %v3863, 0.0
    %4022 = vadd.xlane.f32.xlu0 %v4021
    %v4023 = vpop.xlane.xlu0 %4022
    %v4024 = vsel %vm549, %v3864, 0.0
    %4025 = vadd.xlane.f32.xlu0 %v4024
    %v4026 = vpop.xlane.xlu0 %4025
    %v4027 = vsel %vm549, %v3865, 0.0
    %4028 = vadd.xlane.f32.xlu0 %v4027
    %v4029 = vpop.xlane.xlu0 %4028
    %v4030 = vsel %vm549, %v3866, 0.0
    %4031 = vadd.xlane.f32.xlu0 %v4030
    %v4032 = vpop.xlane.xlu0 %4031
    %v4033 = vsel %vm549, %v3867, 0.0
    %4034 = vadd.xlane.f32.xlu0 %v4033
    %v4035 = vpop.xlane.xlu0 %4034
    %v4036 = vsel %vm549, %v3868, 0.0
    %4037 = vadd.xlane.f32.xlu0 %v4036
    %v4038 = vpop.xlane.xlu0 %4037
    %v4039 = vsel %vm549, %v3869, 0.0
    %4040 = vadd.xlane.f32.xlu0 %v4039
    %v4041 = vpop.xlane.xlu0 %4040
    %v4042 = vsel %vm549, %v3870, 0.0
    %4043 = vadd.xlane.f32.xlu0 %v4042
    %v4044 = vpop.xlane.xlu0 %4043
    %v4045 = vsel %vm549, %v3871, 0.0
    %4046 = vadd.xlane.f32.xlu0 %v4045
    %v4047 = vpop.xlane.xlu0 %4046
    %v4048 = vsel %vm549, %v3872, 0.0
    %4049 = vadd.xlane.f32.xlu0 %v4048
    %v4050 = vpop.xlane.xlu0 %4049
    %v4051 = vsel %vm549, %v3873, 0.0
    %4052 = vadd.xlane.f32.xlu0 %v4051
    %v4053 = vpop.xlane.xlu0 %4052
    %v4054 = vsel %vm549, %v3874, 0.0
    %4055 = vadd.xlane.f32.xlu0 %v4054
    %v4056 = vpop.xlane.xlu0 %4055
    %v4057 = vsel %vm549, %v3875, 0.0
    %4058 = vadd.xlane.f32.xlu0 %v4057
    %v4059 = vpop.xlane.xlu0 %4058
    %v4060 = vsel %vm549, %v3876, 0.0
    %4061 = vadd.xlane.f32.xlu0 %v4060
    %v4062 = vpop.xlane.xlu0 %4061
    %v4063 = vsel %vm549, %v3877, 0.0
    %4064 = vadd.xlane.f32.xlu0 %v4063
    %v4065 = vpop.xlane.xlu0 %4064
    %v4066 = vsel %vm549, %v3878, 0.0
    %4067 = vadd.xlane.f32.xlu0 %v4066
    %v4068 = vpop.xlane.xlu0 %4067
    %v4069 = vsel %vm549, %v3879, 0.0
    %4070 = vadd.xlane.f32.xlu0 %v4069
    %v4071 = vpop.xlane.xlu0 %4070
    %v4072 = vadd.f32 %v3882, %v3885
    %v4073 = vadd.f32 %v4072, %v3888
    %v4074 = vadd.f32 %v4073, %v3891
    %v4075 = vadd.f32 %v4074, %v3894
    %v4076 = vadd.f32 %v4075, %v3897
    %v4077 = vadd.f32 %v4076, %v3900
    %v4078 = vadd.f32 %v4077, %v3903
    %v4079 = vadd.f32 %v4078, %v3906
    %v4080 = vadd.f32 %v4079, %v3909
    %v4081 = vadd.f32 %v4080, %v3912
    %v4082 = vadd.f32 %v4081, %v3915
    %v4083 = vadd.f32 %v4082, %v3918
    %v4084 = vadd.f32 %v4083, %v3921
    %v4085 = vadd.f32 %v4084, %v3924
    %v4086 = vadd.f32 %v4085, %v3927
    %v4087 = vadd.f32 %v4086, %v3930
    %v4088 = vadd.f32 %v4087, %v3933
    %v4089 = vadd.f32 %v4088, %v3936
    %v4090 = vadd.f32 %v4089, %v3939
    %v4091 = vadd.f32 %v4090, %v3942
    %v4092 = vadd.f32 %v4091, %v3945
    %v4093 = vadd.f32 %v4092, %v3948
    %v4094 = vadd.f32 %v4093, %v3951
    %v4095 = vadd.f32 %v4094, %v3954
    %v4096 = vadd.f32 %v4095, %v3957
    %v4097 = vadd.f32 %v4096, %v3960
    %v4098 = vadd.f32 %v4097, %v3963
    %v4099 = vadd.f32 %v4098, %v3966
    %v4100 = vadd.f32 %v4099, %v3969
    %v4101 = vadd.f32 %v4100, %v3972
    %v4102 = vadd.f32 %v4101, %v3975
    %v4103 = vadd.f32 %v4102, %v3978
    %v4104 = vadd.f32 %v4103, %v3981
    %v4105 = vadd.f32 %v4104, %v3984
    %v4106 = vadd.f32 %v4105, %v3987
    %v4107 = vadd.f32 %v4106, %v3990
    %v4108 = vadd.f32 %v4107, %v3993
    %v4109 = vadd.f32 %v4108, %v3996
    %v4110 = vadd.f32 %v4109, %v3999
    %v4111 = vadd.f32 %v4110, %v4002
    %v4112 = vadd.f32 %v4111, %v4005
    %v4113 = vadd.f32 %v4112, %v4008
    %v4114 = vadd.f32 %v4113, %v4011
    %v4115 = vadd.f32 %v4114, %v4014
    %v4116 = vadd.f32 %v4115, %v4017
    %v4117 = vadd.f32 %v4116, %v4020
    %v4118 = vadd.f32 %v4117, %v4023
    %v4119 = vadd.f32 %v4118, %v4026
    %v4120 = vadd.f32 %v4119, %v4029
    %v4121 = vadd.f32 %v4120, %v4032
    %v4122 = vadd.f32 %v4121, %v4035
    %v4123 = vadd.f32 %v4122, %v4038
    %v4124 = vadd.f32 %v4123, %v4041
    %v4125 = vadd.f32 %v4124, %v4044
    %v4126 = vadd.f32 %v4125, %v4047
    %v4127 = vadd.f32 %v4126, %v4050
    %v4128 = vadd.f32 %v4127, %v4053
    %v4129 = vadd.f32 %v4128, %v4056
    %v4130 = vadd.f32 %v4129, %v4059
    %v4131 = vadd.f32 %v4130, %v4062
    %v4132 = vadd.f32 %v4131, %v4065
    %v4133 = vadd.f32 %v4132, %v4068
    %v4134 = vadd.f32 %v4133, %v4071
    %v4135 = vrot.slane %v4134, 4
    %v4136 = vadd.f32 %v4134, %v4135
    %v4137 = vrot.slane %v4136, 2
    %v4138 = vadd.f32 %v4136, %v4137
    %v4139 = vrot.slane %v4138, 1
    %v4140 = vadd.f32 %v4138, %v4139
    %vm4141 = vcmask 0
    %4142 = vst.msk [vmem:[#allocation2] sm:$0x1] %vm4141, %v4140
    // Predicated region
    $region14: #{tpu_custom_call.1} parent=1 // pred_check
      _
    $region15: #{tpu_custom_call.1} parent=1 // pred_check_branch
      %4144 = sbr.rel (0) target = $region17
    $region16: #{tpu_custom_call.1} parent=1 // pred_region
      %4146 = vsyncadd [#allocation3], 0
      %s4148 = sshll.u32 [#allocation2], 4
      %s4149 = int_to_ptr.vmem [resolvable:$true] %s4148
      %s4150 = sshll.u32 %s3, 4
      %s4151 = int_to_ptr.hbm [resolvable:$true] %s4150
      %4153 = dma.vmem_to_hbm [thread:$0]  %s4149, 16, %s4151, [#allocation3]
    $region17: #{tpu_custom_call.1} parent=1 // pred_fallthru
      _
    // Predicated region
    $region18: #{tpu_custom_call.1} parent=1 // pred_check
      _
    $region19: #{tpu_custom_call.1} parent=1 // pred_check_branch
      %4155 = sbr.rel (0) target = $region21
    $region20: #{tpu_custom_call.1} parent=1 // pred_region
      %4157 = dma.done [#allocation3], 16
    $region21: #{tpu_custom_call.1} parent=1 // pred_fallthru
      _
    %4158 = vsyncpa [#allocation3], 1

</llo_original>
